<compile_context>
chip_gen: v6e
topology: v6e:2x2x1
jax: 0.10.0
libtpu: 0.0.40
codegen_flags: <defaults>
</compile_context>

<pallas_src>
import functools
import math

import jax
import jax.numpy as jnp
import numpy as np
from jax.experimental import pallas as pl
from jax.experimental.pallas import tpu as pltpu

D_MODEL = 8      # Encoder(8, 8, 1, 4, 0)
FFN_HIDDEN = 8
N_HEAD = 1       # single head -> no head split/merge needed

# row offsets inside the two packed stage-1 weight arrays
_MAT_SLICES = {"wq": (0, 8), "wkv": (8, 24), "wo": (24, 32),
               "fw1": (32, 40), "fw2": (40, 48)}          # (48, 8)
_VEC_SLICES = {"lin_w": (0, 8), "lin_b": (8, 16), "bq": (16, 24),
               "bkv": (24, 40), "bo": (40, 48), "ln1_g": (48, 56),
               "ln1_b": (56, 64), "fb1": (64, 72), "fb2": (72, 80),
               "ln2_g": (80, 88), "ln2_b": (88, 96)}       # (96, 1)


def _msl(wm, name):
    lo, hi = _MAT_SLICES[name]
    return wm[lo:hi]


def _vsl(wv, name):
    lo, hi = _VEC_SLICES[name]
    return wv[lo:hi]


def _layernorm_cols(x, g, b, eps=1e-5):
    """LayerNorm over the feature (sublane) axis of a (feat, nodes) block."""
    mu = jnp.mean(x, axis=0, keepdims=True)
    var = jnp.mean(jnp.square(x - mu), axis=0, keepdims=True)
    return (x - mu) * jax.lax.rsqrt(var + eps) * g + b


# --------------------------------------------------------------------------
# Stage 1: Linear(1->8) + last EncoderLayer (flash-style tiled attention)
# --------------------------------------------------------------------------
def _attn_kernel(xr_ref, xc_ref, wm_ref, wv_ref, t_ref,
                 q_sc, v2v_sc, m_sc, l_sc, acc_sc, *, num_nodes, scale):
    j = pl.program_id(2)
    wm = wm_ref[...]
    wv = wv_ref[...]
    lin_w, lin_b = _vsl(wv, "lin_w"), _vsl(wv, "lin_b")

    @pl.when(j == 0)
    def _():
        # query-side work hoisted out of the key loop (done once per q tile)
        m_sc[...] = jnp.full_like(m_sc, -1e30)
        l_sc[...] = jnp.zeros_like(l_sc)
        acc_sc[...] = jnp.zeros_like(acc_sc)
        xr = xr_ref[0]                              # (1, tq) query-node values
        v2v_r = lin_w * xr + lin_b                  # (8, tq)  value2vector^T
        v2v_sc[...] = v2v_r
        q_sc[...] = jnp.dot(_msl(wm, "wq"), v2v_r,
                            preferred_element_type=jnp.float32) + _vsl(wv, "bq")

    # key/value path: only wk/wv (16, 8) projection per key tile
    xc = xc_ref[0]                                  # (1, tk)
    v2v_c = lin_w * xc + lin_b                      # (8, tk)
    kv = jnp.dot(_msl(wm, "wkv"), v2v_c,
                 preferred_element_type=jnp.float32) + _vsl(wv, "bkv")
    k = kv[0:D_MODEL]                               # (8, tk)
    v = kv[D_MODEL:2 * D_MODEL]                     # (8, tk)

    # transposed scores (tk, tq); softmax runs over the key (sublane) axis
    q = q_sc[...]
    s = jax.lax.dot_general(
        k.astype(jnp.bfloat16), q.astype(jnp.bfloat16),
        dimension_numbers=(((0,), (0,)), ((), ())),
        preferred_element_type=jnp.float32) * scale
    tk = s.shape[0]
    key_ids = j * tk + jax.lax.broadcasted_iota(jnp.int32, s.shape, 0)
    s = jnp.where(key_ids < num_nodes, s, -1e30)    # finite mask -> NaN-safe

    m_prev = m_sc[...]                              # (1, tq)
    m_new = jnp.maximum(m_prev, jnp.max(s, axis=0, keepdims=True))
    alpha = jnp.exp(m_prev - m_new)
    p = jnp.exp(s - m_new)                          # (tk, tq)
    l_sc[...] = alpha * l_sc[...] + jnp.sum(p, axis=0, keepdims=True)
    acc_sc[...] = alpha * acc_sc[...] + jnp.dot(
        v.astype(jnp.bfloat16), p.astype(jnp.bfloat16),
        preferred_element_type=jnp.float32)
    m_sc[...] = m_new

    @pl.when(j == pl.num_programs(2) - 1)
    def _():
        attn = acc_sc[...] / l_sc[...]              # (8, tq)
        o = jnp.dot(_msl(wm, "wo"), attn,
                    preferred_element_type=jnp.float32) + _vsl(wv, "bo")
        v2v_r = v2v_sc[...]
        h = _layernorm_cols(o + v2v_r, _vsl(wv, "ln1_g"), _vsl(wv, "ln1_b"))
        f = jnp.dot(_msl(wm, "fw1"), h,
                    preferred_element_type=jnp.float32) + _vsl(wv, "fb1")
        f = jnp.maximum(f, 0.0)
        f = jnp.dot(_msl(wm, "fw2"), f,
                    preferred_element_type=jnp.float32) + _vsl(wv, "fb2")
        t = _layernorm_cols(f + h, _vsl(wv, "ln2_g"), _vsl(wv, "ln2_b"))
        t_ref[0] = t.astype(t_ref.dtype)            # (8, tq) lane-dense store


def _transformer(x2, wmat, wvec, *, num_nodes, n_pad, tile_q, tile_k):
    bs = x2.shape[0]
    nq, nk = n_pad // tile_q, n_pad // tile_k
    kernel = functools.partial(_attn_kernel, num_nodes=num_nodes,
                               scale=1.0 / math.sqrt(D_MODEL // N_HEAD))
    return pl.pallas_call(
        kernel,
        out_shape=jax.ShapeDtypeStruct((bs, D_MODEL, n_pad), jnp.bfloat16),
        grid=(bs, nq, nk),
        in_specs=[pl.BlockSpec((1, 1, tile_q), lambda b, i, j: (b, 0, i)),
                  pl.BlockSpec((1, 1, tile_k), lambda b, i, j: (b, 0, j)),
                  pl.BlockSpec(wmat.shape, lambda b, i, j: (0, 0)),
                  pl.BlockSpec(wvec.shape, lambda b, i, j: (0, 0))],
        out_specs=pl.BlockSpec((1, D_MODEL, tile_q), lambda b, i, j: (b, 0, i)),
        scratch_shapes=[pltpu.VMEM((D_MODEL, tile_q), jnp.float32),   # q
                        pltpu.VMEM((D_MODEL, tile_q), jnp.float32),   # v2v
                        pltpu.VMEM((1, tile_q), jnp.float32),         # m
                        pltpu.VMEM((1, tile_q), jnp.float32),         # l
                        pltpu.VMEM((D_MODEL, tile_q), jnp.float32)],  # acc
        compiler_params=pltpu.CompilerParams(
            dimension_semantics=("parallel", "parallel", "arbitrary")),
    )(x2, x2, wmat, wvec)


# --------------------------------------------------------------------------
# Stage 2: GCN layer  G = act(W_bd (F_folded @ A_hat^T[:, tile]) + b_bd)
#   - reduction axis NOT tiled: A read once, no accumulator, no K grid axis
#   - batch folded into sublanes; block-diagonal weight -> one MXU call/step
# --------------------------------------------------------------------------
def _gcn_kernel(f_ref, a_ref, w_ref, b_ref, o_ref, *, relu):
    agg = jnp.dot(f_ref[...], a_ref[...],
                  preferred_element_type=jnp.float32)          # (bs*c_in, tile)
    g = jnp.dot(w_ref[...], agg,
                preferred_element_type=jnp.float32) + b_ref[...]
    if relu:
        g = jnp.maximum(g, 0.0)
    o_ref[...] = g.astype(o_ref.dtype)


def _gcn_layer(f, a_t, w_bd, b_bd, *, relu, tile_n, out_dtype):
    rows, n_pad = f.shape
    out_rows = w_bd.shape[0]
    nt = n_pad // tile_n
    kernel = functools.partial(_gcn_kernel, relu=relu)
    return pl.pallas_call(
        kernel,
        out_shape=jax.ShapeDtypeStruct((out_rows, n_pad), out_dtype),
        grid=(nt,),
        in_specs=[pl.BlockSpec((rows, n_pad), lambda i: (0, 0)),
                  pl.BlockSpec((n_pad, tile_n), lambda i: (0, i)),
                  pl.BlockSpec(w_bd.shape, lambda i: (0, 0)),
                  pl.BlockSpec(b_bd.shape, lambda i: (0, 0))],
        out_specs=pl.BlockSpec((out_rows, tile_n), lambda i: (0, i)),
        compiler_params=pltpu.CompilerParams(
            dimension_semantics=("parallel",)),
    )(f, a_t, w_bd, b_bd)


# --------------------------------------------------------------------------
# Stage 3: fc — single-step matmul, whole bf16 weight resident in VMEM
# --------------------------------------------------------------------------
def _fc_kernel(feat_ref, w_ref, b_ref, o_ref):
    o_ref[...] = jnp.dot(feat_ref[...], w_ref[...],
                         preferred_element_type=jnp.float32) + b_ref[...]


def _fc(feat, w_t, b):
    bs, kdim = feat.shape
    n_out = w_t.shape[1]
    return pl.pallas_call(
        _fc_kernel,
        out_shape=jax.ShapeDtypeStruct((bs, n_out), jnp.float32),
        grid=(1,),
        in_specs=[pl.BlockSpec((bs, kdim), lambda i: (0, 0)),
                  pl.BlockSpec((kdim, n_out), lambda i: (0, 0)),
                  pl.BlockSpec((1, n_out), lambda i: (0, 0))],
        out_specs=pl.BlockSpec((bs, n_out), lambda i: (0, 0)),
        compiler_params=pltpu.CompilerParams(
            dimension_semantics=("arbitrary",)),
    )(feat, w_t, b)


# --------------------------------------------------------------------------
# One-time prep (hoisted out of the forward path): adjacency + weight repack
# --------------------------------------------------------------------------
def _build_norm_adj(edge_index, num_nodes):
    """Dense normalized adjacency A_hat[dst, src] (self loops, sym. norm)."""
    row, col = edge_index[0], edge_index[1]
    loop = jnp.arange(num_nodes, dtype=edge_index.dtype)
    row = jnp.concatenate([row, loop])
    col = jnp.concatenate([col, loop])
    deg = jnp.zeros((num_nodes,), jnp.float32).at[col].add(1.0)
    dinv = jnp.where(deg > 0, jax.lax.rsqrt(deg), 0.0)
    norm = dinv[row] * dinv[col]
    return jnp.zeros((num_nodes, num_nodes), jnp.float32).at[col, row].add(norm)


def prepare_gcn_encoder(params, edge_index, num_nodes, n_pad, bs):
    """Build kernel-layout weights + dense bf16 A_hat^T once per graph."""
    hidden = params["gcn1_w"].shape[1]
    p = {}

    def col(v):
        return v.reshape(-1, 1)

    # stage-1 packed weights (rows = outputs): see _MAT_SLICES / _VEC_SLICES
    wkv_t = jnp.concatenate([params["wk"], params["wv"]], axis=1).T     # (16, 8)
    p["wmat"] = jnp.concatenate(
        [params["wq"].T, wkv_t, params["wo"].T,
         params["ffn_w1"].T, params["ffn_w2"].T], axis=0)               # (48, 8)
    p["wvec"] = jnp.concatenate(
        [col(params["lin_w"]), col(params["lin_b"]), col(params["bq"]),
         jnp.concatenate([col(params["bk"]), col(params["bv"])], axis=0),
         col(params["bo"]), col(params["ln1_g"]), col(params["ln1_b"]),
         col(params["ffn_b1"]), col(params["ffn_b2"]),
         col(params["ln2_g"]), col(params["ln2_b"])], axis=0)           # (96, 1)

    # GCN: block-diagonal (per-batch) weights so one MXU call handles the batch
    def blockdiag(w_t):
        return jnp.kron(jnp.eye(bs, dtype=w_t.dtype), w_t)

    p["gcn1_w_bd"] = blockdiag(params["gcn1_w"].T)                      # (bs*h, bs*8)
    p["gcn1_b_bd"] = jnp.tile(col(params["gcn1_b"]), (bs, 1))
    p["gcn2_w_bd"] = blockdiag(params["gcn2_w"].T)                      # (bs*h, bs*h)
    p["gcn2_b_bd"] = jnp.tile(col(params["gcn2_b"]), (bs, 1))

    # fc: permute PyTorch x.view(bs, N*hidden) ordering (n*hidden + h) to the
    # transposed feature ordering (h*n_pad + n); padded node rows are zero.
    fcw = params["fc_w"].reshape(num_nodes, hidden, -1).transpose(1, 0, 2)
    fcw = jnp.pad(fcw, ((0, 0), (0, n_pad - num_nodes), (0, 0)))
    p["fc_w_t"] = fcw.reshape(hidden * n_pad, -1).astype(jnp.bfloat16)
    p["fc_b"] = params["fc_b"]

    # dense A_hat^T, zero-padded, bf16 (one-time per graph; hoisted)
    a_hat = _build_norm_adj(edge_index, num_nodes)
    a_t = jnp.pad(a_hat.T, ((0, n_pad - num_nodes), (0, n_pad - num_nodes)))
    p["a_t"] = a_t.astype(jnp.bfloat16)
    return p


# --------------------------------------------------------------------------
# Forward pass
# --------------------------------------------------------------------------
def gcn_encoder_forward(x, prep, *, num_nodes, n_pad, tile_q, tile_k, tile_gcn):
    bs = x.shape[0]
    hidden = prep["gcn2_w_bd"].shape[0] // bs

    # (bs, N, 1) -> (bs, 1, n_pad): drop the trailing singleton, nodes on lanes
    x2 = jnp.transpose(x, (0, 2, 1))
    x2 = jnp.pad(x2, ((0, 0), (0, 0), (0, n_pad - num_nodes)))

    t = _transformer(x2, prep["wmat"], prep["wvec"], num_nodes=num_nodes,
                     n_pad=n_pad, tile_q=tile_q, tile_k=tile_k)   # (bs,8,n_pad) bf16
    t2 = t.reshape(bs * D_MODEL, n_pad)                           # free reshape

    g1 = _gcn_layer(t2, prep["a_t"], prep["gcn1_w_bd"], prep["gcn1_b_bd"],
                    relu=True, tile_n=tile_gcn, out_dtype=jnp.bfloat16)
    g2 = _gcn_layer(g1, prep["a_t"], prep["gcn2_w_bd"], prep["gcn2_b_bd"],
                    relu=False, tile_n=tile_gcn, out_dtype=jnp.bfloat16)

    feat = g2.reshape(bs, hidden * n_pad)                         # free reshape
    return _fc(feat, prep["fc_w_t"], prep["fc_b"])


# --------------------------------------------------------------------------
# Pure-JAX reference (mirrors the PyTorch module) and parameter init
# --------------------------------------------------------------------------
def _reference_forward(x, edge_index, params):
    bs, num_nodes, _ = x.shape
    hidden = params["gcn1_w"].shape[1]

    def ln(v, g, b, eps=1e-5):
        mu = jnp.mean(v, axis=-1, keepdims=True)
        var = jnp.mean(jnp.square(v - mu), axis=-1, keepdims=True)
        return (v - mu) * jax.lax.rsqrt(var + eps) * g + b

    v2v = x @ params["lin_w"] + params["lin_b"]
    q = v2v @ params["wq"] + params["bq"]
    k = v2v @ params["wk"] + params["bk"]
    v = v2v @ params["wv"] + params["bv"]
    s = jnp.einsum("bnd,bmd->bnm", q, k) / math.sqrt(D_MODEL // N_HEAD)
    o = jnp.einsum("bnm,bmd->bnd", jax.nn.softmax(s, axis=-1), v)
    o = o @ params["wo"] + params["bo"]
    h = ln(o + v2v, params["ln1_g"], params["ln1_b"])
    f = jnp.maximum(h @ params["ffn_w1"] + params["ffn_b1"], 0.0)
    f = f @ params["ffn_w2"] + params["ffn_b2"]
    t = ln(f + h, params["ln2_g"], params["ln2_b"])

    a_hat = _build_norm_adj(edge_index, num_nodes)
    g1 = jnp.einsum("ds,bsc->bdc", a_hat, t @ params["gcn1_w"]) + params["gcn1_b"]
    g1 = jnp.maximum(g1, 0.0)
    g2 = jnp.einsum("ds,bsc->bdc", a_hat, g1 @ params["gcn2_w"]) + params["gcn2_b"]
    feat = g2.reshape(bs, num_nodes * hidden)
    return feat @ params["fc_w"] + params["fc_b"]


def init_params(key, in_channels, hidden_channels, num_nodes):
    assert in_channels == D_MODEL, "transformer outputs d_model=8 features"
    keys = iter(jax.random.split(key, 32))

    def lin(kin, kout):
        bound = 1.0 / math.sqrt(kin)
        w = jax.random.uniform(next(keys), (kin, kout), jnp.float32, -bound, bound)
        b = jax.random.uniform(next(keys), (1, kout), jnp.float32, -bound, bound)
        return w, b

    p = {}
    p["lin_w"], p["lin_b"] = lin(1, D_MODEL)
    p["wq"], p["bq"] = lin(D_MODEL, D_MODEL)
    p["wk"], p["bk"] = lin(D_MODEL, D_MODEL)
    p["wv"], p["bv"] = lin(D_MODEL, D_MODEL)
    p["wo"], p["bo"] = lin(D_MODEL, D_MODEL)
    p["ln1_g"] = jnp.ones((1, D_MODEL), jnp.float32)
    p["ln1_b"] = jnp.zeros((1, D_MODEL), jnp.float32)
    p["ffn_w1"], p["ffn_b1"] = lin(D_MODEL, FFN_HIDDEN)
    p["ffn_w2"], p["ffn_b2"] = lin(FFN_HIDDEN, D_MODEL)
    p["ln2_g"] = jnp.ones((1, D_MODEL), jnp.float32)
    p["ln2_b"] = jnp.zeros((1, D_MODEL), jnp.float32)
    p["gcn1_w"], _ = lin(in_channels, hidden_channels)
    p["gcn1_b"] = jnp.zeros((1, hidden_channels), jnp.float32)   # GCNConv bias = 0
    p["gcn2_w"], _ = lin(hidden_channels, hidden_channels)
    p["gcn2_b"] = jnp.zeros((1, hidden_channels), jnp.float32)
    p["fc_w"], p["fc_b"] = lin(num_nodes * hidden_channels, 32)
    return p


if __name__ == "__main__":
    BS = 2
    NUM_NODES = 256        # module hardcodes 5724; parametrized & small here
    IN_CHANNELS = 8        # must equal d_model of the transformer output
    HIDDEN = 16
    # test-scale tiles; at 5724 nodes use tile_q=256, tile_k=tile_gcn=512 (v6e/v7x)
    TILE_Q, TILE_K, TILE_GCN = 128, 256, 256

    key = jax.random.PRNGKey(0)
    pkey, xkey = jax.random.split(key)
    params = init_params(pkey, IN_CHANNELS, HIDDEN, NUM_NODES)
    x = jax.random.normal(xkey, (BS, NUM_NODES, 1), jnp.float32)

    # deterministic bidirectional ring graph
    src = jnp.arange(NUM_NODES, dtype=jnp.int32)
    dst = (src + 1) % NUM_NODES
    edge_index = jnp.stack([jnp.concatenate([src, dst]),
                            jnp.concatenate([dst, src])], axis=0)

    pad_unit = math.lcm(TILE_Q, TILE_K, TILE_GCN)
    n_pad = ((NUM_NODES + pad_unit - 1) // pad_unit) * pad_unit

    prep = prepare_gcn_encoder(params, edge_index, NUM_NODES, n_pad, BS)
    fwd = jax.jit(functools.partial(
        gcn_encoder_forward, num_nodes=NUM_NODES, n_pad=n_pad,
        tile_q=TILE_Q, tile_k=TILE_K, tile_gcn=TILE_GCN))

    out = fwd(x, prep)
    jax.block_until_ready(out)
    assert out.shape == (BS, 32) and out.dtype == jnp.float32
    assert bool(jnp.isfinite(out).all())

    ref = _reference_forward(x, edge_index, params)
    np.testing.assert_allclose(np.asarray(out), np.asarray(ref),
                               rtol=5e-2, atol=5e-2)
    print("KERNEL_OK")
</pallas_src>

<mosaic_0001>
module attributes {stable_mosaic.version = 11 : i64} {
  func.func @_gcn_kernel(%arg0: i32, %arg1: memref<16x256xbf16, #tpu.memory_space<vmem>>, %arg2: memref<256x256xbf16, #tpu.memory_space<vmem>>, %arg3: memref<32x16xf32, #tpu.memory_space<vmem>>, %arg4: memref<32x1xf32, #tpu.memory_space<vmem>>, %arg5: memref<32x256xbf16, #tpu.memory_space<vmem>>) attributes {dimension_semantics = [#tpu.dimension_semantics<parallel>], iteration_bounds = array<i64: 1>, scalar_prefetch = 0 : i64, scratch_operands = 0 : i64, tpu.core_type = #tpu.core_type<tc>, window_params = [{pipeline_mode = #tpu.pipeline_mode<synchronous>, transform_indices = @transform_0, window_bounds = array<i64: 16, 256>}, {transform_indices = @transform_1, window_bounds = array<i64: 256, 256>}, {pipeline_mode = #tpu.pipeline_mode<synchronous>, transform_indices = @transform_2, window_bounds = array<i64: 32, 16>}, {pipeline_mode = #tpu.pipeline_mode<synchronous>, transform_indices = @transform_3, window_bounds = array<i64: 32, 1>}, {transform_indices = @transform_4, window_bounds = array<i64: 32, 256>}]} {
    %c0 = arith.constant 0 : index
    %c0_0 = arith.constant 0 : index
    %0 = vector.load %arg1[%c0, %c0_0] : memref<16x256xbf16, #tpu.memory_space<vmem>>, vector<16x256xbf16>
    %c0_1 = arith.constant 0 : index
    %c0_2 = arith.constant 0 : index
    %1 = vector.load %arg2[%c0_1, %c0_2] : memref<256x256xbf16, #tpu.memory_space<vmem>>, vector<256x256xbf16>
    %cst = arith.constant dense<0.000000e+00> : vector<16x256xf32>
    %2 = tpu.matmul %0, %1, %cst {dimension_numbers = #tpu.dot_dimension_numbers<[1], [0], [0], [1], [0, 0, 1, 1], [], []>} : vector<16x256xbf16>, vector<256x256xbf16>, vector<16x256xf32> -> vector<16x256xf32>
    %c0_3 = arith.constant 0 : index
    %c0_4 = arith.constant 0 : index
    %3 = vector.load %arg3[%c0_3, %c0_4] : memref<32x16xf32, #tpu.memory_space<vmem>>, vector<32x16xf32>
    %cst_5 = arith.constant dense<0.000000e+00> : vector<32x256xf32>
    %4 = tpu.matmul %3, %2, %cst_5 {dimension_numbers = #tpu.dot_dimension_numbers<[1], [0], [0], [1], [0, 0, 1, 1], [], []>} : vector<32x16xf32>, vector<16x256xf32>, vector<32x256xf32> -> vector<32x256xf32>
    %c0_6 = arith.constant 0 : index
    %c0_7 = arith.constant 0 : index
    %5 = vector.load %arg4[%c0_6, %c0_7] : memref<32x1xf32, #tpu.memory_space<vmem>>, vector<32x1xf32>
    %6 = vector.broadcast %5 : vector<32x1xf32> to vector<32x256xf32>
    %7 = arith.addf %4, %6 : vector<32x256xf32>
    %cst_8 = arith.constant 0.000000e+00 : f32
    %8 = vector.broadcast %cst_8 : f32 to vector<32x256xf32>
    %9 = arith.maximumf %7, %8 : vector<32x256xf32>
    %10 = arith.truncf %9 : vector<32x256xf32> to vector<32x256xbf16>
    %c0_9 = arith.constant 0 : index
    %c0_10 = arith.constant 0 : index
    %11 = vector.load %arg5[%c0_9, %c0_10] : memref<32x256xbf16, #tpu.memory_space<vmem>>, vector<32x256xbf16>
    tpu.vector_store %arg5[%c0_9, %c0_10], %10 {strides = array<i32>} : memref<32x256xbf16, #tpu.memory_space<vmem>>, vector<32x256xbf16>,
    return
  }
  func.func @transform_0(%arg0: i32) -> (i32, i32) {
    %c0_i32 = arith.constant 0 : i32
    %c0_i32_0 = arith.constant 0 : i32
    %c0_i32_1 = arith.constant 0 : i32
    return %c0_i32, %c0_i32_0 : i32, i32
  }
  func.func @transform_1(%arg0: i32) -> (i32, i32) {
    %c0_i32 = arith.constant 0 : i32
    %c0_i32_0 = arith.constant 0 : i32
    return %c0_i32, %arg0 : i32, i32
  }
  func.func @transform_2(%arg0: i32) -> (i32, i32) {
    %c0_i32 = arith.constant 0 : i32
    %c0_i32_0 = arith.constant 0 : i32
    %c0_i32_1 = arith.constant 0 : i32
    return %c0_i32, %c0_i32_0 : i32, i32
  }
  func.func @transform_3(%arg0: i32) -> (i32, i32) {
    %c0_i32 = arith.constant 0 : i32
    %c0_i32_0 = arith.constant 0 : i32
    %c0_i32_1 = arith.constant 0 : i32
    return %c0_i32, %c0_i32_0 : i32, i32
  }
  func.func @transform_4(%arg0: i32) -> (i32, i32) {
    %c0_i32 = arith.constant 0 : i32
    %c0_i32_0 = arith.constant 0 : i32
    return %c0_i32, %arg0 : i32, i32
  }
}

module attributes {stable_mosaic.version = 11 : i64} {
  func.func @_gcn_kernel(%arg0: i32, %arg1: memref<32x256xbf16, #tpu.memory_space<vmem>>, %arg2: memref<256x256xbf16, #tpu.memory_space<vmem>>, %arg3: memref<32x32xf32, #tpu.memory_space<vmem>>, %arg4: memref<32x1xf32, #tpu.memory_space<vmem>>, %arg5: memref<32x256xbf16, #tpu.memory_space<vmem>>) attributes {dimension_semantics = [#tpu.dimension_semantics<parallel>], iteration_bounds = array<i64: 1>, scalar_prefetch = 0 : i64, scratch_operands = 0 : i64, tpu.core_type = #tpu.core_type<tc>, window_params = [{pipeline_mode = #tpu.pipeline_mode<synchronous>, transform_indices = @transform_0, window_bounds = array<i64: 32, 256>}, {transform_indices = @transform_1, window_bounds = array<i64: 256, 256>}, {pipeline_mode = #tpu.pipeline_mode<synchronous>, transform_indices = @transform_2, window_bounds = array<i64: 32, 32>}, {pipeline_mode = #tpu.pipeline_mode<synchronous>, transform_indices = @transform_3, window_bounds = array<i64: 32, 1>}, {transform_indices = @transform_4, window_bounds = array<i64: 32, 256>}]} {
    %c0 = arith.constant 0 : index
    %c0_0 = arith.constant 0 : index
    %0 = vector.load %arg1[%c0, %c0_0] : memref<32x256xbf16, #tpu.memory_space<vmem>>, vector<32x256xbf16>
    %c0_1 = arith.constant 0 : index
    %c0_2 = arith.constant 0 : index
    %1 = vector.load %arg2[%c0_1, %c0_2] : memref<256x256xbf16, #tpu.memory_space<vmem>>, vector<256x256xbf16>
    %cst = arith.constant dense<0.000000e+00> : vector<32x256xf32>
    %2 = tpu.matmul %0, %1, %cst {dimension_numbers = #tpu.dot_dimension_numbers<[1], [0], [0], [1], [0, 0, 1, 1], [], []>} : vector<32x256xbf16>, vector<256x256xbf16>, vector<32x256xf32> -> vector<32x256xf32>
    %c0_3 = arith.constant 0 : index
    %c0_4 = arith.constant 0 : index
    %3 = vector.load %arg3[%c0_3, %c0_4] : memref<32x32xf32, #tpu.memory_space<vmem>>, vector<32x32xf32>
    %cst_5 = arith.constant dense<0.000000e+00> : vector<32x256xf32>
    %4 = tpu.matmul %3, %2, %cst_5 {dimension_numbers = #tpu.dot_dimension_numbers<[1], [0], [0], [1], [0, 0, 1, 1], [], []>} : vector<32x32xf32>, vector<32x256xf32>, vector<32x256xf32> -> vector<32x256xf32>
    %c0_6 = arith.constant 0 : index
    %c0_7 = arith.constant 0 : index
    %5 = vector.load %arg4[%c0_6, %c0_7] : memref<32x1xf32, #tpu.memory_space<vmem>>, vector<32x1xf32>
    %6 = vector.broadcast %5 : vector<32x1xf32> to vector<32x256xf32>
    %7 = arith.addf %4, %6 : vector<32x256xf32>
    %8 = arith.truncf %7 : vector<32x256xf32> to vector<32x256xbf16>
    %c0_8 = arith.constant 0 : index
    %c0_9 = arith.constant 0 : index
    %9 = vector.load %arg5[%c0_8, %c0_9] : memref<32x256xbf16, #tpu.memory_space<vmem>>, vector<32x256xbf16>
    tpu.vector_store %arg5[%c0_8, %c0_9], %8 {strides = array<i32>} : memref<32x256xbf16, #tpu.memory_space<vmem>>, vector<32x256xbf16>,
    return
  }
  func.func @transform_0(%arg0: i32) -> (i32, i32) {
    %c0_i32 = arith.constant 0 : i32
    %c0_i32_0 = arith.constant 0 : i32
    %c0_i32_1 = arith.constant 0 : i32
    return %c0_i32, %c0_i32_0 : i32, i32
  }
  func.func @transform_1(%arg0: i32) -> (i32, i32) {
    %c0_i32 = arith.constant 0 : i32
    %c0_i32_0 = arith.constant 0 : i32
    return %c0_i32, %arg0 : i32, i32
  }
  func.func @transform_2(%arg0: i32) -> (i32, i32) {
    %c0_i32 = arith.constant 0 : i32
    %c0_i32_0 = arith.constant 0 : i32
    %c0_i32_1 = arith.constant 0 : i32
    return %c0_i32, %c0_i32_0 : i32, i32
  }
  func.func @transform_3(%arg0: i32) -> (i32, i32) {
    %c0_i32 = arith.constant 0 : i32
    %c0_i32_0 = arith.constant 0 : i32
    %c0_i32_1 = arith.constant 0 : i32
    return %c0_i32, %c0_i32_0 : i32, i32
  }
  func.func @transform_4(%arg0: i32) -> (i32, i32) {
    %c0_i32 = arith.constant 0 : i32
    %c0_i32_0 = arith.constant 0 : i32
    return %c0_i32, %arg0 : i32, i32
  }
}

module attributes {stable_mosaic.version = 11 : i64} {
  func.func @_attn_kernel(%arg0: i32, %arg1: i32, %arg2: i32, %arg3: memref<1x1x128xf32, #tpu.memory_space<vmem>>, %arg4: memref<1x1x256xf32, #tpu.memory_space<vmem>>, %arg5: memref<48x8xf32, #tpu.memory_space<vmem>>, %arg6: memref<96x1xf32, #tpu.memory_space<vmem>>, %arg7: memref<1x8x128xbf16, #tpu.memory_space<vmem>>, %arg8: memref<8x128xf32, #tpu.memory_space<vmem>>, %arg9: memref<8x128xf32, #tpu.memory_space<vmem>>, %arg10: memref<1x128xf32, #tpu.memory_space<vmem>>, %arg11: memref<1x128xf32, #tpu.memory_space<vmem>>, %arg12: memref<8x128xf32, #tpu.memory_space<vmem>>) attributes {dimension_semantics = [#tpu.dimension_semantics<parallel>, #tpu.dimension_semantics<parallel>, #tpu.dimension_semantics<arbitrary>], iteration_bounds = array<i64: 2, 2, 1>, scalar_prefetch = 0 : i64, scratch_operands = 5 : i64, tpu.core_type = #tpu.core_type<tc>, window_params = [{transform_indices = @transform_0, window_bounds = array<i64: 1, 1, 128>}, {transform_indices = @transform_1, window_bounds = array<i64: 1, 1, 256>}, {pipeline_mode = #tpu.pipeline_mode<synchronous>, transform_indices = @transform_2, window_bounds = array<i64: 48, 8>}, {pipeline_mode = #tpu.pipeline_mode<synchronous>, transform_indices = @transform_3, window_bounds = array<i64: 96, 1>}, {transform_indices = @transform_4, window_bounds = array<i64: 1, 8, 128>}]} {
    %c0 = arith.constant 0 : index
    %c0_0 = arith.constant 0 : index
    %0 = vector.load %arg5[%c0, %c0_0] : memref<48x8xf32, #tpu.memory_space<vmem>>, vector<48x8xf32>
    %c0_1 = arith.constant 0 : index
    %c0_2 = arith.constant 0 : index
    %1 = vector.load %arg6[%c0_1, %c0_2] : memref<96x1xf32, #tpu.memory_space<vmem>>, vector<96x1xf32>
    %2 = vector.extract_strided_slice %1 {offsets = [0, 0], sizes = [8, 1], strides = [1, 1]} : vector<96x1xf32> to vector<8x1xf32>
    %3 = vector.extract_strided_slice %1 {offsets = [8, 0], sizes = [8, 1], strides = [1, 1]} : vector<96x1xf32> to vector<8x1xf32>
    %c0_i32 = arith.constant 0 : i32
    %4 = arith.cmpi eq, %arg2, %c0_i32 : i32
    %5 = arith.extui %4 : i1 to i32
    %c0_i32_3 = arith.constant 0 : i32
    %6 = arith.cmpi ne, %5, %c0_i32_3 : i32
    scf.if %6 {
      %cst_30 = arith.constant -1.000000e+30 : f32
      %62 = vector.broadcast %cst_30 : f32 to vector<1x128xf32>
      %c0_31 = arith.constant 0 : index
      %c0_32 = arith.constant 0 : index
      %63 = vector.load %arg10[%c0_31, %c0_32] : memref<1x128xf32, #tpu.memory_space<vmem>>, vector<1x128xf32>
      tpu.vector_store %arg10[%c0_31, %c0_32], %62 {strides = array<i32>} : memref<1x128xf32, #tpu.memory_space<vmem>>, vector<1x128xf32>,
      %cst_33 = arith.constant 0.000000e+00 : f32
      %64 = vector.broadcast %cst_33 : f32 to vector<1x128xf32>
      %c0_34 = arith.constant 0 : index
      %c0_35 = arith.constant 0 : index
      %65 = vector.load %arg11[%c0_34, %c0_35] : memref<1x128xf32, #tpu.memory_space<vmem>>, vector<1x128xf32>
      tpu.vector_store %arg11[%c0_34, %c0_35], %64 {strides = array<i32>} : memref<1x128xf32, #tpu.memory_space<vmem>>, vector<1x128xf32>,
      %cst_36 = arith.constant 0.000000e+00 : f32
      %66 = vector.broadcast %cst_36 : f32 to vector<8x128xf32>
      %c0_37 = arith.constant 0 : index
      %c0_38 = arith.constant 0 : index
      %67 = vector.load %arg12[%c0_37, %c0_38] : memref<8x128xf32, #tpu.memory_space<vmem>>, vector<8x128xf32>
      tpu.vector_store %arg12[%c0_37, %c0_38], %66 {strides = array<i32>} : memref<8x128xf32, #tpu.memory_space<vmem>>, vector<8x128xf32>,
      %c0_39 = arith.constant 0 : index
      %c0_40 = arith.constant 0 : index
      %c0_41 = arith.constant 0 : index
      %68 = vector.load %arg3[%c0_39, %c0_40, %c0_41] : memref<1x1x128xf32, #tpu.memory_space<vmem>>, vector<1x1x128xf32>
      %69 = vector.shape_cast %68 : vector<1x1x128xf32> to vector<1x128xf32>
      %70 = vector.broadcast %2 : vector<8x1xf32> to vector<8x128xf32>
      %71 = vector.broadcast %69 : vector<1x128xf32> to vector<8x128xf32>
      %72 = arith.mulf %70, %71 : vector<8x128xf32>
      %73 = vector.broadcast %3 : vector<8x1xf32> to vector<8x128xf32>
      %74 = arith.addf %72, %73 : vector<8x128xf32>
      %c0_42 = arith.constant 0 : index
      %c0_43 = arith.constant 0 : index
      %75 = vector.load %arg9[%c0_42, %c0_43] : memref<8x128xf32, #tpu.memory_space<vmem>>, vector<8x128xf32>
      tpu.vector_store %arg9[%c0_42, %c0_43], %74 {strides = array<i32>} : memref<8x128xf32, #tpu.memory_space<vmem>>, vector<8x128xf32>,
      %76 = vector.extract_strided_slice %0 {offsets = [0, 0], sizes = [8, 8], strides = [1, 1]} : vector<48x8xf32> to vector<8x8xf32>
      %cst_44 = arith.constant dense<0.000000e+00> : vector<8x128xf32>
      %77 = tpu.matmul %76, %74, %cst_44 {dimension_numbers = #tpu.dot_dimension_numbers<[1], [0], [0], [1], [0, 0, 1, 1], [], []>} : vector<8x8xf32>, vector<8x128xf32>, vector<8x128xf32> -> vector<8x128xf32>
      %78 = vector.extract_strided_slice %1 {offsets = [16, 0], sizes = [8, 1], strides = [1, 1]} : vector<96x1xf32> to vector<8x1xf32>
      %79 = vector.broadcast %78 : vector<8x1xf32> to vector<8x128xf32>
      %80 = arith.addf %77, %79 : vector<8x128xf32>
      %c0_45 = arith.constant 0 : index
      %c0_46 = arith.constant 0 : index
      %81 = vector.load %arg8[%c0_45, %c0_46] : memref<8x128xf32, #tpu.memory_space<vmem>>, vector<8x128xf32>
      tpu.vector_store %arg8[%c0_45, %c0_46], %80 {strides = array<i32>} : memref<8x128xf32, #tpu.memory_space<vmem>>, vector<8x128xf32>,
    } else {
    }
    %c0_4 = arith.constant 0 : index
    %c0_5 = arith.constant 0 : index
    %c0_6 = arith.constant 0 : index
    %7 = vector.load %arg4[%c0_4, %c0_5, %c0_6] : memref<1x1x256xf32, #tpu.memory_space<vmem>>, vector<1x1x256xf32>
    %8 = vector.shape_cast %7 : vector<1x1x256xf32> to vector<1x256xf32>
    %9 = vector.broadcast %2 : vector<8x1xf32> to vector<8x256xf32>
    %10 = vector.broadcast %8 : vector<1x256xf32> to vector<8x256xf32>
    %11 = arith.mulf %9, %10 : vector<8x256xf32>
    %12 = vector.broadcast %3 : vector<8x1xf32> to vector<8x256xf32>
    %13 = arith.addf %11, %12 : vector<8x256xf32>
    %14 = vector.extract_strided_slice %0 {offsets = [8, 0], sizes = [16, 8], strides = [1, 1]} : vector<48x8xf32> to vector<16x8xf32>
    %cst = arith.constant dense<0.000000e+00> : vector<16x256xf32>
    %15 = tpu.matmul %14, %13, %cst {dimension_numbers = #tpu.dot_dimension_numbers<[1], [0], [0], [1], [0, 0, 1, 1], [], []>} : vector<16x8xf32>, vector<8x256xf32>, vector<16x256xf32> -> vector<16x256xf32>
    %16 = vector.extract_strided_slice %1 {offsets = [24, 0], sizes = [16, 1], strides = [1, 1]} : vector<96x1xf32> to vector<16x1xf32>
    %17 = vector.broadcast %16 : vector<16x1xf32> to vector<16x256xf32>
    %18 = arith.addf %15, %17 : vector<16x256xf32>
    %19 = vector.extract_strided_slice %18 {offsets = [0, 0], sizes = [8, 256], strides = [1, 1]} : vector<16x256xf32> to vector<8x256xf32>
    %20 = vector.extract_strided_slice %18 {offsets = [8, 0], sizes = [8, 256], strides = [1, 1]} : vector<16x256xf32> to vector<8x256xf32>
    %c0_7 = arith.constant 0 : index
    %c0_8 = arith.constant 0 : index
    %21 = vector.load %arg8[%c0_7, %c0_8] : memref<8x128xf32, #tpu.memory_space<vmem>>, vector<8x128xf32>
    %22 = arith.truncf %19 : vector<8x256xf32> to vector<8x256xbf16>
    %23 = arith.truncf %21 : vector<8x128xf32> to vector<8x128xbf16>
    %cst_9 = arith.constant dense<0.000000e+00> : vector<256x128xf32>
    %24 = tpu.matmul %22, %23, %cst_9 {dimension_numbers = #tpu.dot_dimension_numbers<[0], [0], [1], [1], [0, 1, 1, 1], [], []>} : vector<8x256xbf16>, vector<8x128xbf16>, vector<256x128xf32> -> vector<256x128xf32>
    %cst_10 = arith.constant 0.353553385 : f32
    %25 = vector.broadcast %cst_10 : f32 to vector<256x128xf32>
    %26 = arith.mulf %24, %25 : vector<256x128xf32>
    %c256_i32 = arith.constant 256 : i32
    %27 = arith.muli %arg2, %c256_i32 : i32
    %28 = tpu.iota {dimensions = array<i32: 0>} : vector<256x128xi32>
    %29 = vector.broadcast %27 : i32 to vector<256x128xi32>
    %30 = arith.addi %29, %28 : vector<256x128xi32>
    %c256_i32_11 = arith.constant 256 : i32
    %31 = vector.broadcast %c256_i32_11 : i32 to vector<256x128xi32>
    %32 = arith.cmpi slt, %30, %31 : vector<256x128xi32>
    %cst_12 = arith.constant -1.000000e+30 : f32
    %33 = vector.broadcast %cst_12 : f32 to vector<256x128xf32>
    %34 = arith.select %32, %26, %33 : vector<256x128xi1>, vector<256x128xf32>
    %c0_13 = arith.constant 0 : index
    %c0_14 = arith.constant 0 : index
    %35 = vector.load %arg10[%c0_13, %c0_14] : memref<1x128xf32, #tpu.memory_space<vmem>>, vector<1x128xf32>
    %cst_15 = arith.constant dense<0xFF800000> : vector<128xf32>
    %36 = vector.multi_reduction <maximumf>, %34, %cst_15 [0] : vector<256x128xf32> to vector<128xf32>
    %37 = vector.shape_cast %36 : vector<128xf32> to vector<1x128xf32>
    %38 = arith.maximumf %35, %37 : vector<1x128xf32>
    %39 = arith.subf %35, %38 : vector<1x128xf32>
    %40 = math.exp %39 : vector<1x128xf32>
    %41 = vector.broadcast %38 : vector<1x128xf32> to vector<256x128xf32>
    %42 = arith.subf %34, %41 : vector<256x128xf32>
    %43 = math.exp %42 : vector<256x128xf32>
    %c0_16 = arith.constant 0 : index
    %c0_17 = arith.constant 0 : index
    %44 = vector.load %arg11[%c0_16, %c0_17] : memref<1x128xf32, #tpu.memory_space<vmem>>, vector<1x128xf32>
    %45 = arith.mulf %40, %44 : vector<1x128xf32>
    %cst_18 = arith.constant dense<0.000000e+00> : vector<128xf32>
    %46 = vector.multi_reduction <add>, %43, %cst_18 [0] : vector<256x128xf32> to vector<128xf32>
    %47 = vector.shape_cast %46 : vector<128xf32> to vector<1x128xf32>
    %48 = arith.addf %45, %47 : vector<1x128xf32>
    %c0_19 = arith.constant 0 : index
    %c0_20 = arith.constant 0 : index
    %49 = vector.load %arg11[%c0_19, %c0_20] : memref<1x128xf32, #tpu.memory_space<vmem>>, vector<1x128xf32>
    tpu.vector_store %arg11[%c0_19, %c0_20], %48 {strides = array<i32>} : memref<1x128xf32, #tpu.memory_space<vmem>>, vector<1x128xf32>,
    %c0_21 = arith.constant 0 : index
    %c0_22 = arith.constant 0 : index
    %50 = vector.load %arg12[%c0_21, %c0_22] : memref<8x128xf32, #tpu.memory_space<vmem>>, vector<8x128xf32>
    %51 = vector.broadcast %40 : vector<1x128xf32> to vector<8x128xf32>
    %52 = arith.mulf %51, %50 : vector<8x128xf32>
    %53 = arith.truncf %20 : vector<8x256xf32> to vector<8x256xbf16>
    %54 = arith.truncf %43 : vector<256x128xf32> to vector<256x128xbf16>
    %cst_23 = arith.constant dense<0.000000e+00> : vector<8x128xf32>
    %55 = tpu.matmul %53, %54, %cst_23 {dimension_numbers = #tpu.dot_dimension_numbers<[1], [0], [0], [1], [0, 0, 1, 1], [], []>} : vector<8x256xbf16>, vector<256x128xbf16>, vector<8x128xf32> -> vector<8x128xf32>
    %56 = arith.addf %52, %55 : vector<8x128xf32>
    %c0_24 = arith.constant 0 : index
    %c0_25 = arith.constant 0 : index
    %57 = vector.load %arg12[%c0_24, %c0_25] : memref<8x128xf32, #tpu.memory_space<vmem>>, vector<8x128xf32>
    tpu.vector_store %arg12[%c0_24, %c0_25], %56 {strides = array<i32>} : memref<8x128xf32, #tpu.memory_space<vmem>>, vector<8x128xf32>,
    %c0_26 = arith.constant 0 : index
    %c0_27 = arith.constant 0 : index
    %58 = vector.load %arg10[%c0_26, %c0_27] : memref<1x128xf32, #tpu.memory_space<vmem>>, vector<1x128xf32>
    tpu.vector_store %arg10[%c0_26, %c0_27], %38 {strides = array<i32>} : memref<1x128xf32, #tpu.memory_space<vmem>>, vector<1x128xf32>,
    %c0_i32_28 = arith.constant 0 : i32
    %59 = arith.cmpi eq, %arg2, %c0_i32_28 : i32
    %60 = arith.extui %59 : i1 to i32
    %c0_i32_29 = arith.constant 0 : i32
    %61 = arith.cmpi ne, %60, %c0_i32_29 : i32
    scf.if %61 {
      %c0_30 = arith.constant 0 : index
      %c0_31 = arith.constant 0 : index
      %62 = vector.load %arg12[%c0_30, %c0_31] : memref<8x128xf32, #tpu.memory_space<vmem>>, vector<8x128xf32>
      %c0_32 = arith.constant 0 : index
      %c0_33 = arith.constant 0 : index
      %63 = vector.load %arg11[%c0_32, %c0_33] : memref<1x128xf32, #tpu.memory_space<vmem>>, vector<1x128xf32>
      %64 = vector.broadcast %63 : vector<1x128xf32> to vector<8x128xf32>
      %65 = arith.divf %62, %64 : vector<8x128xf32>
      %66 = vector.extract_strided_slice %0 {offsets = [24, 0], sizes = [8, 8], strides = [1, 1]} : vector<48x8xf32> to vector<8x8xf32>
      %cst_34 = arith.constant dense<0.000000e+00> : vector<8x128xf32>
      %67 = tpu.matmul %66, %65, %cst_34 {dimension_numbers = #tpu.dot_dimension_numbers<[1], [0], [0], [1], [0, 0, 1, 1], [], []>} : vector<8x8xf32>, vector<8x128xf32>, vector<8x128xf32> -> vector<8x128xf32>
      %68 = vector.extract_strided_slice %1 {offsets = [40, 0], sizes = [8, 1], strides = [1, 1]} : vector<96x1xf32> to vector<8x1xf32>
      %69 = vector.broadcast %68 : vector<8x1xf32> to vector<8x128xf32>
      %70 = arith.addf %67, %69 : vector<8x128xf32>
      %c0_35 = arith.constant 0 : index
      %c0_36 = arith.constant 0 : index
      %71 = vector.load %arg9[%c0_35, %c0_36] : memref<8x128xf32, #tpu.memory_space<vmem>>, vector<8x128xf32>
      %72 = arith.addf %70, %71 : vector<8x128xf32>
      %73 = vector.extract_strided_slice %1 {offsets = [48, 0], sizes = [8, 1], strides = [1, 1]} : vector<96x1xf32> to vector<8x1xf32>
      %74 = vector.extract_strided_slice %1 {offsets = [56, 0], sizes = [8, 1], strides = [1, 1]} : vector<96x1xf32> to vector<8x1xf32>
      %cst_37 = arith.constant dense<0.000000e+00> : vector<128xf32>
      %75 = vector.multi_reduction <add>, %72, %cst_37 [0] : vector<8x128xf32> to vector<128xf32>
      %76 = vector.shape_cast %75 : vector<128xf32> to vector<1x128xf32>
      %cst_38 = arith.constant 8.000000e+00 : f32
      %77 = vector.broadcast %cst_38 : f32 to vector<1x128xf32>
      %78 = arith.divf %76, %77 : vector<1x128xf32>
      %79 = vector.broadcast %78 : vector<1x128xf32> to vector<8x128xf32>
      %80 = arith.subf %72, %79 : vector<8x128xf32>
      %81 = arith.mulf %80, %80 : vector<8x128xf32>
      %cst_39 = arith.constant dense<0.000000e+00> : vector<128xf32>
      %82 = vector.multi_reduction <add>, %81, %cst_39 [0] : vector<8x128xf32> to vector<128xf32>
      %83 = vector.shape_cast %82 : vector<128xf32> to vector<1x128xf32>
      %cst_40 = arith.constant 8.000000e+00 : f32
      %84 = vector.broadcast %cst_40 : f32 to vector<1x128xf32>
      %85 = arith.divf %83, %84 : vector<1x128xf32>
      %86 = vector.broadcast %78 : vector<1x128xf32> to vector<8x128xf32>
      %87 = arith.subf %72, %86 : vector<8x128xf32>
      %cst_41 = arith.constant 9.99999974E-6 : f32
      %88 = vector.broadcast %cst_41 : f32 to vector<1x128xf32>
      %89 = arith.addf %85, %88 : vector<1x128xf32>
      %90 = math.rsqrt %89 : vector<1x128xf32>
      %91 = vector.broadcast %90 : vector<1x128xf32> to vector<8x128xf32>
      %92 = arith.mulf %87, %91 : vector<8x128xf32>
      %93 = vector.broadcast %73 : vector<8x1xf32> to vector<8x128xf32>
      %94 = arith.mulf %92, %93 : vector<8x128xf32>
      %95 = vector.broadcast %74 : vector<8x1xf32> to vector<8x128xf32>
      %96 = arith.addf %94, %95 : vector<8x128xf32>
      %97 = vector.extract_strided_slice %0 {offsets = [32, 0], sizes = [8, 8], strides = [1, 1]} : vector<48x8xf32> to vector<8x8xf32>
      %cst_42 = arith.constant dense<0.000000e+00> : vector<8x128xf32>
      %98 = tpu.matmul %97, %96, %cst_42 {dimension_numbers = #tpu.dot_dimension_numbers<[1], [0], [0], [1], [0, 0, 1, 1], [], []>} : vector<8x8xf32>, vector<8x128xf32>, vector<8x128xf32> -> vector<8x128xf32>
      %99 = vector.extract_strided_slice %1 {offsets = [64, 0], sizes = [8, 1], strides = [1, 1]} : vector<96x1xf32> to vector<8x1xf32>
      %100 = vector.broadcast %99 : vector<8x1xf32> to vector<8x128xf32>
      %101 = arith.addf %98, %100 : vector<8x128xf32>
      %cst_43 = arith.constant 0.000000e+00 : f32
      %102 = vector.broadcast %cst_43 : f32 to vector<8x128xf32>
      %103 = arith.maximumf %101, %102 : vector<8x128xf32>
      %104 = vector.extract_strided_slice %0 {offsets = [40, 0], sizes = [8, 8], strides = [1, 1]} : vector<48x8xf32> to vector<8x8xf32>
      %cst_44 = arith.constant dense<0.000000e+00> : vector<8x128xf32>
      %105 = tpu.matmul %104, %103, %cst_44 {dimension_numbers = #tpu.dot_dimension_numbers<[1], [0], [0], [1], [0, 0, 1, 1], [], []>} : vector<8x8xf32>, vector<8x128xf32>, vector<8x128xf32> -> vector<8x128xf32>
      %106 = vector.extract_strided_slice %1 {offsets = [72, 0], sizes = [8, 1], strides = [1, 1]} : vector<96x1xf32> to vector<8x1xf32>
      %107 = vector.broadcast %106 : vector<8x1xf32> to vector<8x128xf32>
      %108 = arith.addf %105, %107 : vector<8x128xf32>
      %109 = arith.addf %108, %96 : vector<8x128xf32>
      %110 = vector.extract_strided_slice %1 {offsets = [80, 0], sizes = [8, 1], strides = [1, 1]} : vector<96x1xf32> to vector<8x1xf32>
      %111 = vector.extract_strided_slice %1 {offsets = [88, 0], sizes = [8, 1], strides = [1, 1]} : vector<96x1xf32> to vector<8x1xf32>
      %cst_45 = arith.constant dense<0.000000e+00> : vector<128xf32>
      %112 = vector.multi_reduction <add>, %109, %cst_45 [0] : vector<8x128xf32> to vector<128xf32>
      %113 = vector.shape_cast %112 : vector<128xf32> to vector<1x128xf32>
      %cst_46 = arith.constant 8.000000e+00 : f32
      %114 = vector.broadcast %cst_46 : f32 to vector<1x128xf32>
      %115 = arith.divf %113, %114 : vector<1x128xf32>
      %116 = vector.broadcast %115 : vector<1x128xf32> to vector<8x128xf32>
      %117 = arith.subf %109, %116 : vector<8x128xf32>
      %118 = arith.mulf %117, %117 : vector<8x128xf32>
      %cst_47 = arith.constant dense<0.000000e+00> : vector<128xf32>
      %119 = vector.multi_reduction <add>, %118, %cst_47 [0] : vector<8x128xf32> to vector<128xf32>
      %120 = vector.shape_cast %119 : vector<128xf32> to vector<1x128xf32>
      %cst_48 = arith.constant 8.000000e+00 : f32
      %121 = vector.broadcast %cst_48 : f32 to vector<1x128xf32>
      %122 = arith.divf %120, %121 : vector<1x128xf32>
      %123 = vector.broadcast %115 : vector<1x128xf32> to vector<8x128xf32>
      %124 = arith.subf %109, %123 : vector<8x128xf32>
      %cst_49 = arith.constant 9.99999974E-6 : f32
      %125 = vector.broadcast %cst_49 : f32 to vector<1x128xf32>
      %126 = arith.addf %122, %125 : vector<1x128xf32>
      %127 = math.rsqrt %126 : vector<1x128xf32>
      %128 = vector.broadcast %127 : vector<1x128xf32> to vector<8x128xf32>
      %129 = arith.mulf %124, %128 : vector<8x128xf32>
      %130 = vector.broadcast %110 : vector<8x1xf32> to vector<8x128xf32>
      %131 = arith.mulf %129, %130 : vector<8x128xf32>
      %132 = vector.broadcast %111 : vector<8x1xf32> to vector<8x128xf32>
      %133 = arith.addf %131, %132 : vector<8x128xf32>
      %134 = arith.truncf %133 : vector<8x128xf32> to vector<8x128xbf16>
      %c0_50 = arith.constant 0 : index
      %c0_51 = arith.constant 0 : index
      %c0_52 = arith.constant 0 : index
      %135 = vector.load %arg7[%c0_50, %c0_51, %c0_52] : memref<1x8x128xbf16, #tpu.memory_space<vmem>>, vector<1x8x128xbf16>
      %136 = vector.shape_cast %135 : vector<1x8x128xbf16> to vector<8x128xbf16>
      %137 = vector.shape_cast %134 : vector<8x128xbf16> to vector<1x8x128xbf16>
      tpu.vector_store %arg7[%c0_50, %c0_51, %c0_52], %137 {strides = array<i32>} : memref<1x8x128xbf16, #tpu.memory_space<vmem>>, vector<1x8x128xbf16>,
    } else {
    }
    return
  }
  func.func @transform_0(%arg0: i32, %arg1: i32, %arg2: i32) -> (i32, i32, i32) {
    %c0_i32 = arith.constant 0 : i32
    %c0_i32_0 = arith.constant 0 : i32
    return %arg0, %c0_i32, %arg1 : i32, i32, i32
  }
  func.func @transform_1(%arg0: i32, %arg1: i32, %arg2: i32) -> (i32, i32, i32) {
    %c0_i32 = arith.constant 0 : i32
    %c0_i32_0 = arith.constant 0 : i32
    return %arg0, %c0_i32, %arg2 : i32, i32, i32
  }
  func.func @transform_2(%arg0: i32, %arg1: i32, %arg2: i32) -> (i32, i32) {
    %c0_i32 = arith.constant 0 : i32
    %c0_i32_0 = arith.constant 0 : i32
    %c0_i32_1 = arith.constant 0 : i32
    return %c0_i32, %c0_i32_0 : i32, i32
  }
  func.func @transform_3(%arg0: i32, %arg1: i32, %arg2: i32) -> (i32, i32) {
    %c0_i32 = arith.constant 0 : i32
    %c0_i32_0 = arith.constant 0 : i32
    %c0_i32_1 = arith.constant 0 : i32
    return %c0_i32, %c0_i32_0 : i32, i32
  }
  func.func @transform_4(%arg0: i32, %arg1: i32, %arg2: i32) -> (i32, i32, i32) {
    %c0_i32 = arith.constant 0 : i32
    %c0_i32_0 = arith.constant 0 : i32
    return %arg0, %c0_i32, %arg1 : i32, i32, i32
  }
}

module attributes {stable_mosaic.version = 11 : i64} {
  func.func @_fc_kernel(%arg0: i32, %arg1: memref<2x4096xbf16, #tpu.memory_space<vmem>>, %arg2: memref<4096x32xbf16, #tpu.memory_space<vmem>>, %arg3: memref<1x32xf32, #tpu.memory_space<vmem>>, %arg4: memref<2x32xf32, #tpu.memory_space<vmem>>) attributes {dimension_semantics = [#tpu.dimension_semantics<arbitrary>], iteration_bounds = array<i64: 1>, scalar_prefetch = 0 : i64, scratch_operands = 0 : i64, tpu.core_type = #tpu.core_type<tc>, window_params = [{pipeline_mode = #tpu.pipeline_mode<synchronous>, transform_indices = @transform_0, window_bounds = array<i64: 2, 4096>}, {pipeline_mode = #tpu.pipeline_mode<synchronous>, transform_indices = @transform_1, window_bounds = array<i64: 4096, 32>}, {pipeline_mode = #tpu.pipeline_mode<synchronous>, transform_indices = @transform_2, window_bounds = array<i64: 1, 32>}, {pipeline_mode = #tpu.pipeline_mode<synchronous>, transform_indices = @transform_3, window_bounds = array<i64: 2, 32>}]} {
    %c0 = arith.constant 0 : index
    %c0_0 = arith.constant 0 : index
    %0 = vector.load %arg1[%c0, %c0_0] : memref<2x4096xbf16, #tpu.memory_space<vmem>>, vector<2x4096xbf16>
    %c0_1 = arith.constant 0 : index
    %c0_2 = arith.constant 0 : index
    %1 = vector.load %arg2[%c0_1, %c0_2] : memref<4096x32xbf16, #tpu.memory_space<vmem>>, vector<4096x32xbf16>
    %cst = arith.constant dense<0.000000e+00> : vector<2x32xf32>
    %2 = tpu.matmul %0, %1, %cst {dimension_numbers = #tpu.dot_dimension_numbers<[1], [0], [0], [1], [0, 0, 1, 1], [], []>} : vector<2x4096xbf16>, vector<4096x32xbf16>, vector<2x32xf32> -> vector<2x32xf32>
    %c0_3 = arith.constant 0 : index
    %c0_4 = arith.constant 0 : index
    %3 = vector.load %arg3[%c0_3, %c0_4] : memref<1x32xf32, #tpu.memory_space<vmem>>, vector<1x32xf32>
    %4 = vector.broadcast %3 : vector<1x32xf32> to vector<2x32xf32>
    %5 = arith.addf %2, %4 : vector<2x32xf32>
    %c0_5 = arith.constant 0 : index
    %c0_6 = arith.constant 0 : index
    %6 = vector.load %arg4[%c0_5, %c0_6] : memref<2x32xf32, #tpu.memory_space<vmem>>, vector<2x32xf32>
    tpu.vector_store %arg4[%c0_5, %c0_6], %5 {strides = array<i32>} : memref<2x32xf32, #tpu.memory_space<vmem>>, vector<2x32xf32>,
    return
  }
  func.func @transform_0(%arg0: i32) -> (i32, i32) {
    %c0_i32 = arith.constant 0 : i32
    %c0_i32_0 = arith.constant 0 : i32
    %c0_i32_1 = arith.constant 0 : i32
    return %c0_i32, %c0_i32_0 : i32, i32
  }
  func.func @transform_1(%arg0: i32) -> (i32, i32) {
    %c0_i32 = arith.constant 0 : i32
    %c0_i32_0 = arith.constant 0 : i32
    %c0_i32_1 = arith.constant 0 : i32
    return %c0_i32, %c0_i32_0 : i32, i32
  }
  func.func @transform_2(%arg0: i32) -> (i32, i32) {
    %c0_i32 = arith.constant 0 : i32
    %c0_i32_0 = arith.constant 0 : i32
    %c0_i32_1 = arith.constant 0 : i32
    return %c0_i32, %c0_i32_0 : i32, i32
  }
  func.func @transform_3(%arg0: i32) -> (i32, i32) {
    %c0_i32 = arith.constant 0 : i32
    %c0_i32_0 = arith.constant 0 : i32
    %c0_i32_1 = arith.constant 0 : i32
    return %c0_i32, %c0_i32_0 : i32, i32
  }
}

</mosaic_0001>

<llo_original>
// kernel: gcn_encoder_forward.5
$region0: #{gcn_encoder_forward.5}
  #allocation0 [shape = 'u32[]', space=smem, size = 0x4, offset = 0x4, fixed_abs, tag = 'smem constant byte address 0x4 - core index']
  #allocation1 [shape = 'u32[144,128]{1,0:T(1,128)}', space=vmem, size = 0x12000, scoped, tag = 'internal scratch']
  %s0 = inlined_call_operand.vmem [shape: bf16[16,256], index: 0, kind: input, shape index: {}]
  %s1 = inlined_call_operand.vmem [shape: bf16[256,256], index: 1, kind: input, shape index: {}]
  %s2 = inlined_call_operand.vmem [shape: f32[32,16], index: 2, kind: input, shape index: {}]
  %s3 = inlined_call_operand.vmem [shape: f32[32,1], index: 3, kind: input, shape index: {}]
  %s4 = inlined_call_operand.vmem [shape: bf16[32,256], index: 4, kind: output, shape index: {}]
  %s5 = sld [smem:[#allocation0]]
  $region26: #{gcn_encoder_forward.5} parent=0
    _
  %s7 = ssub.s32 1, %s5
  %s8 = scalar_select 0, %s7, %s5
  // Predicated region
  $region2: #{gcn_encoder_forward.5} parent=0 // pred_check
    _
  $region3: #{gcn_encoder_forward.5} parent=0 // pred_check_branch
    %10 = sbr.rel (0) target = $region5
  $region4: #{gcn_encoder_forward.5} parent=0 // pred_region
    _
  $region5: #{gcn_encoder_forward.5} parent=0 // pred_fallthru
    _
  // Predicated region
  $region6: #{gcn_encoder_forward.5} parent=0 // pred_check
    _
  $region7: #{gcn_encoder_forward.5} parent=0 // pred_check_branch
    %12 = sbr.rel (0) target = $region9
  $region8: #{gcn_encoder_forward.5} parent=0 // pred_region
    _
  $region9: #{gcn_encoder_forward.5} parent=0 // pred_fallthru
    _
  // Predicated region
  $region10: #{gcn_encoder_forward.5} parent=0 // pred_check
    _
  $region11: #{gcn_encoder_forward.5} parent=0 // pred_check_branch
    %14 = sbr.rel (0) target = $region13
  $region12: #{gcn_encoder_forward.5} parent=0 // pred_region
    _
  $region13: #{gcn_encoder_forward.5} parent=0 // pred_fallthru
    _
  // Predicated region
  $region14: #{gcn_encoder_forward.5} parent=0 // pred_check
    _
  $region15: #{gcn_encoder_forward.5} parent=0 // pred_check_branch
    %16 = sbr.rel (0) target = $region17
  $region16: #{gcn_encoder_forward.5} parent=0 // pred_region
    _
  $region17: #{gcn_encoder_forward.5} parent=0 // pred_fallthru
    _
  %v17 = vld [vmem:[%s0] sm:$0xff]
  %v18 = vld [vmem:[%s0 + $0x8] sm:$0xff]
  %v19 = vld [vmem:[%s1] sm:$0xff]
  %v20 = vld [vmem:[%s1 + $0x8] sm:$0xff]
  %v21 = vld [vmem:[%s1 + $0x10] sm:$0xff]
  %v22 = vld [vmem:[%s1 + $0x18] sm:$0xff]
  %v23 = vld [vmem:[%s1 + $0x20] sm:$0xff]
  %v24 = vld [vmem:[%s1 + $0x28] sm:$0xff]
  %v25 = vld [vmem:[%s1 + $0x30] sm:$0xff]
  %v26 = vld [vmem:[%s1 + $0x38] sm:$0xff]
  %v27 = vld [vmem:[%s1 + $0x40] sm:$0xff]
  %v28 = vld [vmem:[%s1 + $0x48] sm:$0xff]
  %v29 = vld [vmem:[%s1 + $0x50] sm:$0xff]
  %v30 = vld [vmem:[%s1 + $0x58] sm:$0xff]
  %v31 = vld [vmem:[%s1 + $0x60] sm:$0xff]
  %v32 = vld [vmem:[%s1 + $0x68] sm:$0xff]
  %v33 = vld [vmem:[%s1 + $0x70] sm:$0xff]
  %v34 = vld [vmem:[%s1 + $0x78] sm:$0xff]
  %v35 = vld [vmem:[%s1 + $0x80] sm:$0xff]
  %v36 = vld [vmem:[%s1 + $0x88] sm:$0xff]
  %v37 = vld [vmem:[%s1 + $0x90] sm:$0xff]
  %v38 = vld [vmem:[%s1 + $0x98] sm:$0xff]
  %v39 = vld [vmem:[%s1 + $0xa0] sm:$0xff]
  %v40 = vld [vmem:[%s1 + $0xa8] sm:$0xff]
  %v41 = vld [vmem:[%s1 + $0xb0] sm:$0xff]
  %v42 = vld [vmem:[%s1 + $0xb8] sm:$0xff]
  %v43 = vld [vmem:[%s1 + $0xc0] sm:$0xff]
  %v44 = vld [vmem:[%s1 + $0xc8] sm:$0xff]
  %v45 = vld [vmem:[%s1 + $0xd0] sm:$0xff]
  %v46 = vld [vmem:[%s1 + $0xd8] sm:$0xff]
  %v47 = vld [vmem:[%s1 + $0xe0] sm:$0xff]
  %v48 = vld [vmem:[%s1 + $0xe8] sm:$0xff]
  %v49 = vld [vmem:[%s1 + $0xf0] sm:$0xff]
  %v50 = vld [vmem:[%s1 + $0xf8] sm:$0xff]
  %v53 = vunpack.c.l.b16 %v17
  %v54 = vunpack.c.h.b16 %v17
  %v55 = vunpack.c.l.b16 %v18
  %v56 = vunpack.c.h.b16 %v18
  %v57 = vpack.c.b16 %v55, %v53
  %v58 = vpack.c.b16 %v56, %v54
  %v93 = vunpack.c.l.b16 %v19
  %v94 = vunpack.c.h.b16 %v19
  %v95 = vunpack.c.l.b16 %v20
  %v96 = vunpack.c.h.b16 %v20
  %v97 = vunpack.c.l.b16 %v21
  %v98 = vunpack.c.h.b16 %v21
  %v99 = vunpack.c.l.b16 %v22
  %v100 = vunpack.c.h.b16 %v22
  %v101 = vunpack.c.l.b16 %v23
  %v102 = vunpack.c.h.b16 %v23
  %v103 = vunpack.c.l.b16 %v24
  %v104 = vunpack.c.h.b16 %v24
  %v105 = vunpack.c.l.b16 %v25
  %v106 = vunpack.c.h.b16 %v25
  %v107 = vunpack.c.l.b16 %v26
  %v108 = vunpack.c.h.b16 %v26
  %v109 = vunpack.c.l.b16 %v27
  %v110 = vunpack.c.h.b16 %v27
  %v111 = vunpack.c.l.b16 %v28
  %v112 = vunpack.c.h.b16 %v28
  %v113 = vunpack.c.l.b16 %v29
  %v114 = vunpack.c.h.b16 %v29
  %v115 = vunpack.c.l.b16 %v30
  %v116 = vunpack.c.h.b16 %v30
  %v117 = vunpack.c.l.b16 %v31
  %v118 = vunpack.c.h.b16 %v31
  %v119 = vunpack.c.l.b16 %v32
  %v120 = vunpack.c.h.b16 %v32
  %v121 = vunpack.c.l.b16 %v33
  %v122 = vunpack.c.h.b16 %v33
  %v123 = vunpack.c.l.b16 %v34
  %v124 = vunpack.c.h.b16 %v34
  %v125 = vunpack.c.l.b16 %v35
  %v126 = vunpack.c.h.b16 %v35
  %v127 = vunpack.c.l.b16 %v36
  %v128 = vunpack.c.h.b16 %v36
  %v129 = vunpack.c.l.b16 %v37
  %v130 = vunpack.c.h.b16 %v37
  %v131 = vunpack.c.l.b16 %v38
  %v132 = vunpack.c.h.b16 %v38
  %v133 = vunpack.c.l.b16 %v39
  %v134 = vunpack.c.h.b16 %v39
  %v135 = vunpack.c.l.b16 %v40
  %v136 = vunpack.c.h.b16 %v40
  %v137 = vunpack.c.l.b16 %v41
  %v138 = vunpack.c.h.b16 %v41
  %v139 = vunpack.c.l.b16 %v42
  %v140 = vunpack.c.h.b16 %v42
  %v141 = vunpack.c.l.b16 %v43
  %v142 = vunpack.c.h.b16 %v43
  %v143 = vunpack.c.l.b16 %v44
  %v144 = vunpack.c.h.b16 %v44
  %v145 = vunpack.c.l.b16 %v45
  %v146 = vunpack.c.h.b16 %v45
  %v147 = vunpack.c.l.b16 %v46
  %v148 = vunpack.c.h.b16 %v46
  %v149 = vunpack.c.l.b16 %v47
  %v150 = vunpack.c.h.b16 %v47
  %v151 = vunpack.c.l.b16 %v48
  %v152 = vunpack.c.h.b16 %v48
  %v153 = vunpack.c.l.b16 %v49
  %v154 = vunpack.c.h.b16 %v49
  %v155 = vunpack.c.l.b16 %v50
  %v156 = vunpack.c.h.b16 %v50
  %v157 = vpack.c.b16 %v95, %v93
  %v158 = vpack.c.b16 %v96, %v94
  %v159 = vpack.c.b16 %v99, %v97
  %v160 = vpack.c.b16 %v100, %v98
  %v161 = vpack.c.b16 %v103, %v101
  %v162 = vpack.c.b16 %v104, %v102
  %v163 = vpack.c.b16 %v107, %v105
  %v164 = vpack.c.b16 %v108, %v106
  %v165 = vpack.c.b16 %v111, %v109
  %v166 = vpack.c.b16 %v112, %v110
  %v167 = vpack.c.b16 %v115, %v113
  %v168 = vpack.c.b16 %v116, %v114
  %v169 = vpack.c.b16 %v119, %v117
  %v170 = vpack.c.b16 %v120, %v118
  %v171 = vpack.c.b16 %v123, %v121
  %v172 = vpack.c.b16 %v124, %v122
  %v173 = vpack.c.b16 %v127, %v125
  %v174 = vpack.c.b16 %v128, %v126
  %v175 = vpack.c.b16 %v131, %v129
  %v176 = vpack.c.b16 %v132, %v130
  %v177 = vpack.c.b16 %v135, %v133
  %v178 = vpack.c.b16 %v136, %v134
  %v179 = vpack.c.b16 %v139, %v137
  %v180 = vpack.c.b16 %v140, %v138
  %v181 = vpack.c.b16 %v143, %v141
  %v182 = vpack.c.b16 %v144, %v142
  %v183 = vpack.c.b16 %v147, %v145
  %v184 = vpack.c.b16 %v148, %v146
  %v185 = vpack.c.b16 %v151, %v149
  %v186 = vpack.c.b16 %v152, %v150
  %v187 = vpack.c.b16 %v155, %v153
  %v188 = vpack.c.b16 %v156, %v154
  %221 = vmatprep.subr.bf16.mxu0 %v172
  %222 = vmatpush1.bf16.msra.mxu0 %v171
  %223 = vmatprep.subr.bf16.mxu0 %v170
  %224 = vmatpush1.bf16.msra.mxu0 %v169
  %225 = vmatprep.subr.bf16.mxu0 %v168
  %226 = vmatpush1.bf16.msra.mxu0 %v167
  %227 = vmatprep.subr.bf16.mxu0 %v166
  %228 = vmatpush1.bf16.msra.mxu0 %v165
  %229 = vmatprep.subr.bf16.mxu0 %v164
  %230 = vmatpush1.bf16.msra.mxu0 %v163
  %231 = vmatprep.subr.bf16.mxu0 %v162
  %232 = vmatpush1.bf16.msra.mxu0 %v161
  %233 = vmatprep.subr.bf16.mxu0 %v160
  %234 = vmatpush1.bf16.msra.mxu0 %v159
  %235 = vmatprep.subr.bf16.mxu0 %v158
  %236 = vmatpush1.bf16.msra.mxu0 %v157
  %237 = vmatprep.subr.bf16.mxu0 %v188
  %238 = vmatpush2.bf16.msra.mxu0 %v187
  %239 = vmatprep.subr.bf16.mxu0 %v186
  %240 = vmatpush2.bf16.msra.mxu0 %v185
  %241 = vmatprep.subr.bf16.mxu0 %v184
  %242 = vmatpush2.bf16.msra.mxu0 %v183
  %243 = vmatprep.subr.bf16.mxu0 %v182
  %244 = vmatpush2.bf16.msra.mxu0 %v181
  %245 = vmatprep.subr.bf16.mxu0 %v180
  %246 = vmatpush2.bf16.msra.mxu0 %v179
  %247 = vmatprep.subr.bf16.mxu0 %v178
  %248 = vmatpush2.bf16.msra.mxu0 %v177
  %249 = vmatprep.subr.bf16.mxu0 %v176
  %250 = vmatpush2.bf16.msra.mxu0 %v175
  %251 = vmatprep.subr.bf16.mxu0 %v174
  %252 = vmatpush2.bf16.msra.mxu0 %v173
  %253 = vmatprep.mubr.bf16.mxu0 %v58
  %254 = vmatmul.mubr.bf16.gmra.mxu0 %v57
  %v255 = vpop.f32.mrf.mxu0
  %v256 = vadd.f32 0.0, %v255
  %v257 = vpop.f32.mrf.mxu0
  %v258 = vadd.f32 0.0, %v257
  %v259 = vpop.f32.mrf.mxu0
  %v260 = vadd.f32 0.0, %v259
  %v261 = vpop.f32.mrf.mxu0
  %v262 = vadd.f32 0.0, %v261
  %263 = vdwg.mxu0
  %v264 = vld [vmem:[%s2] sm:$0xff]
  %v265 = vld [vmem:[%s2 + $0x8] sm:$0xff]
  %v266 = vld [vmem:[%s2 + $0x10] sm:$0xff]
  %v267 = vld [vmem:[%s2 + $0x18] sm:$0xff]
  %v268 = vld [vmem:[%s3] sm:$0xff]
  %v269 = vld [vmem:[%s3 + $0x8] sm:$0xff]
  %v270 = vld [vmem:[%s3 + $0x10] sm:$0xff]
  %v271 = vld [vmem:[%s3 + $0x18] sm:$0xff]
  %273 = vset.pattern.permute.xlu0 0
  %274 = vperm.xlu0 %273, %v268
  %v275 = vpop.permute.xlu0 %274
  %278 = vset.pattern.permute.xlu0 0
  %279 = vperm.xlu0 %278, %v269
  %v280 = vpop.permute.xlu0 %279
  %283 = vset.pattern.permute.xlu0 0
  %284 = vperm.xlu0 %283, %v270
  %v285 = vpop.permute.xlu0 %284
  %288 = vset.pattern.permute.xlu0 0
  %289 = vperm.xlu0 %288, %v271
  %v290 = vpop.permute.xlu0 %289
  %vm292 = vcmask 130048
  %v294 = vsel %vm292, %v264, 0
  %v297 = vsel %vm292, %v265, 0
  %v300 = vsel %vm292, %v266, 0
  %v303 = vsel %vm292, %v267, 0
  %305 = vmatprep.subr.mxu0 0.0
  %306 = vmatpush1.msra.mxu0 0.0
  %307 = vmatprep.subr.mxu0 0.0
  %308 = vmatpush1.msra.mxu0 0.0
  %309 = vmatprep.subr.mxu0 0.0
  %310 = vmatpush1.msra.mxu0 0.0
  %311 = vmatprep.subr.mxu0 0.0
  %312 = vmatpush1.msra.mxu0 0.0
  %313 = vmatprep.subr.mxu0 0.0
  %314 = vmatpush1.msra.mxu0 0.0
  %315 = vmatprep.subr.mxu0 0.0
  %316 = vmatpush1.msra.mxu0 0.0
  %317 = vmatprep.subr.mxu0 0.0
  %318 = vmatpush1.msra.mxu0 0.0
  %319 = vmatprep.subr.mxu0 0.0
  %320 = vmatpush1.msra.mxu0 0.0
  %321 = vmatprep.subr.mxu0 0.0
  %322 = vmatpush1.msra.mxu0 0.0
  %323 = vmatprep.subr.mxu0 0.0
  %324 = vmatpush1.msra.mxu0 0.0
  %325 = vmatprep.subr.mxu0 0.0
  %326 = vmatpush1.msra.mxu0 0.0
  %327 = vmatprep.subr.mxu0 0.0
  %328 = vmatpush1.msra.mxu0 0.0
  %329 = vmatprep.subr.mxu0 0.0
  %330 = vmatpush1.msra.mxu0 0.0
  %331 = vmatprep.subr.mxu0 0.0
  %332 = vmatpush1.msra.mxu0 0.0
  %333 = vmatprep.subr.mxu0 %v262
  %334 = vmatpush1.msra.mxu0 %v260
  %335 = vmatprep.subr.mxu0 %v258
  %336 = vmatpush1.msra.mxu0 %v256
  %337 = vmatprep.subr.mxu0 0.0
  %338 = vmatpush2.msra.mxu0 0.0
  %339 = vmatprep.subr.mxu0 0.0
  %340 = vmatpush2.msra.mxu0 0.0
  %341 = vmatprep.subr.mxu0 0.0
  %342 = vmatpush2.msra.mxu0 0.0
  %343 = vmatprep.subr.mxu0 0.0
  %344 = vmatpush2.msra.mxu0 0.0
  %345 = vmatprep.subr.mxu0 0.0
  %346 = vmatpush2.msra.mxu0 0.0
  %347 = vmatprep.subr.mxu0 0.0
  %348 = vmatpush2.msra.mxu0 0.0
  %349 = vmatprep.subr.mxu0 0.0
  %350 = vmatpush2.msra.mxu0 0.0
  %351 = vmatprep.subr.mxu0 0.0
  %352 = vmatpush2.msra.mxu0 0.0
  %353 = vmatprep.subr.mxu0 0.0
  %354 = vmatpush2.msra.mxu0 0.0
  %355 = vmatprep.subr.mxu0 0.0
  %356 = vmatpush2.msra.mxu0 0.0
  %357 = vmatprep.subr.mxu0 0.0
  %358 = vmatpush2.msra.mxu0 0.0
  %359 = vmatprep.subr.mxu0 0.0
  %360 = vmatpush2.msra.mxu0 0.0
  %361 = vmatprep.subr.mxu0 0.0
  %362 = vmatpush2.msra.mxu0 0.0
  %363 = vmatprep.subr.mxu0 0.0
  %364 = vmatpush2.msra.mxu0 0.0
  %365 = vmatprep.subr.mxu0 0.0
  %366 = vmatpush2.msra.mxu0 0.0
  %367 = vmatprep.subr.mxu0 0.0
  %368 = vmatpush2.msra.mxu0 0.0
  %369 = vmatprep.mubr.f32.mxu0 0.0
  %370 = vmatmul.mubr.f32.gmra.mxu0 %v294
  %v371 = vpop.f32.mrf.mxu0
  %v372 = vadd.f32 %v275, %v371
  %v373 = vpop.f32.mrf.mxu0
  %v374 = vadd.f32 %v275, %v373
  %375 = vmatprep.mubr.f32.mxu0 0.0
  %376 = vmatmul.mubr.f32.gmra.mxu0 %v297
  %v377 = vpop.f32.mrf.mxu0
  %v378 = vadd.f32 %v280, %v377
  %v379 = vpop.f32.mrf.mxu0
  %v380 = vadd.f32 %v280, %v379
  %381 = vmatprep.mubr.f32.mxu0 0.0
  %382 = vmatmul.mubr.f32.gmra.mxu0 %v300
  %v383 = vpop.f32.mrf.mxu0
  %v384 = vadd.f32 %v285, %v383
  %v385 = vpop.f32.mrf.mxu0
  %v386 = vadd.f32 %v285, %v385
  %387 = vmatprep.mubr.f32.mxu0 0.0
  %388 = vmatmul.mubr.f32.gmra.mxu0 %v303
  %v389 = vpop.f32.mrf.mxu0
  %v390 = vadd.f32 %v290, %v389
  %v391 = vpop.f32.mrf.mxu0
  %v392 = vadd.f32 %v290, %v391
  %393 = vdwg.mxu0
  %v394 = vmax.f32 %v372, 0.0
  %v395 = vmax.f32 %v374, 0.0
  %v396 = vmax.f32 %v378, 0.0
  %v397 = vmax.f32 %v380, 0.0
  %v398 = vmax.f32 %v384, 0.0
  %v399 = vmax.f32 %v386, 0.0
  %v400 = vmax.f32 %v390, 0.0
  %v401 = vmax.f32 %v392, 0.0
  %v402 = vpack.c.bf16 %v396, %v394
  %v403 = vpack.c.bf16 %v397, %v395
  %v404 = vpack.c.bf16 %v400, %v398
  %v405 = vpack.c.bf16 %v401, %v399
  %v410 = vunpack.c.l.b16 %v402
  %v411 = vunpack.c.l.b16 %v403
  %v412 = vunpack.c.h.b16 %v402
  %v413 = vunpack.c.h.b16 %v403
  %v414 = vunpack.c.l.b16 %v404
  %v415 = vunpack.c.l.b16 %v405
  %v416 = vunpack.c.h.b16 %v404
  %v417 = vunpack.c.h.b16 %v405
  %v418 = vpack.c.b16 %v411, %v410
  %v419 = vpack.c.b16 %v413, %v412
  %v420 = vpack.c.b16 %v415, %v414
  %v421 = vpack.c.b16 %v417, %v416
  %426 = vst [vmem:[%s4] sm:$0xff] %v418
  %427 = vst [vmem:[%s4 + $0x8] sm:$0xff] %v419
  %428 = vst [vmem:[%s4 + $0x10] sm:$0xff] %v420
  %429 = vst [vmem:[%s4 + $0x18] sm:$0xff] %v421
  // Predicated region
  $region18: #{gcn_encoder_forward.5} parent=0 // pred_check
    _
  $region19: #{gcn_encoder_forward.5} parent=0 // pred_check_branch
    %431 = sbr.rel (0) target = $region21
  $region20: #{gcn_encoder_forward.5} parent=0 // pred_region
    _
  $region21: #{gcn_encoder_forward.5} parent=0 // pred_fallthru
    _
  // Predicated region
  $region22: #{gcn_encoder_forward.5} parent=0 // pred_check
    _
  $region23: #{gcn_encoder_forward.5} parent=0 // pred_check_branch
    %433 = sbr.rel (0) target = $region25
  $region24: #{gcn_encoder_forward.5} parent=0 // pred_region
    _
  $region25: #{gcn_encoder_forward.5} parent=0 // pred_fallthru
    _

// kernel: gcn_encoder_forward.6
$region0: #{gcn_encoder_forward.6}
  #allocation0 [shape = 'u32[]', space=smem, size = 0x4, offset = 0x4, fixed_abs, tag = 'smem constant byte address 0x4 - core index']
  #allocation1 [shape = 'u32[144,128]{1,0:T(1,128)}', space=vmem, size = 0x12000, scoped, tag = 'internal scratch']
  %s0 = inlined_call_operand.vmem [shape: bf16[32,256], index: 0, kind: input, shape index: {}]
  %s1 = inlined_call_operand.vmem [shape: bf16[256,256], index: 1, kind: input, shape index: {}]
  %s2 = inlined_call_operand.vmem [shape: f32[32,32], index: 2, kind: input, shape index: {}]
  %s3 = inlined_call_operand.vmem [shape: f32[32,1], index: 3, kind: input, shape index: {}]
  %s4 = inlined_call_operand.vmem [shape: bf16[32,256], index: 4, kind: output, shape index: {}]
  %s5 = sld [smem:[#allocation0]]
  $region26: #{gcn_encoder_forward.6} parent=0
    _
  %s7 = ssub.s32 1, %s5
  %s8 = scalar_select 0, %s7, %s5
  // Predicated region
  $region2: #{gcn_encoder_forward.6} parent=0 // pred_check
    _
  $region3: #{gcn_encoder_forward.6} parent=0 // pred_check_branch
    %10 = sbr.rel (0) target = $region5
  $region4: #{gcn_encoder_forward.6} parent=0 // pred_region
    _
  $region5: #{gcn_encoder_forward.6} parent=0 // pred_fallthru
    _
  // Predicated region
  $region6: #{gcn_encoder_forward.6} parent=0 // pred_check
    _
  $region7: #{gcn_encoder_forward.6} parent=0 // pred_check_branch
    %12 = sbr.rel (0) target = $region9
  $region8: #{gcn_encoder_forward.6} parent=0 // pred_region
    _
  $region9: #{gcn_encoder_forward.6} parent=0 // pred_fallthru
    _
  // Predicated region
  $region10: #{gcn_encoder_forward.6} parent=0 // pred_check
    _
  $region11: #{gcn_encoder_forward.6} parent=0 // pred_check_branch
    %14 = sbr.rel (0) target = $region13
  $region12: #{gcn_encoder_forward.6} parent=0 // pred_region
    _
  $region13: #{gcn_encoder_forward.6} parent=0 // pred_fallthru
    _
  // Predicated region
  $region14: #{gcn_encoder_forward.6} parent=0 // pred_check
    _
  $region15: #{gcn_encoder_forward.6} parent=0 // pred_check_branch
    %16 = sbr.rel (0) target = $region17
  $region16: #{gcn_encoder_forward.6} parent=0 // pred_region
    _
  $region17: #{gcn_encoder_forward.6} parent=0 // pred_fallthru
    _
  %v17 = vld [vmem:[%s0] sm:$0xff]
  %v18 = vld [vmem:[%s0 + $0x8] sm:$0xff]
  %v19 = vld [vmem:[%s0 + $0x10] sm:$0xff]
  %v20 = vld [vmem:[%s0 + $0x18] sm:$0xff]
  %v21 = vld [vmem:[%s1] sm:$0xff]
  %v22 = vld [vmem:[%s1 + $0x8] sm:$0xff]
  %v23 = vld [vmem:[%s1 + $0x10] sm:$0xff]
  %v24 = vld [vmem:[%s1 + $0x18] sm:$0xff]
  %v25 = vld [vmem:[%s1 + $0x20] sm:$0xff]
  %v26 = vld [vmem:[%s1 + $0x28] sm:$0xff]
  %v27 = vld [vmem:[%s1 + $0x30] sm:$0xff]
  %v28 = vld [vmem:[%s1 + $0x38] sm:$0xff]
  %v29 = vld [vmem:[%s1 + $0x40] sm:$0xff]
  %v30 = vld [vmem:[%s1 + $0x48] sm:$0xff]
  %v31 = vld [vmem:[%s1 + $0x50] sm:$0xff]
  %v32 = vld [vmem:[%s1 + $0x58] sm:$0xff]
  %v33 = vld [vmem:[%s1 + $0x60] sm:$0xff]
  %v34 = vld [vmem:[%s1 + $0x68] sm:$0xff]
  %v35 = vld [vmem:[%s1 + $0x70] sm:$0xff]
  %v36 = vld [vmem:[%s1 + $0x78] sm:$0xff]
  %v37 = vld [vmem:[%s1 + $0x80] sm:$0xff]
  %v38 = vld [vmem:[%s1 + $0x88] sm:$0xff]
  %v39 = vld [vmem:[%s1 + $0x90] sm:$0xff]
  %v40 = vld [vmem:[%s1 + $0x98] sm:$0xff]
  %v41 = vld [vmem:[%s1 + $0xa0] sm:$0xff]
  %v42 = vld [vmem:[%s1 + $0xa8] sm:$0xff]
  %v43 = vld [vmem:[%s1 + $0xb0] sm:$0xff]
  %v44 = vld [vmem:[%s1 + $0xb8] sm:$0xff]
  %v45 = vld [vmem:[%s1 + $0xc0] sm:$0xff]
  %v46 = vld [vmem:[%s1 + $0xc8] sm:$0xff]
  %v47 = vld [vmem:[%s1 + $0xd0] sm:$0xff]
  %v48 = vld [vmem:[%s1 + $0xd8] sm:$0xff]
  %v49 = vld [vmem:[%s1 + $0xe0] sm:$0xff]
  %v50 = vld [vmem:[%s1 + $0xe8] sm:$0xff]
  %v51 = vld [vmem:[%s1 + $0xf0] sm:$0xff]
  %v52 = vld [vmem:[%s1 + $0xf8] sm:$0xff]
  %v57 = vunpack.c.l.b16 %v17
  %v58 = vunpack.c.h.b16 %v17
  %v59 = vunpack.c.l.b16 %v18
  %v60 = vunpack.c.h.b16 %v18
  %v61 = vunpack.c.l.b16 %v19
  %v62 = vunpack.c.h.b16 %v19
  %v63 = vunpack.c.l.b16 %v20
  %v64 = vunpack.c.h.b16 %v20
  %v65 = vpack.c.b16 %v59, %v57
  %v66 = vpack.c.b16 %v60, %v58
  %v67 = vpack.c.b16 %v63, %v61
  %v68 = vpack.c.b16 %v64, %v62
  %v105 = vunpack.c.l.b16 %v21
  %v106 = vunpack.c.h.b16 %v21
  %v107 = vunpack.c.l.b16 %v22
  %v108 = vunpack.c.h.b16 %v22
  %v109 = vunpack.c.l.b16 %v23
  %v110 = vunpack.c.h.b16 %v23
  %v111 = vunpack.c.l.b16 %v24
  %v112 = vunpack.c.h.b16 %v24
  %v113 = vunpack.c.l.b16 %v25
  %v114 = vunpack.c.h.b16 %v25
  %v115 = vunpack.c.l.b16 %v26
  %v116 = vunpack.c.h.b16 %v26
  %v117 = vunpack.c.l.b16 %v27
  %v118 = vunpack.c.h.b16 %v27
  %v119 = vunpack.c.l.b16 %v28
  %v120 = vunpack.c.h.b16 %v28
  %v121 = vunpack.c.l.b16 %v29
  %v122 = vunpack.c.h.b16 %v29
  %v123 = vunpack.c.l.b16 %v30
  %v124 = vunpack.c.h.b16 %v30
  %v125 = vunpack.c.l.b16 %v31
  %v126 = vunpack.c.h.b16 %v31
  %v127 = vunpack.c.l.b16 %v32
  %v128 = vunpack.c.h.b16 %v32
  %v129 = vunpack.c.l.b16 %v33
  %v130 = vunpack.c.h.b16 %v33
  %v131 = vunpack.c.l.b16 %v34
  %v132 = vunpack.c.h.b16 %v34
  %v133 = vunpack.c.l.b16 %v35
  %v134 = vunpack.c.h.b16 %v35
  %v135 = vunpack.c.l.b16 %v36
  %v136 = vunpack.c.h.b16 %v36
  %v137 = vunpack.c.l.b16 %v37
  %v138 = vunpack.c.h.b16 %v37
  %v139 = vunpack.c.l.b16 %v38
  %v140 = vunpack.c.h.b16 %v38
  %v141 = vunpack.c.l.b16 %v39
  %v142 = vunpack.c.h.b16 %v39
  %v143 = vunpack.c.l.b16 %v40
  %v144 = vunpack.c.h.b16 %v40
  %v145 = vunpack.c.l.b16 %v41
  %v146 = vunpack.c.h.b16 %v41
  %v147 = vunpack.c.l.b16 %v42
  %v148 = vunpack.c.h.b16 %v42
  %v149 = vunpack.c.l.b16 %v43
  %v150 = vunpack.c.h.b16 %v43
  %v151 = vunpack.c.l.b16 %v44
  %v152 = vunpack.c.h.b16 %v44
  %v153 = vunpack.c.l.b16 %v45
  %v154 = vunpack.c.h.b16 %v45
  %v155 = vunpack.c.l.b16 %v46
  %v156 = vunpack.c.h.b16 %v46
  %v157 = vunpack.c.l.b16 %v47
  %v158 = vunpack.c.h.b16 %v47
  %v159 = vunpack.c.l.b16 %v48
  %v160 = vunpack.c.h.b16 %v48
  %v161 = vunpack.c.l.b16 %v49
  %v162 = vunpack.c.h.b16 %v49
  %v163 = vunpack.c.l.b16 %v50
  %v164 = vunpack.c.h.b16 %v50
  %v165 = vunpack.c.l.b16 %v51
  %v166 = vunpack.c.h.b16 %v51
  %v167 = vunpack.c.l.b16 %v52
  %v168 = vunpack.c.h.b16 %v52
  %v169 = vpack.c.b16 %v107, %v105
  %v170 = vpack.c.b16 %v108, %v106
  %v171 = vpack.c.b16 %v111, %v109
  %v172 = vpack.c.b16 %v112, %v110
  %v173 = vpack.c.b16 %v115, %v113
  %v174 = vpack.c.b16 %v116, %v114
  %v175 = vpack.c.b16 %v119, %v117
  %v176 = vpack.c.b16 %v120, %v118
  %v177 = vpack.c.b16 %v123, %v121
  %v178 = vpack.c.b16 %v124, %v122
  %v179 = vpack.c.b16 %v127, %v125
  %v180 = vpack.c.b16 %v128, %v126
  %v181 = vpack.c.b16 %v131, %v129
  %v182 = vpack.c.b16 %v132, %v130
  %v183 = vpack.c.b16 %v135, %v133
  %v184 = vpack.c.b16 %v136, %v134
  %v185 = vpack.c.b16 %v139, %v137
  %v186 = vpack.c.b16 %v140, %v138
  %v187 = vpack.c.b16 %v143, %v141
  %v188 = vpack.c.b16 %v144, %v142
  %v189 = vpack.c.b16 %v147, %v145
  %v190 = vpack.c.b16 %v148, %v146
  %v191 = vpack.c.b16 %v151, %v149
  %v192 = vpack.c.b16 %v152, %v150
  %v193 = vpack.c.b16 %v155, %v153
  %v194 = vpack.c.b16 %v156, %v154
  %v195 = vpack.c.b16 %v159, %v157
  %v196 = vpack.c.b16 %v160, %v158
  %v197 = vpack.c.b16 %v163, %v161
  %v198 = vpack.c.b16 %v164, %v162
  %v199 = vpack.c.b16 %v167, %v165
  %v200 = vpack.c.b16 %v168, %v166
  %233 = vmatprep.subr.bf16.mxu0 %v184
  %234 = vmatpush1.bf16.msra.mxu0 %v183
  %235 = vmatprep.subr.bf16.mxu0 %v182
  %236 = vmatpush1.bf16.msra.mxu0 %v181
  %237 = vmatprep.subr.bf16.mxu0 %v180
  %238 = vmatpush1.bf16.msra.mxu0 %v179
  %239 = vmatprep.subr.bf16.mxu0 %v178
  %240 = vmatpush1.bf16.msra.mxu0 %v177
  %241 = vmatprep.subr.bf16.mxu0 %v176
  %242 = vmatpush1.bf16.msra.mxu0 %v175
  %243 = vmatprep.subr.bf16.mxu0 %v174
  %244 = vmatpush1.bf16.msra.mxu0 %v173
  %245 = vmatprep.subr.bf16.mxu0 %v172
  %246 = vmatpush1.bf16.msra.mxu0 %v171
  %247 = vmatprep.subr.bf16.mxu0 %v170
  %248 = vmatpush1.bf16.msra.mxu0 %v169
  %249 = vmatprep.subr.bf16.mxu0 %v200
  %250 = vmatpush2.bf16.msra.mxu0 %v199
  %251 = vmatprep.subr.bf16.mxu0 %v198
  %252 = vmatpush2.bf16.msra.mxu0 %v197
  %253 = vmatprep.subr.bf16.mxu0 %v196
  %254 = vmatpush2.bf16.msra.mxu0 %v195
  %255 = vmatprep.subr.bf16.mxu0 %v194
  %256 = vmatpush2.bf16.msra.mxu0 %v193
  %257 = vmatprep.subr.bf16.mxu0 %v192
  %258 = vmatpush2.bf16.msra.mxu0 %v191
  %259 = vmatprep.subr.bf16.mxu0 %v190
  %260 = vmatpush2.bf16.msra.mxu0 %v189
  %261 = vmatprep.subr.bf16.mxu0 %v188
  %262 = vmatpush2.bf16.msra.mxu0 %v187
  %263 = vmatprep.subr.bf16.mxu0 %v186
  %264 = vmatpush2.bf16.msra.mxu0 %v185
  %265 = vmatprep.mubr.bf16.mxu0 %v66
  %266 = vmatmul.mubr.bf16.gmra.mxu0 %v65
  %v267 = vpop.f32.mrf.mxu0
  %v268 = vadd.f32 0.0, %v267
  %v269 = vpop.f32.mrf.mxu0
  %v270 = vadd.f32 0.0, %v269
  %v271 = vpop.f32.mrf.mxu0
  %v272 = vadd.f32 0.0, %v271
  %v273 = vpop.f32.mrf.mxu0
  %v274 = vadd.f32 0.0, %v273
  %275 = vmatprep.mubr.bf16.mxu0 %v68
  %276 = vmatmul.mubr.bf16.gmra.mxu0 %v67
  %v277 = vpop.f32.mrf.mxu0
  %v278 = vadd.f32 0.0, %v277
  %v279 = vpop.f32.mrf.mxu0
  %v280 = vadd.f32 0.0, %v279
  %v281 = vpop.f32.mrf.mxu0
  %v282 = vadd.f32 0.0, %v281
  %v283 = vpop.f32.mrf.mxu0
  %v284 = vadd.f32 0.0, %v283
  %285 = vdwg.mxu0
  %v286 = vld [vmem:[%s2] sm:$0xff]
  %v287 = vld [vmem:[%s2 + $0x8] sm:$0xff]
  %v288 = vld [vmem:[%s2 + $0x10] sm:$0xff]
  %v289 = vld [vmem:[%s2 + $0x18] sm:$0xff]
  %v290 = vld [vmem:[%s3] sm:$0xff]
  %v291 = vld [vmem:[%s3 + $0x8] sm:$0xff]
  %v292 = vld [vmem:[%s3 + $0x10] sm:$0xff]
  %v293 = vld [vmem:[%s3 + $0x18] sm:$0xff]
  %295 = vset.pattern.permute.xlu0 0
  %296 = vperm.xlu0 %295, %v290
  %v297 = vpop.permute.xlu0 %296
  %300 = vset.pattern.permute.xlu0 0
  %301 = vperm.xlu0 %300, %v291
  %v302 = vpop.permute.xlu0 %301
  %305 = vset.pattern.permute.xlu0 0
  %306 = vperm.xlu0 %305, %v292
  %v307 = vpop.permute.xlu0 %306
  %310 = vset.pattern.permute.xlu0 0
  %311 = vperm.xlu0 %310, %v293
  %v312 = vpop.permute.xlu0 %311
  %vm314 = vcmask 261120
  %v316 = vsel %vm314, %v286, 0
  %v319 = vsel %vm314, %v287, 0
  %v322 = vsel %vm314, %v288, 0
  %v325 = vsel %vm314, %v289, 0
  %327 = vmatprep.subr.mxu0 0.0
  %328 = vmatpush1.msra.mxu0 0.0
  %329 = vmatprep.subr.mxu0 0.0
  %330 = vmatpush1.msra.mxu0 0.0
  %331 = vmatprep.subr.mxu0 0.0
  %332 = vmatpush1.msra.mxu0 0.0
  %333 = vmatprep.subr.mxu0 0.0
  %334 = vmatpush1.msra.mxu0 0.0
  %335 = vmatprep.subr.mxu0 0.0
  %336 = vmatpush1.msra.mxu0 0.0
  %337 = vmatprep.subr.mxu0 0.0
  %338 = vmatpush1.msra.mxu0 0.0
  %339 = vmatprep.subr.mxu0 0.0
  %340 = vmatpush1.msra.mxu0 0.0
  %341 = vmatprep.subr.mxu0 0.0
  %342 = vmatpush1.msra.mxu0 0.0
  %343 = vmatprep.subr.mxu0 0.0
  %344 = vmatpush1.msra.mxu0 0.0
  %345 = vmatprep.subr.mxu0 0.0
  %346 = vmatpush1.msra.mxu0 0.0
  %347 = vmatprep.subr.mxu0 0.0
  %348 = vmatpush1.msra.mxu0 0.0
  %349 = vmatprep.subr.mxu0 0.0
  %350 = vmatpush1.msra.mxu0 0.0
  %351 = vmatprep.subr.mxu0 %v284
  %352 = vmatpush1.msra.mxu0 %v282
  %353 = vmatprep.subr.mxu0 %v280
  %354 = vmatpush1.msra.mxu0 %v278
  %355 = vmatprep.subr.mxu0 %v274
  %356 = vmatpush1.msra.mxu0 %v272
  %357 = vmatprep.subr.mxu0 %v270
  %358 = vmatpush1.msra.mxu0 %v268
  %359 = vmatprep.subr.mxu0 0.0
  %360 = vmatpush2.msra.mxu0 0.0
  %361 = vmatprep.subr.mxu0 0.0
  %362 = vmatpush2.msra.mxu0 0.0
  %363 = vmatprep.subr.mxu0 0.0
  %364 = vmatpush2.msra.mxu0 0.0
  %365 = vmatprep.subr.mxu0 0.0
  %366 = vmatpush2.msra.mxu0 0.0
  %367 = vmatprep.subr.mxu0 0.0
  %368 = vmatpush2.msra.mxu0 0.0
  %369 = vmatprep.subr.mxu0 0.0
  %370 = vmatpush2.msra.mxu0 0.0
  %371 = vmatprep.subr.mxu0 0.0
  %372 = vmatpush2.msra.mxu0 0.0
  %373 = vmatprep.subr.mxu0 0.0
  %374 = vmatpush2.msra.mxu0 0.0
  %375 = vmatprep.subr.mxu0 0.0
  %376 = vmatpush2.msra.mxu0 0.0
  %377 = vmatprep.subr.mxu0 0.0
  %378 = vmatpush2.msra.mxu0 0.0
  %379 = vmatprep.subr.mxu0 0.0
  %380 = vmatpush2.msra.mxu0 0.0
  %381 = vmatprep.subr.mxu0 0.0
  %382 = vmatpush2.msra.mxu0 0.0
  %383 = vmatprep.subr.mxu0 0.0
  %384 = vmatpush2.msra.mxu0 0.0
  %385 = vmatprep.subr.mxu0 0.0
  %386 = vmatpush2.msra.mxu0 0.0
  %387 = vmatprep.subr.mxu0 0.0
  %388 = vmatpush2.msra.mxu0 0.0
  %389 = vmatprep.subr.mxu0 0.0
  %390 = vmatpush2.msra.mxu0 0.0
  %391 = vmatprep.mubr.f32.mxu0 0.0
  %392 = vmatmul.mubr.f32.gmra.mxu0 %v316
  %v393 = vpop.f32.mrf.mxu0
  %v394 = vadd.f32 %v297, %v393
  %v395 = vpop.f32.mrf.mxu0
  %v396 = vadd.f32 %v297, %v395
  %397 = vmatprep.mubr.f32.mxu0 0.0
  %398 = vmatmul.mubr.f32.gmra.mxu0 %v319
  %v399 = vpop.f32.mrf.mxu0
  %v400 = vadd.f32 %v302, %v399
  %v401 = vpop.f32.mrf.mxu0
  %v402 = vadd.f32 %v302, %v401
  %403 = vmatprep.mubr.f32.mxu0 0.0
  %404 = vmatmul.mubr.f32.gmra.mxu0 %v322
  %v405 = vpop.f32.mrf.mxu0
  %v406 = vadd.f32 %v307, %v405
  %v407 = vpop.f32.mrf.mxu0
  %v408 = vadd.f32 %v307, %v407
  %409 = vmatprep.mubr.f32.mxu0 0.0
  %410 = vmatmul.mubr.f32.gmra.mxu0 %v325
  %v411 = vpop.f32.mrf.mxu0
  %v412 = vadd.f32 %v312, %v411
  %v413 = vpop.f32.mrf.mxu0
  %v414 = vadd.f32 %v312, %v413
  %415 = vdwg.mxu0
  %v416 = vpack.c.bf16 %v400, %v394
  %v417 = vpack.c.bf16 %v402, %v396
  %v418 = vpack.c.bf16 %v412, %v406
  %v419 = vpack.c.bf16 %v414, %v408
  %v424 = vunpack.c.l.b16 %v416
  %v425 = vunpack.c.l.b16 %v417
  %v426 = vunpack.c.h.b16 %v416
  %v427 = vunpack.c.h.b16 %v417
  %v428 = vunpack.c.l.b16 %v418
  %v429 = vunpack.c.l.b16 %v419
  %v430 = vunpack.c.h.b16 %v418
  %v431 = vunpack.c.h.b16 %v419
  %v432 = vpack.c.b16 %v425, %v424
  %v433 = vpack.c.b16 %v427, %v426
  %v434 = vpack.c.b16 %v429, %v428
  %v435 = vpack.c.b16 %v431, %v430
  %440 = vst [vmem:[%s4] sm:$0xff] %v432
  %441 = vst [vmem:[%s4 + $0x8] sm:$0xff] %v433
  %442 = vst [vmem:[%s4 + $0x10] sm:$0xff] %v434
  %443 = vst [vmem:[%s4 + $0x18] sm:$0xff] %v435
  // Predicated region
  $region18: #{gcn_encoder_forward.6} parent=0 // pred_check
    _
  $region19: #{gcn_encoder_forward.6} parent=0 // pred_check_branch
    %445 = sbr.rel (0) target = $region21
  $region20: #{gcn_encoder_forward.6} parent=0 // pred_region
    _
  $region21: #{gcn_encoder_forward.6} parent=0 // pred_fallthru
    _
  // Predicated region
  $region22: #{gcn_encoder_forward.6} parent=0 // pred_check
    _
  $region23: #{gcn_encoder_forward.6} parent=0 // pred_check_branch
    %447 = sbr.rel (0) target = $region25
  $region24: #{gcn_encoder_forward.6} parent=0 // pred_region
    _
  $region25: #{gcn_encoder_forward.6} parent=0 // pred_fallthru
    _

// kernel: gcn_encoder_forward.4
$region0: #{gcn_encoder_forward.4}
  #allocation0 [shape = 'u32[]', space=smem, size = 0x4, offset = 0x4, fixed_abs, tag = 'smem constant byte address 0x4 - core index']
  #allocation1 [shape = 'u32[144,128]{1,0:T(1,128)}', space=vmem, size = 0x12000, scoped, tag = 'internal scratch']
  #allocation2 [shape = 'f32[8,128]{1,0:T(8,128)}', space=vmem, size = 0x1000, scoped, tag = 'scratch operand']
  #allocation3 [shape = 'f32[8,128]{1,0:T(8,128)}', space=vmem, size = 0x1000, scoped, tag = 'scratch operand']
  #allocation4 [shape = 'f32[1,128]{1,0:T(1,128)}', space=vmem, size = 0x200, scoped, tag = 'scratch operand']
  #allocation5 [shape = 'f32[1,128]{1,0:T(1,128)}', space=vmem, size = 0x200, scoped, tag = 'scratch operand']
  #allocation6 [shape = 'f32[8,128]{1,0:T(8,128)}', space=vmem, size = 0x1000, scoped, tag = 'scratch operand']
  %s0 = inlined_call_operand.vmem [shape: f32[2,1,256], index: 0, kind: input, shape index: {}, may-alias: {0,1}]
  %s1 = inlined_call_operand.vmem [shape: f32[2,1,256], index: 1, kind: input, shape index: {}, may-alias: {0,1}]
  %s2 = inlined_call_operand.vmem [shape: f32[48,8], index: 2, kind: input, shape index: {}]
  %s3 = inlined_call_operand.vmem [shape: f32[96,1], index: 3, kind: input, shape index: {}]
  %s4 = inlined_call_operand.vmem [shape: bf16[2,8,256], index: 4, kind: output, shape index: {}]
  %s5 = sld [smem:[#allocation0]]
  $region57: #{gcn_encoder_forward.4} parent=0
    _
  %s7 = ssub.s32 1, %s5
  %s8 = scalar_select 0, %s7, %s5
  loop: start=0, step=1, limit=6
  $region2: #{gcn_encoder_forward.4} parent=0 // loop_pre_header
    _
  $region3: #{gcn_encoder_forward.4} parent=0 // loop_header
    %s10 = sphi 0, %s14
    %p11 = scmp.ge.s32.totalorder %s10, 6
    %s17 = sphi 0, %s36
    %s18 = sphi 0, %s32
    %s19 = sphi 0, %s28
    %s20 = sphi 0, %s17
    %s21 = sphi 0, %s18
    %s22 = sphi 0, %s19
    %s23 = sphi 0, %s20
    %s24 = sphi 0, %s21
    %s25 = sphi 0, %s22
    %s41 = sphi 0, %s43
    %s44 = sphi 0, %s41
    %s45 = sphi 0, %s44
    %s61 = sphi 0, %s45
    %s69 = sphi 0, %s71
    %s72 = sphi 0, %s69
    %s73 = sphi 0, %s72
    %s89 = sphi 0, %s73
    %s93 = sphi 0, %s93
    %s95 = sphi 0, %s93
    %s96 = sphi 0, %s95
    %s110 = sphi 0, %s96
    %s114 = sphi 0, %s114
    %s116 = sphi 0, %s114
    %s117 = sphi 0, %s116
    %s131 = sphi 0, %s117
    %s139 = sphi 0, %s141
    %s142 = sphi 0, %s139
    %s143 = sphi 0, %s142
    %s159 = sphi 0, %s143
  $region4: #{gcn_encoder_forward.4} parent=0 // loop_header_branch
    %13 = sbr.rel (%p11) target = $region8
  $region5: #{gcn_encoder_forward.4} parent=0 // loop_body
    %s15 = ssub.s32 %s10, 1
    %s16 = ssub.s32 %s10, 2
    %s26 = sadd.s32 1, %s19
    %p27 = scmp.ge.s32.totalorder %s26, 1
    %s28 = scalar_select %p27, 0, %s26
    %s29 = sadd.s32 1, %s18
    %s30 = scalar_select %p27, %s29, %s18
    %p31 = scmp.ge.s32.totalorder %s30, 2
    %s32 = scalar_select %p31, 0, %s30
    %s33 = sadd.s32 1, %s17
    %s34 = scalar_select %p31, %s33, %s17
    %p35 = scmp.ge.s32.totalorder %s34, 2
    %s36 = scalar_select %p35, 0, %s34
    %s37 = ssub.s32 %s17, %s36
    %s38 = ssub.s32 %s18, %s32
    %s39 = sor.u32 %s37, %s38
    %p40 = scmp.eq.s32.totalorder %s39, 0
    %s42 = sadd.s32 %s41, 1
    %s43 = scalar_select %p40, %s41, %s42
    %p46 = pneg %p40
    %p47 = scmp.eq.s32.totalorder %s10, 3
    %p48 = por %p46, %p47
    %p49 = scmp.ne.s32.totalorder %s41, %s44
    %p50 = scmp.eq.s32.totalorder %s10, 0
    %p51 = por %p49, %p50
    %p52 = scmp.ne.s32.totalorder %s41, %s44
    %p53 = scmp.eq.s32.totalorder %s15, 3
    %p54 = por %p52, %p53
    %p55 = scmp.ne.s32.totalorder %s44, %s45
    %p56 = scmp.eq.s32.totalorder %s15, 0
    %p57 = por %p55, %p56
    %p58 = scmp.ne.s32.totalorder %s44, %s45
    %p59 = scmp.eq.s32.totalorder %s16, 3
    %p60 = por %p58, %p59
    %p62 = scmp.ne.s32.totalorder %s45, %s61
    %p63 = scmp.eq.s32.totalorder %s16, 0
    %p64 = por %p62, %p63
    %s65 = ssub.s32 %s17, %s36
    %s66 = ssub.s32 %s19, %s28
    %s67 = sor.u32 %s65, %s66
    %p68 = scmp.eq.s32.totalorder %s67, 0
    %s70 = sadd.s32 %s69, 1
    %s71 = scalar_select %p68, %s69, %s70
    %p74 = pneg %p68
    %p75 = scmp.eq.s32.totalorder %s10, 3
    %p76 = por %p74, %p75
    %p77 = scmp.ne.s32.totalorder %s69, %s72
    %p78 = scmp.eq.s32.totalorder %s10, 0
    %p79 = por %p77, %p78
    %p80 = scmp.ne.s32.totalorder %s69, %s72
    %p81 = scmp.eq.s32.totalorder %s15, 3
    %p82 = por %p80, %p81
    %p83 = scmp.ne.s32.totalorder %s72, %s73
    %p84 = scmp.eq.s32.totalorder %s15, 0
    %p85 = por %p83, %p84
    %p86 = scmp.ne.s32.totalorder %s72, %s73
    %p87 = scmp.eq.s32.totalorder %s16, 3
    %p88 = por %p86, %p87
    %p90 = scmp.ne.s32.totalorder %s73, %s89
    %p91 = scmp.eq.s32.totalorder %s16, 0
    %p92 = por %p90, %p91
    %s94 = sadd.s32 %s93, 1
    %p97 = scmp.eq.s32.totalorder %s10, 3
    %p98 = scmp.ne.s32.totalorder %s93, %s95
    %p99 = scmp.eq.s32.totalorder %s10, 0
    %p100 = por %p98, %p99
    %p101 = scmp.ne.s32.totalorder %s93, %s95
    %p102 = scmp.eq.s32.totalorder %s15, 3
    %p103 = por %p101, %p102
    %p104 = scmp.ne.s32.totalorder %s95, %s96
    %p105 = scmp.eq.s32.totalorder %s15, 0
    %p106 = por %p104, %p105
    %p107 = scmp.ne.s32.totalorder %s95, %s96
    %p108 = scmp.eq.s32.totalorder %s16, 3
    %p109 = por %p107, %p108
    %p111 = scmp.ne.s32.totalorder %s96, %s110
    %p112 = scmp.eq.s32.totalorder %s16, 0
    %p113 = por %p111, %p112
    %s115 = sadd.s32 %s114, 1
    %p118 = scmp.eq.s32.totalorder %s10, 3
    %p119 = scmp.ne.s32.totalorder %s114, %s116
    %p120 = scmp.eq.s32.totalorder %s10, 0
    %p121 = por %p119, %p120
    %p122 = scmp.ne.s32.totalorder %s114, %s116
    %p123 = scmp.eq.s32.totalorder %s15, 3
    %p124 = por %p122, %p123
    %p125 = scmp.ne.s32.totalorder %s116, %s117
    %p126 = scmp.eq.s32.totalorder %s15, 0
    %p127 = por %p125, %p126
    %p128 = scmp.ne.s32.totalorder %s116, %s117
    %p129 = scmp.eq.s32.totalorder %s16, 3
    %p130 = por %p128, %p129
    %p132 = scmp.ne.s32.totalorder %s117, %s131
    %p133 = scmp.eq.s32.totalorder %s16, 0
    %p134 = por %p132, %p133
    %s135 = ssub.s32 %s17, %s36
    %s136 = ssub.s32 %s18, %s32
    %s137 = sor.u32 %s135, %s136
    %p138 = scmp.eq.s32.totalorder %s137, 0
    %s140 = sadd.s32 %s139, 1
    %s141 = scalar_select %p138, %s139, %s140
    %p144 = pneg %p138
    %p145 = scmp.eq.s32.totalorder %s10, 3
    %p146 = por %p144, %p145
    %p147 = scmp.ne.s32.totalorder %s139, %s142
    %p148 = scmp.eq.s32.totalorder %s10, 0
    %p149 = por %p147, %p148
    %p150 = scmp.ne.s32.totalorder %s139, %s142
    %p151 = scmp.eq.s32.totalorder %s15, 3
    %p152 = por %p150, %p151
    %p153 = scmp.ne.s32.totalorder %s142, %s143
    %p154 = scmp.eq.s32.totalorder %s15, 0
    %p155 = por %p153, %p154
    %p156 = scmp.ne.s32.totalorder %s142, %s143
    %p157 = scmp.eq.s32.totalorder %s16, 3
    %p158 = por %p156, %p157
    %p160 = scmp.ne.s32.totalorder %s143, %s159
    %p161 = scmp.eq.s32.totalorder %s16, 0
    %p162 = por %p160, %p161
    %p163 = scmp.le.s32.totalorder 1, %s10
    %p164 = scmp.lt.s32.totalorder %s10, 5
    %p165 = pnand %p163, %p164
    %p166 = pneg %p165
    // Predicated region
    $region9: #{gcn_encoder_forward.4} parent=5 // pred_check
      _
    $region10: #{gcn_encoder_forward.4} parent=5 // pred_check_branch
      %168 = sbr.rel (%p165) target = $region12
    $region11: #{gcn_encoder_forward.4} parent=5 // pred_region
      %s169 = ssub.s32 %s10, 1
      // Predicated region
      $region13: #{gcn_encoder_forward.4} parent=11 // pred_check
        %p170 = pneg %p106
      $region14: #{gcn_encoder_forward.4} parent=11 // pred_check_branch
        %172 = sbr.rel (%p170) target = $region16
      $region15: #{gcn_encoder_forward.4} parent=11 // pred_region
        _
      $region16: #{gcn_encoder_forward.4} parent=11 // pred_fallthru
        _
      // Predicated region
      $region17: #{gcn_encoder_forward.4} parent=11 // pred_check
        %p173 = pneg %p127
      $region18: #{gcn_encoder_forward.4} parent=11 // pred_check_branch
        %175 = sbr.rel (%p173) target = $region20
      $region19: #{gcn_encoder_forward.4} parent=11 // pred_region
        _
      $region20: #{gcn_encoder_forward.4} parent=11 // pred_fallthru
        _
    $region12: #{gcn_encoder_forward.4} parent=5 // pred_fallthru
      _
    %p176 = scmp.lt.s32.totalorder %s10, 4
    // Predicated region
    $region21: #{gcn_encoder_forward.4} parent=5 // pred_check
      %p177 = pneg %p176
    $region22: #{gcn_encoder_forward.4} parent=5 // pred_check_branch
      %179 = sbr.rel (%p177) target = $region24
    $region23: #{gcn_encoder_forward.4} parent=5 // pred_region
      // Predicated region
      $region25: #{gcn_encoder_forward.4} parent=23 // pred_check
        %p180 = pneg %p51
      $region26: #{gcn_encoder_forward.4} parent=23 // pred_check_branch
        %182 = sbr.rel (%p180) target = $region28
      $region27: #{gcn_encoder_forward.4} parent=23 // pred_region
        %p183 = scmp.lt.s32.totalorder %s17, 1
        %s184 = scalar_select %p183, %s17, 1
        %p185 = scmp.lt.s32.totalorder %s18, 1
        %s186 = scalar_select %p185, %s18, 1
        %s187 = smul.addr %s184, 2
        %s188 = sadd.s32 %s186, %s187
        %s189 = scalar_lea.vmem %s0, %s188
      $region28: #{gcn_encoder_forward.4} parent=23 // pred_fallthru
        _
      // Predicated region
      $region29: #{gcn_encoder_forward.4} parent=23 // pred_check
        %p190 = pneg %p79
      $region30: #{gcn_encoder_forward.4} parent=23 // pred_check_branch
        %192 = sbr.rel (%p190) target = $region32
      $region31: #{gcn_encoder_forward.4} parent=23 // pred_region
        %s193 = smul.u32 2, %s19
        %p194 = scmp.lt.s32.totalorder %s17, 1
        %s195 = scalar_select %p194, %s17, 1
        %p196 = scmp.lt.s32.totalorder %s193, 1
        %s197 = scalar_select %p196, %s193, 1
        %s198 = smul.addr %s195, 2
        %s199 = sadd.s32 %s197, %s198
        %s200 = scalar_lea.vmem %s1, %s199
        %s201 = smul.u32 2, %s19
      $region32: #{gcn_encoder_forward.4} parent=23 // pred_fallthru
        _
    $region24: #{gcn_encoder_forward.4} parent=5 // pred_fallthru
      _
    %p202 = scmp.le.s32.totalorder 1, %s10
    %p203 = scmp.lt.s32.totalorder %s10, 5
    %p204 = pnand %p202, %p203
    %p205 = pneg %p204
    // Predicated region
    $region33: #{gcn_encoder_forward.4} parent=5 // pred_check
      _
    $region34: #{gcn_encoder_forward.4} parent=5 // pred_check_branch
      %207 = sbr.rel (%p204) target = $region36
    $region35: #{gcn_encoder_forward.4} parent=5 // pred_region
      %s208 = ssub.s32 %s10, 1
      %p209 = scmp.lt.s32.totalorder %s20, 1
      %s210 = scalar_select %p209, %s20, 1
      %p211 = scmp.lt.s32.totalorder %s21, 1
      %s212 = scalar_select %p211, %s21, 1
      %s213 = smul.addr %s210, 2
      %s214 = sadd.s32 %s212, %s213
      %s215 = scalar_lea.vmem %s0, %s214
      %p216 = pneg %p57
      %p217 = pneg %p54
      %s218 = smul.u32 2, %s22
      %p219 = scmp.lt.s32.totalorder %s20, 1
      %s220 = scalar_select %p219, %s20, 1
      %p221 = scmp.lt.s32.totalorder %s218, 1
      %s222 = scalar_select %p221, %s218, 1
      %s223 = smul.addr %s220, 2
      %s224 = sadd.s32 %s222, %s223
      %s225 = scalar_lea.vmem %s1, %s224
      %p226 = pneg %p85
      %p227 = pneg %p82
      %p228 = pneg %p106
      %p229 = pneg %p103
      %p230 = pneg %p127
      %p231 = pneg %p124
      %p232 = pneg %p155
      %p233 = pneg %p152
      %p234 = scmp.lt.s32.totalorder %s20, 1
      %s235 = scalar_select %p234, %s20, 1
      %p236 = scmp.lt.s32.totalorder %s21, 1
      %s237 = scalar_select %p236, %s21, 1
      %s238 = smul.addr %s235, 2
      %s239 = sadd.s32 %s237, %s238
      %s240 = smul.addr %s239, 4
      %s241 = scalar_lea.vmem %s4, %s240
      %p242 = scmp.lt.s32.totalorder %s20, 1
      %s243 = scalar_select %p242, %s20, 1
      %p244 = scmp.lt.s32.totalorder %s21, 1
      %s245 = scalar_select %p244, %s21, 1
      %s246 = smul.addr %s243, 2
      %s247 = sadd.s32 %s245, %s246
      %s248 = scalar_lea.vmem %s0, %s247
      %s249 = smul.u32 2, %s22
      %p250 = scmp.lt.s32.totalorder %s20, 1
      %s251 = scalar_select %p250, %s20, 1
      %p252 = scmp.lt.s32.totalorder %s249, 1
      %s253 = scalar_select %p252, %s249, 1
      %s254 = smul.addr %s251, 2
      %s255 = sadd.s32 %s253, %s254
      %s256 = scalar_lea.vmem %s1, %s255
      %s257 = smul.u32 2, %s22
      %p258 = scmp.lt.s32.totalorder %s20, 1
      %s259 = scalar_select %p258, %s20, 1
      %p260 = scmp.lt.s32.totalorder %s21, 1
      %s261 = scalar_select %p260, %s21, 1
      %s262 = smul.addr %s259, 2
      %s263 = sadd.s32 %s261, %s262
      %s264 = smul.addr %s263, 4
      %s265 = scalar_lea.vmem %s4, %s264
      %v267 = vld [vmem:[%s2] sm:$0xff]
      %v268 = vld [vmem:[%s2 + $0x8] sm:$0xff]
      %v269 = vld [vmem:[%s2 + $0x10] sm:$0xff]
      %v270 = vld [vmem:[%s2 + $0x18] sm:$0xff]
      %v271 = vld [vmem:[%s2 + $0x20] sm:$0xff]
      %v272 = vld [vmem:[%s2 + $0x28] sm:$0xff]
      %v273 = vld [vmem:[%s3] sm:$0xff]
      %v274 = vld [vmem:[%s3 + $0x8] sm:$0xff]
      %v275 = vld [vmem:[%s3 + $0x10] sm:$0xff]
      %v276 = vld [vmem:[%s3 + $0x18] sm:$0xff]
      %v277 = vld [vmem:[%s3 + $0x20] sm:$0xff]
      %v278 = vld [vmem:[%s3 + $0x28] sm:$0xff]
      %v279 = vld [vmem:[%s3 + $0x30] sm:$0xff]
      %v280 = vld [vmem:[%s3 + $0x38] sm:$0xff]
      %v281 = vld [vmem:[%s3 + $0x40] sm:$0xff]
      %v282 = vld [vmem:[%s3 + $0x48] sm:$0xff]
      %v283 = vld [vmem:[%s3 + $0x50] sm:$0xff]
      %v284 = vld [vmem:[%s3 + $0x58] sm:$0xff]
      %p285 = scmp.eq.s32.totalorder %s22, 0
      // Predicated region
      $region37: #{gcn_encoder_forward.4} parent=35 // pred_check
        %p286 = pneg %p285
      $region38: #{gcn_encoder_forward.4} parent=35 // pred_check_branch
        %288 = sbr.rel (%p286) target = $region40
      $region39: #{gcn_encoder_forward.4} parent=35 // pred_region
        %289 = vst [vmem:[#allocation4] sm:$0x1] -1e+30
        %290 = vst [vmem:[#allocation5] sm:$0x1] 0.0
        %291 = vst [vmem:[#allocation6] sm:$0xff] 0.0
        %v292 = vld [vmem:[%s248] sm:$0x1]
        %294 = vset.pattern.permute.xlu0 0
        %295 = vperm.xlu0 %294, %v273
        %v296 = vpop.permute.xlu0 %295
        %v299 = vlaneseq
        %v300 = vshrl.u32 %v299, 7
        %v301 = vsub.s32 0, %v300
        %v302 = vrot.slane %v292, %v301
        %v304 = vmul.f32 %v296, %v302
        %306 = vset.pattern.permute.xlu0 0
        %307 = vperm.xlu0 %306, %v274
        %v308 = vpop.permute.xlu0 %307
        %v310 = vadd.f32 %v304, %v308
        %311 = vst [vmem:[#allocation3] sm:$0xff] %v310
        %313 = vset.pattern.permute.xlu0 0
        %314 = vperm.xlu0 %313, %v275
        %v315 = vpop.permute.xlu0 %314
        %vm317 = vcmask 64512
        %v319 = vsel %vm317, %v267, 0
        %321 = vmatprep.subr.mxu0 0.0
        %322 = vmatpush1.msra.mxu0 0.0
        %323 = vmatprep.subr.mxu0 0.0
        %324 = vmatpush1.msra.mxu0 0.0
        %325 = vmatprep.subr.mxu0 0.0
        %326 = vmatpush1.msra.mxu0 0.0
        %327 = vmatprep.subr.mxu0 0.0
        %328 = vmatpush1.msra.mxu0 0.0
        %329 = vmatprep.subr.mxu0 0.0
        %330 = vmatpush1.msra.mxu0 0.0
        %331 = vmatprep.subr.mxu0 0.0
        %332 = vmatpush1.msra.mxu0 0.0
        %333 = vmatprep.subr.mxu0 0.0
        %334 = vmatpush1.msra.mxu0 0.0
        %335 = vmatprep.subr.mxu0 0.0
        %336 = vmatpush1.msra.mxu0 0.0
        %337 = vmatprep.subr.mxu0 0.0
        %338 = vmatpush1.msra.mxu0 0.0
        %339 = vmatprep.subr.mxu0 0.0
        %340 = vmatpush1.msra.mxu0 0.0
        %341 = vmatprep.subr.mxu0 0.0
        %342 = vmatpush1.msra.mxu0 0.0
        %343 = vmatprep.subr.mxu0 0.0
        %344 = vmatpush1.msra.mxu0 0.0
        %345 = vmatprep.subr.mxu0 0.0
        %346 = vmatpush1.msra.mxu0 0.0
        %347 = vmatprep.subr.mxu0 0.0
        %348 = vmatpush1.msra.mxu0 0.0
        %349 = vmatprep.subr.mxu0 0.0
        %350 = vmatpush1.msra.mxu0 0.0
        %351 = vmatprep.subr.mxu0 0.0
        %352 = vmatpush1.msra.mxu0 %v310
        %353 = vmatprep.subr.mxu0 0.0
        %354 = vmatpush2.msra.mxu0 0.0
        %355 = vmatprep.subr.mxu0 0.0
        %356 = vmatpush2.msra.mxu0 0.0
        %357 = vmatprep.subr.mxu0 0.0
        %358 = vmatpush2.msra.mxu0 0.0
        %359 = vmatprep.subr.mxu0 0.0
        %360 = vmatpush2.msra.mxu0 0.0
        %361 = vmatprep.subr.mxu0 0.0
        %362 = vmatpush2.msra.mxu0 0.0
        %363 = vmatprep.subr.mxu0 0.0
        %364 = vmatpush2.msra.mxu0 0.0
        %365 = vmatprep.subr.mxu0 0.0
        %366 = vmatpush2.msra.mxu0 0.0
        %367 = vmatprep.subr.mxu0 0.0
        %368 = vmatpush2.msra.mxu0 0.0
        %369 = vmatprep.subr.mxu0 0.0
        %370 = vmatpush2.msra.mxu0 0.0
        %371 = vmatprep.subr.mxu0 0.0
        %372 = vmatpush2.msra.mxu0 0.0
        %373 = vmatprep.subr.mxu0 0.0
        %374 = vmatpush2.msra.mxu0 0.0
        %375 = vmatprep.subr.mxu0 0.0
        %376 = vmatpush2.msra.mxu0 0.0
        %377 = vmatprep.subr.mxu0 0.0
        %378 = vmatpush2.msra.mxu0 0.0
        %379 = vmatprep.subr.mxu0 0.0
        %380 = vmatpush2.msra.mxu0 0.0
        %381 = vmatprep.subr.mxu0 0.0
        %382 = vmatpush2.msra.mxu0 0.0
        %383 = vmatprep.subr.mxu0 0.0
        %384 = vmatpush2.msra.mxu0 0.0
        %385 = vmatprep.mubr.f32.mxu0 0.0
        %386 = vmatmul.mubr.f32.gmra.mxu0 %v319
        %v387 = vpop.f32.mrf.mxu0
        %v388 = vadd.f32 %v315, %v387
        %v389 = vpop.f32.mrf.mxu0
        %390 = vdwg.mxu0
        %391 = vst [vmem:[#allocation2] sm:$0xff] %v388
      $region40: #{gcn_encoder_forward.4} parent=35 // pred_fallthru
        _
      %v392 = vld [vmem:[%s256] sm:$0x3]
      %394 = vset.pattern.permute.xlu0 0
      %395 = vperm.xlu0 %394, %v273
      %v396 = vpop.permute.xlu0 %395
      %v399 = vlaneseq
      %v400 = vshrl.u32 %v399, 7
      %v401 = vsub.s32 0, %v400
      %v402 = vrot.slane %v392, %v401
      %v403 = vlaneseq
      %v404 = vshrl.u32 %v403, 7
      %v405 = vsub.s32 1, %v404
      %v406 = vrot.slane %v392, %v405
      %v409 = vmul.f32 %v396, %v402
      %v410 = vmul.f32 %v396, %v406
      %412 = vset.pattern.permute.xlu0 0
      %413 = vperm.xlu0 %412, %v274
      %v414 = vpop.permute.xlu0 %413
      %v416 = vadd.f32 %v409, %v414
      %v417 = vadd.f32 %v410, %v414
      %419 = vset.pattern.permute.xlu0 0
      %420 = vperm.xlu0 %419, %v276
      %v421 = vpop.permute.xlu0 %420
      %424 = vset.pattern.permute.xlu0 0
      %425 = vperm.xlu0 %424, %v277
      %v426 = vpop.permute.xlu0 %425
      %vm428 = vcmask 64512
      %v430 = vsel %vm428, %v268, 0
      %v433 = vsel %vm428, %v269, 0
      %435 = vmatprep.subr.mxu0 0.0
      %436 = vmatpush1.msra.mxu0 0.0
      %437 = vmatprep.subr.mxu0 0.0
      %438 = vmatpush1.msra.mxu0 0.0
      %439 = vmatprep.subr.mxu0 0.0
      %440 = vmatpush1.msra.mxu0 0.0
      %441 = vmatprep.subr.mxu0 0.0
      %442 = vmatpush1.msra.mxu0 0.0
      %443 = vmatprep.subr.mxu0 0.0
      %444 = vmatpush1.msra.mxu0 0.0
      %445 = vmatprep.subr.mxu0 0.0
      %446 = vmatpush1.msra.mxu0 0.0
      %447 = vmatprep.subr.mxu0 0.0
      %448 = vmatpush1.msra.mxu0 0.0
      %449 = vmatprep.subr.mxu0 0.0
      %450 = vmatpush1.msra.mxu0 0.0
      %451 = vmatprep.subr.mxu0 0.0
      %452 = vmatpush1.msra.mxu0 0.0
      %453 = vmatprep.subr.mxu0 0.0
      %454 = vmatpush1.msra.mxu0 0.0
      %455 = vmatprep.subr.mxu0 0.0
      %456 = vmatpush1.msra.mxu0 0.0
      %457 = vmatprep.subr.mxu0 0.0
      %458 = vmatpush1.msra.mxu0 0.0
      %459 = vmatprep.subr.mxu0 0.0
      %460 = vmatpush1.msra.mxu0 0.0
      %461 = vmatprep.subr.mxu0 0.0
      %462 = vmatpush1.msra.mxu0 0.0
      %463 = vmatprep.subr.mxu0 0.0
      %464 = vmatpush1.msra.mxu0 0.0
      %465 = vmatprep.subr.mxu0 %v417
      %466 = vmatpush1.msra.mxu0 %v416
      %467 = vmatprep.subr.mxu0 0.0
      %468 = vmatpush2.msra.mxu0 0.0
      %469 = vmatprep.subr.mxu0 0.0
      %470 = vmatpush2.msra.mxu0 0.0
      %471 = vmatprep.subr.mxu0 0.0
      %472 = vmatpush2.msra.mxu0 0.0
      %473 = vmatprep.subr.mxu0 0.0
      %474 = vmatpush2.msra.mxu0 0.0
      %475 = vmatprep.subr.mxu0 0.0
      %476 = vmatpush2.msra.mxu0 0.0
      %477 = vmatprep.subr.mxu0 0.0
      %478 = vmatpush2.msra.mxu0 0.0
      %479 = vmatprep.subr.mxu0 0.0
      %480 = vmatpush2.msra.mxu0 0.0
      %481 = vmatprep.subr.mxu0 0.0
      %482 = vmatpush2.msra.mxu0 0.0
      %483 = vmatprep.subr.mxu0 0.0
      %484 = vmatpush2.msra.mxu0 0.0
      %485 = vmatprep.subr.mxu0 0.0
      %486 = vmatpush2.msra.mxu0 0.0
      %487 = vmatprep.subr.mxu0 0.0
      %488 = vmatpush2.msra.mxu0 0.0
      %489 = vmatprep.subr.mxu0 0.0
      %490 = vmatpush2.msra.mxu0 0.0
      %491 = vmatprep.subr.mxu0 0.0
      %492 = vmatpush2.msra.mxu0 0.0
      %493 = vmatprep.subr.mxu0 0.0
      %494 = vmatpush2.msra.mxu0 0.0
      %495 = vmatprep.subr.mxu0 0.0
      %496 = vmatpush2.msra.mxu0 0.0
      %497 = vmatprep.subr.mxu0 0.0
      %498 = vmatpush2.msra.mxu0 0.0
      %499 = vmatprep.mubr.f32.mxu0 0.0
      %500 = vmatmul.mubr.f32.gmra.mxu0 %v430
      %v501 = vpop.f32.mrf.mxu0
      %v502 = vadd.f32 %v421, %v501
      %v503 = vpop.f32.mrf.mxu0
      %v504 = vadd.f32 %v421, %v503
      %505 = vmatprep.mubr.f32.mxu0 0.0
      %506 = vmatmul.mubr.f32.gmra.mxu0 %v433
      %v507 = vpop.f32.mrf.mxu0
      %v508 = vadd.f32 %v426, %v507
      %v509 = vpop.f32.mrf.mxu0
      %v510 = vadd.f32 %v426, %v509
      %511 = vdwg.mxu0
      %v512 = vld [vmem:[#allocation2] sm:$0xff]
      %v513 = vpack.c.bf16 %v502, %v502
      %v514 = vpack.c.bf16 %v504, %v504
      %v515 = vpack.c.bf16 %v512, %v512
      %516 = vxpose.xlu0.c.b16.start [1/8] %v513, 128
      %517 = vxpose.xlu0.c.b16.cont [2/8] 0, 128
      %518 = vxpose.xlu0.c.b16.cont [3/8] 0, 128
      %519 = vxpose.xlu0.c.b16.cont [4/8] 0, 128
      %520 = vxpose.xlu0.c.b16.cont [5/8] 0, 128
      %521 = vxpose.xlu0.c.b16.cont [6/8] 0, 128
      %522 = vxpose.xlu0.c.b16.cont [7/8] 0, 128
      %523 = vxpose.xlu0.c.b16.end [8/8] 0, 128
      %v524 = vpop.trf.xlu0
      %v525 = vpop.trf.xlu0
      %v526 = vpop.trf.xlu0
      %v527 = vpop.trf.xlu0
      %v528 = vpop.trf.xlu0
      %v529 = vpop.trf.xlu0
      %v530 = vpop.trf.xlu0
      %v531 = vpop.trf.xlu0
      %532 = vxpose.xlu0.c.b16.start [1/8] %v514, 128
      %533 = vxpose.xlu0.c.b16.cont [2/8] 0, 128
      %534 = vxpose.xlu0.c.b16.cont [3/8] 0, 128
      %535 = vxpose.xlu0.c.b16.cont [4/8] 0, 128
      %536 = vxpose.xlu0.c.b16.cont [5/8] 0, 128
      %537 = vxpose.xlu0.c.b16.cont [6/8] 0, 128
      %538 = vxpose.xlu0.c.b16.cont [7/8] 0, 128
      %539 = vxpose.xlu0.c.b16.end [8/8] 0, 128
      %v540 = vpop.trf.xlu0
      %v541 = vpop.trf.xlu0
      %v542 = vpop.trf.xlu0
      %v543 = vpop.trf.xlu0
      %v544 = vpop.trf.xlu0
      %v545 = vpop.trf.xlu0
      %v546 = vpop.trf.xlu0
      %v547 = vpop.trf.xlu0
      %v549 = vsel %vm428, %v524, 0
      %v552 = vsel %vm428, %v525, 0
      %v555 = vsel %vm428, %v526, 0
      %v558 = vsel %vm428, %v527, 0
      %v561 = vsel %vm428, %v528, 0
      %v564 = vsel %vm428, %v529, 0
      %v567 = vsel %vm428, %v530, 0
      %v570 = vsel %vm428, %v531, 0
      %v573 = vsel %vm428, %v540, 0
      %v576 = vsel %vm428, %v541, 0
      %v579 = vsel %vm428, %v542, 0
      %v582 = vsel %vm428, %v543, 0
      %v585 = vsel %vm428, %v544, 0
      %v588 = vsel %vm428, %v545, 0
      %v591 = vsel %vm428, %v546, 0
      %v594 = vsel %vm428, %v547, 0
      %vm596 = vcmask 1043456
      %v598 = vsel %vm596, %v515, 0
      %600 = vmatprep.subr.bf16.mxu0 0
      %601 = vmatpush1.bf16.msra.mxu0 0
      %602 = vmatprep.subr.bf16.mxu0 0
      %603 = vmatpush1.bf16.msra.mxu0 0
      %604 = vmatprep.subr.bf16.mxu0 0
      %605 = vmatpush1.bf16.msra.mxu0 0
      %606 = vmatprep.subr.bf16.mxu0 0
      %607 = vmatpush1.bf16.msra.mxu0 0
      %608 = vmatprep.subr.bf16.mxu0 0
      %609 = vmatpush1.bf16.msra.mxu0 0
      %610 = vmatprep.subr.bf16.mxu0 0
      %611 = vmatpush1.bf16.msra.mxu0 0
      %612 = vmatprep.subr.bf16.mxu0 0
      %613 = vmatpush1.bf16.msra.mxu0 0
      %614 = vmatprep.subr.bf16.mxu0 0
      %615 = vmatpush1.bf16.msra.mxu0 %v598
      %616 = vmatprep.subr.bf16.mxu0 0
      %617 = vmatpush2.bf16.msra.mxu0 0
      %618 = vmatprep.subr.bf16.mxu0 0
      %619 = vmatpush2.bf16.msra.mxu0 0
      %620 = vmatprep.subr.bf16.mxu0 0
      %621 = vmatpush2.bf16.msra.mxu0 0
      %622 = vmatprep.subr.bf16.mxu0 0
      %623 = vmatpush2.bf16.msra.mxu0 0
      %624 = vmatprep.subr.bf16.mxu0 0
      %625 = vmatpush2.bf16.msra.mxu0 0
      %626 = vmatprep.subr.bf16.mxu0 0
      %627 = vmatpush2.bf16.msra.mxu0 0
      %628 = vmatprep.subr.bf16.mxu0 0
      %629 = vmatpush2.bf16.msra.mxu0 0
      %630 = vmatprep.subr.bf16.mxu0 0
      %631 = vmatpush2.bf16.msra.mxu0 0
      %632 = vmatprep.mubr.bf16.mxu0 0
      %633 = vmatmul.mubr.bf16.gmra.mxu0 %v549
      %v634 = vpop.f32.mrf.mxu0
      %v635 = vadd.f32 0.0, %v634
      %v636 = vpop.f32.mrf.mxu0
      %v637 = vpop.f32.mrf.mxu0
      %v638 = vadd.f32 0.0, %v637
      %v639 = vpop.f32.mrf.mxu0
      %640 = vmatprep.mubr.bf16.mxu0 0
      %641 = vmatmul.mubr.bf16.gmra.mxu0 %v552
      %v642 = vpop.f32.mrf.mxu0
      %v643 = vadd.f32 0.0, %v642
      %v644 = vpop.f32.mrf.mxu0
      %v645 = vpop.f32.mrf.mxu0
      %v646 = vadd.f32 0.0, %v645
      %v647 = vpop.f32.mrf.mxu0
      %648 = vmatprep.mubr.bf16.mxu0 0
      %649 = vmatmul.mubr.bf16.gmra.mxu0 %v555
      %v650 = vpop.f32.mrf.mxu0
      %v651 = vadd.f32 0.0, %v650
      %v652 = vpop.f32.mrf.mxu0
      %v653 = vpop.f32.mrf.mxu0
      %v654 = vadd.f32 0.0, %v653
      %v655 = vpop.f32.mrf.mxu0
      %656 = vmatprep.mubr.bf16.mxu0 0
      %657 = vmatmul.mubr.bf16.gmra.mxu0 %v558
      %v658 = vpop.f32.mrf.mxu0
      %v659 = vadd.f32 0.0, %v658
      %v660 = vpop.f32.mrf.mxu0
      %v661 = vpop.f32.mrf.mxu0
      %v662 = vadd.f32 0.0, %v661
      %v663 = vpop.f32.mrf.mxu0
      %664 = vmatprep.mubr.bf16.mxu0 0
      %665 = vmatmul.mubr.bf16.gmra.mxu0 %v561
      %v666 = vpop.f32.mrf.mxu0
      %v667 = vadd.f32 0.0, %v666
      %v668 = vpop.f32.mrf.mxu0
      %v669 = vpop.f32.mrf.mxu0
      %v670 = vadd.f32 0.0, %v669
      %v671 = vpop.f32.mrf.mxu0
      %672 = vmatprep.mubr.bf16.mxu0 0
      %673 = vmatmul.mubr.bf16.gmra.mxu0 %v564
      %v674 = vpop.f32.mrf.mxu0
      %v675 = vadd.f32 0.0, %v674
      %v676 = vpop.f32.mrf.mxu0
      %v677 = vpop.f32.mrf.mxu0
      %v678 = vadd.f32 0.0, %v677
      %v679 = vpop.f32.mrf.mxu0
      %680 = vmatprep.mubr.bf16.mxu0 0
      %681 = vmatmul.mubr.bf16.gmra.mxu0 %v567
      %v682 = vpop.f32.mrf.mxu0
      %v683 = vadd.f32 0.0, %v682
      %v684 = vpop.f32.mrf.mxu0
      %v685 = vpop.f32.mrf.mxu0
      %v686 = vadd.f32 0.0, %v685
      %v687 = vpop.f32.mrf.mxu0
      %688 = vmatprep.mubr.bf16.mxu0 0
      %689 = vmatmul.mubr.bf16.gmra.mxu0 %v570
      %v690 = vpop.f32.mrf.mxu0
      %v691 = vadd.f32 0.0, %v690
      %v692 = vpop.f32.mrf.mxu0
      %v693 = vpop.f32.mrf.mxu0
      %v694 = vadd.f32 0.0, %v693
      %v695 = vpop.f32.mrf.mxu0
      %696 = vmatprep.mubr.bf16.mxu0 0
      %697 = vmatmul.mubr.bf16.gmra.mxu0 %v573
      %v698 = vpop.f32.mrf.mxu0
      %v699 = vadd.f32 0.0, %v698
      %v700 = vpop.f32.mrf.mxu0
      %v701 = vpop.f32.mrf.mxu0
      %v702 = vadd.f32 0.0, %v701
      %v703 = vpop.f32.mrf.mxu0
      %704 = vmatprep.mubr.bf16.mxu0 0
      %705 = vmatmul.mubr.bf16.gmra.mxu0 %v576
      %v706 = vpop.f32.mrf.mxu0
      %v707 = vadd.f32 0.0, %v706
      %v708 = vpop.f32.mrf.mxu0
      %v709 = vpop.f32.mrf.mxu0
      %v710 = vadd.f32 0.0, %v709
      %v711 = vpop.f32.mrf.mxu0
      %712 = vmatprep.mubr.bf16.mxu0 0
      %713 = vmatmul.mubr.bf16.gmra.mxu0 %v579
      %v714 = vpop.f32.mrf.mxu0
      %v715 = vadd.f32 0.0, %v714
      %v716 = vpop.f32.mrf.mxu0
      %v717 = vpop.f32.mrf.mxu0
      %v718 = vadd.f32 0.0, %v717
      %v719 = vpop.f32.mrf.mxu0
      %720 = vmatprep.mubr.bf16.mxu0 0
      %721 = vmatmul.mubr.bf16.gmra.mxu0 %v582
      %v722 = vpop.f32.mrf.mxu0
      %v723 = vadd.f32 0.0, %v722
      %v724 = vpop.f32.mrf.mxu0
      %v725 = vpop.f32.mrf.mxu0
      %v726 = vadd.f32 0.0, %v725
      %v727 = vpop.f32.mrf.mxu0
      %728 = vmatprep.mubr.bf16.mxu0 0
      %729 = vmatmul.mubr.bf16.gmra.mxu0 %v585
      %v730 = vpop.f32.mrf.mxu0
      %v731 = vadd.f32 0.0, %v730
      %v732 = vpop.f32.mrf.mxu0
      %v733 = vpop.f32.mrf.mxu0
      %v734 = vadd.f32 0.0, %v733
      %v735 = vpop.f32.mrf.mxu0
      %736 = vmatprep.mubr.bf16.mxu0 0
      %737 = vmatmul.mubr.bf16.gmra.mxu0 %v588
      %v738 = vpop.f32.mrf.mxu0
      %v739 = vadd.f32 0.0, %v738
      %v740 = vpop.f32.mrf.mxu0
      %v741 = vpop.f32.mrf.mxu0
      %v742 = vadd.f32 0.0, %v741
      %v743 = vpop.f32.mrf.mxu0
      %744 = vmatprep.mubr.bf16.mxu0 0
      %745 = vmatmul.mubr.bf16.gmra.mxu0 %v591
      %v746 = vpop.f32.mrf.mxu0
      %v747 = vadd.f32 0.0, %v746
      %v748 = vpop.f32.mrf.mxu0
      %v749 = vpop.f32.mrf.mxu0
      %v750 = vadd.f32 0.0, %v749
      %v751 = vpop.f32.mrf.mxu0
      %752 = vmatprep.mubr.bf16.mxu0 0
      %753 = vmatmul.mubr.bf16.gmra.mxu0 %v594
      %v754 = vpop.f32.mrf.mxu0
      %v755 = vadd.f32 0.0, %v754
      %v756 = vpop.f32.mrf.mxu0
      %v757 = vpop.f32.mrf.mxu0
      %v758 = vadd.f32 0.0, %v757
      %v759 = vpop.f32.mrf.mxu0
      %760 = vdwg.mxu0
      %v761 = vmul.f32 %v635, 0.35355338
      %v762 = vmul.f32 %v638, 0.35355338
      %v763 = vmul.f32 %v643, 0.35355338
      %v764 = vmul.f32 %v646, 0.35355338
      %v765 = vmul.f32 %v651, 0.35355338
      %v766 = vmul.f32 %v654, 0.35355338
      %v767 = vmul.f32 %v659, 0.35355338
      %v768 = vmul.f32 %v662, 0.35355338
      %v769 = vmul.f32 %v667, 0.35355338
      %v770 = vmul.f32 %v670, 0.35355338
      %v771 = vmul.f32 %v675, 0.35355338
      %v772 = vmul.f32 %v678, 0.35355338
      %v773 = vmul.f32 %v683, 0.35355338
      %v774 = vmul.f32 %v686, 0.35355338
      %v775 = vmul.f32 %v691, 0.35355338
      %v776 = vmul.f32 %v694, 0.35355338
      %v777 = vmul.f32 %v699, 0.35355338
      %v778 = vmul.f32 %v702, 0.35355338
      %v779 = vmul.f32 %v707, 0.35355338
      %v780 = vmul.f32 %v710, 0.35355338
      %v781 = vmul.f32 %v715, 0.35355338
      %v782 = vmul.f32 %v718, 0.35355338
      %v783 = vmul.f32 %v723, 0.35355338
      %v784 = vmul.f32 %v726, 0.35355338
      %v785 = vmul.f32 %v731, 0.35355338
      %v786 = vmul.f32 %v734, 0.35355338
      %v787 = vmul.f32 %v739, 0.35355338
      %v788 = vmul.f32 %v742, 0.35355338
      %v789 = vmul.f32 %v747, 0.35355338
      %v790 = vmul.f32 %v750, 0.35355338
      %v791 = vmul.f32 %v755, 0.35355338
      %v792 = vmul.f32 %v758, 0.35355338
      %s793 = smul.u32 %s22, 256
      %v794 = vlaneseq
      %v795 = vshrl.u32 %v794, 7
      %v796 = vadd.s32 %v795, 8
      %v797 = vadd.s32 %v795, 16
      %v798 = vadd.s32 %v795, 24
      %v799 = vadd.s32 %v795, 32
      %v800 = vadd.s32 %v795, 40
      %v801 = vadd.s32 %v795, 48
      %v802 = vadd.s32 %v795, 56
      %v803 = vadd.s32 %v795, 64
      %v804 = vadd.s32 %v795, 72
      %v805 = vadd.s32 %v795, 80
      %v806 = vadd.s32 %v795, 88
      %v807 = vadd.s32 %v795, 96
      %v808 = vadd.s32 %v795, 104
      %v809 = vadd.s32 %v795, 112
      %v810 = vadd.s32 %v795, 120
      %v811 = vadd.s32 %v795, 128
      %v812 = vadd.s32 %v795, 136
      %v813 = vadd.s32 %v795, 144
      %v814 = vadd.s32 %v795, 152
      %v815 = vadd.s32 %v795, 160
      %v816 = vadd.s32 %v795, 168
      %v817 = vadd.s32 %v795, 176
      %v818 = vadd.s32 %v795, 184
      %v819 = vadd.s32 %v795, 192
      %v820 = vadd.s32 %v795, 200
      %v821 = vadd.s32 %v795, 208
      %v822 = vadd.s32 %v795, 216
      %v823 = vadd.s32 %v795, 224
      %v824 = vadd.s32 %v795, 232
      %v825 = vadd.s32 %v795, 240
      %v826 = vadd.s32 %v795, 248
      %v827 = vstv %s793
      %v828 = vadd.s32 %v827, %v795
      %v829 = vadd.s32 %v827, %v796
      %v830 = vadd.s32 %v827, %v797
      %v831 = vadd.s32 %v827, %v798
      %v832 = vadd.s32 %v827, %v799
      %v833 = vadd.s32 %v827, %v800
      %v834 = vadd.s32 %v827, %v801
      %v835 = vadd.s32 %v827, %v802
      %v836 = vadd.s32 %v827, %v803
      %v837 = vadd.s32 %v827, %v804
      %v838 = vadd.s32 %v827, %v805
      %v839 = vadd.s32 %v827, %v806
      %v840 = vadd.s32 %v827, %v807
      %v841 = vadd.s32 %v827, %v808
      %v842 = vadd.s32 %v827, %v809
      %v843 = vadd.s32 %v827, %v810
      %v844 = vadd.s32 %v827, %v811
      %v845 = vadd.s32 %v827, %v812
      %v846 = vadd.s32 %v827, %v813
      %v847 = vadd.s32 %v827, %v814
      %v848 = vadd.s32 %v827, %v815
      %v849 = vadd.s32 %v827, %v816
      %v850 = vadd.s32 %v827, %v817
      %v851 = vadd.s32 %v827, %v818
      %v852 = vadd.s32 %v827, %v819
      %v853 = vadd.s32 %v827, %v820
      %v854 = vadd.s32 %v827, %v821
      %v855 = vadd.s32 %v827, %v822
      %v856 = vadd.s32 %v827, %v823
      %v857 = vadd.s32 %v827, %v824
      %v858 = vadd.s32 %v827, %v825
      %v859 = vadd.s32 %v827, %v826
      %vm860 = vcmp.lt.s32.totalorder %v828, 256
      %vm861 = vcmp.lt.s32.totalorder %v829, 256
      %vm862 = vcmp.lt.s32.totalorder %v830, 256
      %vm863 = vcmp.lt.s32.totalorder %v831, 256
      %vm864 = vcmp.lt.s32.totalorder %v832, 256
      %vm865 = vcmp.lt.s32.totalorder %v833, 256
      %vm866 = vcmp.lt.s32.totalorder %v834, 256
      %vm867 = vcmp.lt.s32.totalorder %v835, 256
      %vm868 = vcmp.lt.s32.totalorder %v836, 256
      %vm869 = vcmp.lt.s32.totalorder %v837, 256
      %vm870 = vcmp.lt.s32.totalorder %v838, 256
      %vm871 = vcmp.lt.s32.totalorder %v839, 256
      %vm872 = vcmp.lt.s32.totalorder %v840, 256
      %vm873 = vcmp.lt.s32.totalorder %v841, 256
      %vm874 = vcmp.lt.s32.totalorder %v842, 256
      %vm875 = vcmp.lt.s32.totalorder %v843, 256
      %vm876 = vcmp.lt.s32.totalorder %v844, 256
      %vm877 = vcmp.lt.s32.totalorder %v845, 256
      %vm878 = vcmp.lt.s32.totalorder %v846, 256
      %vm879 = vcmp.lt.s32.totalorder %v847, 256
      %vm880 = vcmp.lt.s32.totalorder %v848, 256
      %vm881 = vcmp.lt.s32.totalorder %v849, 256
      %vm882 = vcmp.lt.s32.totalorder %v850, 256
      %vm883 = vcmp.lt.s32.totalorder %v851, 256
      %vm884 = vcmp.lt.s32.totalorder %v852, 256
      %vm885 = vcmp.lt.s32.totalorder %v853, 256
      %vm886 = vcmp.lt.s32.totalorder %v854, 256
      %vm887 = vcmp.lt.s32.totalorder %v855, 256
      %vm888 = vcmp.lt.s32.totalorder %v856, 256
      %vm889 = vcmp.lt.s32.totalorder %v857, 256
      %vm890 = vcmp.lt.s32.totalorder %v858, 256
      %vm891 = vcmp.lt.s32.totalorder %v859, 256
      %v892 = vsel %vm860, %v761, -1e+30
      %v893 = vsel %vm861, %v762, -1e+30
      %v894 = vsel %vm862, %v763, -1e+30
      %v895 = vsel %vm863, %v764, -1e+30
      %v896 = vsel %vm864, %v765, -1e+30
      %v897 = vsel %vm865, %v766, -1e+30
      %v898 = vsel %vm866, %v767, -1e+30
      %v899 = vsel %vm867, %v768, -1e+30
      %v900 = vsel %vm868, %v769, -1e+30
      %v901 = vsel %vm869, %v770, -1e+30
      %v902 = vsel %vm870, %v771, -1e+30
      %v903 = vsel %vm871, %v772, -1e+30
      %v904 = vsel %vm872, %v773, -1e+30
      %v905 = vsel %vm873, %v774, -1e+30
      %v906 = vsel %vm874, %v775, -1e+30
      %v907 = vsel %vm875, %v776, -1e+30
      %v908 = vsel %vm876, %v777, -1e+30
      %v909 = vsel %vm877, %v778, -1e+30
      %v910 = vsel %vm878, %v779, -1e+30
      %v911 = vsel %vm879, %v780, -1e+30
      %v912 = vsel %vm880, %v781, -1e+30
      %v913 = vsel %vm881, %v782, -1e+30
      %v914 = vsel %vm882, %v783, -1e+30
      %v915 = vsel %vm883, %v784, -1e+30
      %v916 = vsel %vm884, %v785, -1e+30
      %v917 = vsel %vm885, %v786, -1e+30
      %v918 = vsel %vm886, %v787, -1e+30
      %v919 = vsel %vm887, %v788, -1e+30
      %v920 = vsel %vm888, %v789, -1e+30
      %v921 = vsel %vm889, %v790, -1e+30
      %v922 = vsel %vm890, %v791, -1e+30
      %v923 = vsel %vm891, %v792, -1e+30
      %v924 = vld [vmem:[#allocation4] sm:$0x1]
      %v925 = vmax.f32 %v892, %v896
      %v926 = vmax.f32 %v893, %v897
      %v927 = vmax.f32 %v894, %v898
      %v928 = vmax.f32 %v895, %v899
      %v929 = vmax.f32 %v925, %v900
      %v930 = vmax.f32 %v926, %v901
      %v931 = vmax.f32 %v927, %v902
      %v932 = vmax.f32 %v928, %v903
      %v933 = vmax.f32 %v929, %v904
      %v934 = vmax.f32 %v930, %v905
      %v935 = vmax.f32 %v931, %v906
      %v936 = vmax.f32 %v932, %v907
      %v937 = vmax.f32 %v933, %v908
      %v938 = vmax.f32 %v934, %v909
      %v939 = vmax.f32 %v935, %v910
      %v940 = vmax.f32 %v936, %v911
      %v941 = vmax.f32 %v937, %v912
      %v942 = vmax.f32 %v938, %v913
      %v943 = vmax.f32 %v939, %v914
      %v944 = vmax.f32 %v940, %v915
      %v945 = vmax.f32 %v941, %v916
      %v946 = vmax.f32 %v942, %v917
      %v947 = vmax.f32 %v943, %v918
      %v948 = vmax.f32 %v944, %v919
      %v949 = vmax.f32 %v945, %v920
      %v950 = vmax.f32 %v946, %v921
      %v951 = vmax.f32 %v947, %v922
      %v952 = vmax.f32 %v948, %v923
      %v953 = vmax.f32 %v949, %v950
      %v954 = vmax.f32 %v951, %v952
      %v955 = vmax.f32 %v953, %v954
      %v956 = vrot.slane %v955, 4
      %v957 = vmax.f32 %v955, %v956
      %v958 = vrot.slane %v957, 2
      %v959 = vmax.f32 %v957, %v958
      %v960 = vrot.slane %v959, 1
      %v961 = vmax.f32 %v959, %v960
      %v962 = vmax.f32 %v924, %v961
      %v963 = vsub.f32 %v924, %v962
      %v964 = vmul.f32 %v963, 1.442695
      %v965 = vpow.pop %v964
      %v967 = vlaneseq
      %v968 = vshrl.u32 %v967, 7
      %v969 = vsub.s32 0, %v968
      %v970 = vrot.slane %v962, %v969
      %v972 = vsub.f32 %v892, %v970
      %v973 = vsub.f32 %v893, %v970
      %v974 = vsub.f32 %v894, %v970
      %v975 = vsub.f32 %v895, %v970
      %v976 = vsub.f32 %v896, %v970
      %v977 = vsub.f32 %v897, %v970
      %v978 = vsub.f32 %v898, %v970
      %v979 = vsub.f32 %v899, %v970
      %v980 = vsub.f32 %v900, %v970
      %v981 = vsub.f32 %v901, %v970
      %v982 = vsub.f32 %v902, %v970
      %v983 = vsub.f32 %v903, %v970
      %v984 = vsub.f32 %v904, %v970
      %v985 = vsub.f32 %v905, %v970
      %v986 = vsub.f32 %v906, %v970
      %v987 = vsub.f32 %v907, %v970
      %v988 = vsub.f32 %v908, %v970
      %v989 = vsub.f32 %v909, %v970
      %v990 = vsub.f32 %v910, %v970
      %v991 = vsub.f32 %v911, %v970
      %v992 = vsub.f32 %v912, %v970
      %v993 = vsub.f32 %v913, %v970
      %v994 = vsub.f32 %v914, %v970
      %v995 = vsub.f32 %v915, %v970
      %v996 = vsub.f32 %v916, %v970
      %v997 = vsub.f32 %v917, %v970
      %v998 = vsub.f32 %v918, %v970
      %v999 = vsub.f32 %v919, %v970
      %v1000 = vsub.f32 %v920, %v970
      %v1001 = vsub.f32 %v921, %v970
      %v1002 = vsub.f32 %v922, %v970
      %v1003 = vsub.f32 %v923, %v970
      %v1004 = vmul.f32 %v972, 1.442695
      %v1005 = vpow.pop %v1004
      %v1006 = vmul.f32 %v973, 1.442695
      %v1007 = vpow.pop %v1006
      %v1008 = vmul.f32 %v974, 1.442695
      %v1009 = vpow.pop %v1008
      %v1010 = vmul.f32 %v975, 1.442695
      %v1011 = vpow.pop %v1010
      %v1012 = vmul.f32 %v976, 1.442695
      %v1013 = vpow.pop %v1012
      %v1014 = vmul.f32 %v977, 1.442695
      %v1015 = vpow.pop %v1014
      %v1016 = vmul.f32 %v978, 1.442695
      %v1017 = vpow.pop %v1016
      %v1018 = vmul.f32 %v979, 1.442695
      %v1019 = vpow.pop %v1018
      %v1020 = vmul.f32 %v980, 1.442695
      %v1021 = vpow.pop %v1020
      %v1022 = vmul.f32 %v981, 1.442695
      %v1023 = vpow.pop %v1022
      %v1024 = vmul.f32 %v982, 1.442695
      %v1025 = vpow.pop %v1024
      %v1026 = vmul.f32 %v983, 1.442695
      %v1027 = vpow.pop %v1026
      %v1028 = vmul.f32 %v984, 1.442695
      %v1029 = vpow.pop %v1028
      %v1030 = vmul.f32 %v985, 1.442695
      %v1031 = vpow.pop %v1030
      %v1032 = vmul.f32 %v986, 1.442695
      %v1033 = vpow.pop %v1032
      %v1034 = vmul.f32 %v987, 1.442695
      %v1035 = vpow.pop %v1034
      %v1036 = vmul.f32 %v988, 1.442695
      %v1037 = vpow.pop %v1036
      %v1038 = vmul.f32 %v989, 1.442695
      %v1039 = vpow.pop %v1038
      %v1040 = vmul.f32 %v990, 1.442695
      %v1041 = vpow.pop %v1040
      %v1042 = vmul.f32 %v991, 1.442695
      %v1043 = vpow.pop %v1042
      %v1044 = vmul.f32 %v992, 1.442695
      %v1045 = vpow.pop %v1044
      %v1046 = vmul.f32 %v993, 1.442695
      %v1047 = vpow.pop %v1046
      %v1048 = vmul.f32 %v994, 1.442695
      %v1049 = vpow.pop %v1048
      %v1050 = vmul.f32 %v995, 1.442695
      %v1051 = vpow.pop %v1050
      %v1052 = vmul.f32 %v996, 1.442695
      %v1053 = vpow.pop %v1052
      %v1054 = vmul.f32 %v997, 1.442695
      %v1055 = vpow.pop %v1054
      %v1056 = vmul.f32 %v998, 1.442695
      %v1057 = vpow.pop %v1056
      %v1058 = vmul.f32 %v999, 1.442695
      %v1059 = vpow.pop %v1058
      %v1060 = vmul.f32 %v1000, 1.442695
      %v1061 = vpow.pop %v1060
      %v1062 = vmul.f32 %v1001, 1.442695
      %v1063 = vpow.pop %v1062
      %v1064 = vmul.f32 %v1002, 1.442695
      %v1065 = vpow.pop %v1064
      %v1066 = vmul.f32 %v1003, 1.442695
      %v1067 = vpow.pop %v1066
      %v1068 = vld [vmem:[#allocation5] sm:$0x1]
      %v1069 = vmul.f32 %v965, %v1068
      %v1070 = vadd.f32 %v1005, %v1007
      %v1071 = vadd.f32 %v1070, %v1009
      %v1072 = vadd.f32 %v1071, %v1011
      %v1073 = vadd.f32 %v1072, %v1013
      %v1074 = vadd.f32 %v1073, %v1015
      %v1075 = vadd.f32 %v1074, %v1017
      %v1076 = vadd.f32 %v1075, %v1019
      %v1077 = vadd.f32 %v1076, %v1021
      %v1078 = vadd.f32 %v1077, %v1023
      %v1079 = vadd.f32 %v1078, %v1025
      %v1080 = vadd.f32 %v1079, %v1027
      %v1081 = vadd.f32 %v1080, %v1029
      %v1082 = vadd.f32 %v1081, %v1031
      %v1083 = vadd.f32 %v1082, %v1033
      %v1084 = vadd.f32 %v1083, %v1035
      %v1085 = vadd.f32 %v1084, %v1037
      %v1086 = vadd.f32 %v1085, %v1039
      %v1087 = vadd.f32 %v1086, %v1041
      %v1088 = vadd.f32 %v1087, %v1043
      %v1089 = vadd.f32 %v1088, %v1045
      %v1090 = vadd.f32 %v1089, %v1047
      %v1091 = vadd.f32 %v1090, %v1049
      %v1092 = vadd.f32 %v1091, %v1051
      %v1093 = vadd.f32 %v1092, %v1053
      %v1094 = vadd.f32 %v1093, %v1055
      %v1095 = vadd.f32 %v1094, %v1057
      %v1096 = vadd.f32 %v1095, %v1059
      %v1097 = vadd.f32 %v1096, %v1061
      %v1098 = vadd.f32 %v1097, %v1063
      %v1099 = vadd.f32 %v1098, %v1065
      %v1100 = vadd.f32 %v1099, %v1067
      %v1101 = vrot.slane %v1100, 4
      %v1102 = vadd.f32 %v1100, %v1101
      %v1103 = vrot.slane %v1102, 2
      %v1104 = vadd.f32 %v1102, %v1103
      %v1105 = vrot.slane %v1104, 1
      %v1106 = vadd.f32 %v1104, %v1105
      %v1107 = vadd.f32 %v1069, %v1106
      %1108 = vst [vmem:[#allocation5] sm:$0x1] %v1107
      %v1109 = vld [vmem:[#allocation6] sm:$0xff]
      %v1111 = vlaneseq
      %v1112 = vshrl.u32 %v1111, 7
      %v1113 = vsub.s32 0, %v1112
      %v1114 = vrot.slane %v965, %v1113
      %v1116 = vmul.f32 %v1114, %v1109
      %v1117 = vpack.c.bf16 %v508, %v508
      %v1118 = vpack.c.bf16 %v510, %v510
      %v1119 = vpack.c.bf16 %v1007, %v1005
      %v1120 = vpack.c.bf16 %v1011, %v1009
      %v1121 = vpack.c.bf16 %v1015, %v1013
      %v1122 = vpack.c.bf16 %v1019, %v1017
      %v1123 = vpack.c.bf16 %v1023, %v1021
      %v1124 = vpack.c.bf16 %v1027, %v1025
      %v1125 = vpack.c.bf16 %v1031, %v1029
      %v1126 = vpack.c.bf16 %v1035, %v1033
      %v1127 = vpack.c.bf16 %v1039, %v1037
      %v1128 = vpack.c.bf16 %v1043, %v1041
      %v1129 = vpack.c.bf16 %v1047, %v1045
      %v1130 = vpack.c.bf16 %v1051, %v1049
      %v1131 = vpack.c.bf16 %v1055, %v1053
      %v1132 = vpack.c.bf16 %v1059, %v1057
      %v1133 = vpack.c.bf16 %v1063, %v1061
      %v1134 = vpack.c.bf16 %v1067, %v1065
      %1135 = vmatprep.subr.bf16.mxu0 0
      %1136 = vmatpush1.bf16.msra.mxu0 %v1126
      %1137 = vmatprep.subr.bf16.mxu0 0
      %1138 = vmatpush1.bf16.msra.mxu0 %v1125
      %1139 = vmatprep.subr.bf16.mxu0 0
      %1140 = vmatpush1.bf16.msra.mxu0 %v1124
      %1141 = vmatprep.subr.bf16.mxu0 0
      %1142 = vmatpush1.bf16.msra.mxu0 %v1123
      %1143 = vmatprep.subr.bf16.mxu0 0
      %1144 = vmatpush1.bf16.msra.mxu0 %v1122
      %1145 = vmatprep.subr.bf16.mxu0 0
      %1146 = vmatpush1.bf16.msra.mxu0 %v1121
      %1147 = vmatprep.subr.bf16.mxu0 0
      %1148 = vmatpush1.bf16.msra.mxu0 %v1120
      %1149 = vmatprep.subr.bf16.mxu0 0
      %1150 = vmatpush1.bf16.msra.mxu0 %v1119
      %1151 = vmatprep.subr.bf16.mxu0 0
      %1152 = vmatpush2.bf16.msra.mxu0 %v1134
      %1153 = vmatprep.subr.bf16.mxu0 0
      %1154 = vmatpush2.bf16.msra.mxu0 %v1133
      %1155 = vmatprep.subr.bf16.mxu0 0
      %1156 = vmatpush2.bf16.msra.mxu0 %v1132
      %1157 = vmatprep.subr.bf16.mxu0 0
      %1158 = vmatpush2.bf16.msra.mxu0 %v1131
      %1159 = vmatprep.subr.bf16.mxu0 0
      %1160 = vmatpush2.bf16.msra.mxu0 %v1130
      %1161 = vmatprep.subr.bf16.mxu0 0
      %1162 = vmatpush2.bf16.msra.mxu0 %v1129
      %1163 = vmatprep.subr.bf16.mxu0 0
      %1164 = vmatpush2.bf16.msra.mxu0 %v1128
      %1165 = vmatprep.subr.bf16.mxu0 0
      %1166 = vmatpush2.bf16.msra.mxu0 %v1127
      %1167 = vmatprep.mubr.bf16.mxu0 %v1118
      %1168 = vmatmul.mubr.bf16.gmra.mxu0 %v1117
      %v1169 = vpop.f32.mrf.mxu0
      %v1170 = vadd.f32 0.0, %v1169
      %v1171 = vpop.f32.mrf.mxu0
      %v1172 = vpop.f32.mrf.mxu0
      %v1173 = vpop.f32.mrf.mxu0
      %1174 = vdwg.mxu0
      %v1175 = vadd.f32 %v1116, %v1170
      %1176 = vst [vmem:[#allocation6] sm:$0xff] %v1175
      %1177 = vst [vmem:[#allocation4] sm:$0x1] %v962
      // Predicated region
      $region41: #{gcn_encoder_forward.4} parent=35 // pred_check
        %p1178 = pneg %p285
      $region42: #{gcn_encoder_forward.4} parent=35 // pred_check_branch
        %1180 = sbr.rel (%p1178) target = $region44
      $region43: #{gcn_encoder_forward.4} parent=35 // pred_region
        %v1181 = vld [vmem:[#allocation6] sm:$0xff]
        %v1182 = vld [vmem:[#allocation5] sm:$0x1]
        %v1184 = vlaneseq
        %v1185 = vshrl.u32 %v1184, 7
        %v1186 = vsub.s32 0, %v1185
        %v1187 = vrot.slane %v1182, %v1186
        %v1189 = vrcp.pop %v1187
        %v1190 = vmul.f32 %v1181, %v1189
        %1192 = vset.pattern.permute.xlu0 0
        %1193 = vperm.xlu0 %1192, %v278
        %v1194 = vpop.permute.xlu0 %1193
        %v1197 = vsel %vm428, %v270, 0
        %1199 = vmatprep.subr.mxu0 0.0
        %1200 = vmatpush1.msra.mxu0 0.0
        %1201 = vmatprep.subr.mxu0 0.0
        %1202 = vmatpush1.msra.mxu0 0.0
        %1203 = vmatprep.subr.mxu0 0.0
        %1204 = vmatpush1.msra.mxu0 0.0
        %1205 = vmatprep.subr.mxu0 0.0
        %1206 = vmatpush1.msra.mxu0 0.0
        %1207 = vmatprep.subr.mxu0 0.0
        %1208 = vmatpush1.msra.mxu0 0.0
        %1209 = vmatprep.subr.mxu0 0.0
        %1210 = vmatpush1.msra.mxu0 0.0
        %1211 = vmatprep.subr.mxu0 0.0
        %1212 = vmatpush1.msra.mxu0 0.0
        %1213 = vmatprep.subr.mxu0 0.0
        %1214 = vmatpush1.msra.mxu0 0.0
        %1215 = vmatprep.subr.mxu0 0.0
        %1216 = vmatpush1.msra.mxu0 0.0
        %1217 = vmatprep.subr.mxu0 0.0
        %1218 = vmatpush1.msra.mxu0 0.0
        %1219 = vmatprep.subr.mxu0 0.0
        %1220 = vmatpush1.msra.mxu0 0.0
        %1221 = vmatprep.subr.mxu0 0.0
        %1222 = vmatpush1.msra.mxu0 0.0
        %1223 = vmatprep.subr.mxu0 0.0
        %1224 = vmatpush1.msra.mxu0 0.0
        %1225 = vmatprep.subr.mxu0 0.0
        %1226 = vmatpush1.msra.mxu0 0.0
        %1227 = vmatprep.subr.mxu0 0.0
        %1228 = vmatpush1.msra.mxu0 0.0
        %1229 = vmatprep.subr.mxu0 0.0
        %1230 = vmatpush1.msra.mxu0 %v1190
        %1231 = vmatprep.subr.mxu0 0.0
        %1232 = vmatpush2.msra.mxu0 0.0
        %1233 = vmatprep.subr.mxu0 0.0
        %1234 = vmatpush2.msra.mxu0 0.0
        %1235 = vmatprep.subr.mxu0 0.0
        %1236 = vmatpush2.msra.mxu0 0.0
        %1237 = vmatprep.subr.mxu0 0.0
        %1238 = vmatpush2.msra.mxu0 0.0
        %1239 = vmatprep.subr.mxu0 0.0
        %1240 = vmatpush2.msra.mxu0 0.0
        %1241 = vmatprep.subr.mxu0 0.0
        %1242 = vmatpush2.msra.mxu0 0.0
        %1243 = vmatprep.subr.mxu0 0.0
        %1244 = vmatpush2.msra.mxu0 0.0
        %1245 = vmatprep.subr.mxu0 0.0
        %1246 = vmatpush2.msra.mxu0 0.0
        %1247 = vmatprep.subr.mxu0 0.0
        %1248 = vmatpush2.msra.mxu0 0.0
        %1249 = vmatprep.subr.mxu0 0.0
        %1250 = vmatpush2.msra.mxu0 0.0
        %1251 = vmatprep.subr.mxu0 0.0
        %1252 = vmatpush2.msra.mxu0 0.0
        %1253 = vmatprep.subr.mxu0 0.0
        %1254 = vmatpush2.msra.mxu0 0.0
        %1255 = vmatprep.subr.mxu0 0.0
        %1256 = vmatpush2.msra.mxu0 0.0
        %1257 = vmatprep.subr.mxu0 0.0
        %1258 = vmatpush2.msra.mxu0 0.0
        %1259 = vmatprep.subr.mxu0 0.0
        %1260 = vmatpush2.msra.mxu0 0.0
        %1261 = vmatprep.subr.mxu0 0.0
        %1262 = vmatpush2.msra.mxu0 0.0
        %1263 = vmatprep.mubr.f32.mxu0 0.0
        %1264 = vmatmul.mubr.f32.gmra.mxu0 %v1197
        %v1265 = vpop.f32.mrf.mxu0
        %v1266 = vadd.f32 %v1194, %v1265
        %v1267 = vpop.f32.mrf.mxu0
        %1268 = vdwg.mxu0
        %v1269 = vld [vmem:[#allocation3] sm:$0xff]
        %v1270 = vadd.f32 %v1266, %v1269
        %v1271 = vrot.slane %v1270, 4
        %v1272 = vadd.f32 %v1270, %v1271
        %v1273 = vrot.slane %v1272, 2
        %v1274 = vadd.f32 %v1272, %v1273
        %v1275 = vrot.slane %v1274, 1
        %v1276 = vadd.f32 %v1274, %v1275
        %v1277 = vrcp.pop 8.0
        %v1278 = vmul.f32 %v1276, %v1277
        %v1279 = vsub.f32 %v1270, %v1278
        %v1280 = vmul.f32 %v1279, %v1279
        %v1281 = vrot.slane %v1280, 4
        %v1282 = vadd.f32 %v1280, %v1281
        %v1283 = vrot.slane %v1282, 2
        %v1284 = vadd.f32 %v1282, %v1283
        %v1285 = vrot.slane %v1284, 1
        %v1286 = vadd.f32 %v1284, %v1285
        %v1287 = vmul.f32 %v1286, %v1277
        %v1288 = vadd.f32 %v1287, 1e-05
        %v1289 = vrsqrt.pop %v1288
        %v1290 = vmul.f32 %v1279, %v1289
        %1292 = vset.pattern.permute.xlu0 0
        %1293 = vperm.xlu0 %1292, %v279
        %v1294 = vpop.permute.xlu0 %1293
        %v1296 = vmul.f32 %v1290, %v1294
        %1298 = vset.pattern.permute.xlu0 0
        %1299 = vperm.xlu0 %1298, %v280
        %v1300 = vpop.permute.xlu0 %1299
        %v1302 = vadd.f32 %v1296, %v1300
        %1304 = vset.pattern.permute.xlu0 0
        %1305 = vperm.xlu0 %1304, %v281
        %v1306 = vpop.permute.xlu0 %1305
        %v1309 = vsel %vm428, %v271, 0
        %1311 = vmatprep.subr.mxu0 0.0
        %1312 = vmatpush1.msra.mxu0 0.0
        %1313 = vmatprep.subr.mxu0 0.0
        %1314 = vmatpush1.msra.mxu0 0.0
        %1315 = vmatprep.subr.mxu0 0.0
        %1316 = vmatpush1.msra.mxu0 0.0
        %1317 = vmatprep.subr.mxu0 0.0
        %1318 = vmatpush1.msra.mxu0 0.0
        %1319 = vmatprep.subr.mxu0 0.0
        %1320 = vmatpush1.msra.mxu0 0.0
        %1321 = vmatprep.subr.mxu0 0.0
        %1322 = vmatpush1.msra.mxu0 0.0
        %1323 = vmatprep.subr.mxu0 0.0
        %1324 = vmatpush1.msra.mxu0 0.0
        %1325 = vmatprep.subr.mxu0 0.0
        %1326 = vmatpush1.msra.mxu0 0.0
        %1327 = vmatprep.subr.mxu0 0.0
        %1328 = vmatpush1.msra.mxu0 0.0
        %1329 = vmatprep.subr.mxu0 0.0
        %1330 = vmatpush1.msra.mxu0 0.0
        %1331 = vmatprep.subr.mxu0 0.0
        %1332 = vmatpush1.msra.mxu0 0.0
        %1333 = vmatprep.subr.mxu0 0.0
        %1334 = vmatpush1.msra.mxu0 0.0
        %1335 = vmatprep.subr.mxu0 0.0
        %1336 = vmatpush1.msra.mxu0 0.0
        %1337 = vmatprep.subr.mxu0 0.0
        %1338 = vmatpush1.msra.mxu0 0.0
        %1339 = vmatprep.subr.mxu0 0.0
        %1340 = vmatpush1.msra.mxu0 0.0
        %1341 = vmatprep.subr.mxu0 0.0
        %1342 = vmatpush1.msra.mxu0 %v1302
        %1343 = vmatprep.subr.mxu0 0.0
        %1344 = vmatpush2.msra.mxu0 0.0
        %1345 = vmatprep.subr.mxu0 0.0
        %1346 = vmatpush2.msra.mxu0 0.0
        %1347 = vmatprep.subr.mxu0 0.0
        %1348 = vmatpush2.msra.mxu0 0.0
        %1349 = vmatprep.subr.mxu0 0.0
        %1350 = vmatpush2.msra.mxu0 0.0
        %1351 = vmatprep.subr.mxu0 0.0
        %1352 = vmatpush2.msra.mxu0 0.0
        %1353 = vmatprep.subr.mxu0 0.0
        %1354 = vmatpush2.msra.mxu0 0.0
        %1355 = vmatprep.subr.mxu0 0.0
        %1356 = vmatpush2.msra.mxu0 0.0
        %1357 = vmatprep.subr.mxu0 0.0
        %1358 = vmatpush2.msra.mxu0 0.0
        %1359 = vmatprep.subr.mxu0 0.0
        %1360 = vmatpush2.msra.mxu0 0.0
        %1361 = vmatprep.subr.mxu0 0.0
        %1362 = vmatpush2.msra.mxu0 0.0
        %1363 = vmatprep.subr.mxu0 0.0
        %1364 = vmatpush2.msra.mxu0 0.0
        %1365 = vmatprep.subr.mxu0 0.0
        %1366 = vmatpush2.msra.mxu0 0.0
        %1367 = vmatprep.subr.mxu0 0.0
        %1368 = vmatpush2.msra.mxu0 0.0
        %1369 = vmatprep.subr.mxu0 0.0
        %1370 = vmatpush2.msra.mxu0 0.0
        %1371 = vmatprep.subr.mxu0 0.0
        %1372 = vmatpush2.msra.mxu0 0.0
        %1373 = vmatprep.subr.mxu0 0.0
        %1374 = vmatpush2.msra.mxu0 0.0
        %1375 = vmatprep.mubr.f32.mxu0 0.0
        %1376 = vmatmul.mubr.f32.gmra.mxu0 %v1309
        %v1377 = vpop.f32.mrf.mxu0
        %v1378 = vadd.f32 %v1306, %v1377
        %v1379 = vpop.f32.mrf.mxu0
        %1380 = vdwg.mxu0
        %v1381 = vmax.f32 %v1378, 0.0
        %1383 = vset.pattern.permute.xlu0 0
        %1384 = vperm.xlu0 %1383, %v282
        %v1385 = vpop.permute.xlu0 %1384
        %v1388 = vsel %vm428, %v272, 0
        %1390 = vmatprep.subr.mxu0 0.0
        %1391 = vmatpush1.msra.mxu0 0.0
        %1392 = vmatprep.subr.mxu0 0.0
        %1393 = vmatpush1.msra.mxu0 0.0
        %1394 = vmatprep.subr.mxu0 0.0
        %1395 = vmatpush1.msra.mxu0 0.0
        %1396 = vmatprep.subr.mxu0 0.0
        %1397 = vmatpush1.msra.mxu0 0.0
        %1398 = vmatprep.subr.mxu0 0.0
        %1399 = vmatpush1.msra.mxu0 0.0
        %1400 = vmatprep.subr.mxu0 0.0
        %1401 = vmatpush1.msra.mxu0 0.0
        %1402 = vmatprep.subr.mxu0 0.0
        %1403 = vmatpush1.msra.mxu0 0.0
        %1404 = vmatprep.subr.mxu0 0.0
        %1405 = vmatpush1.msra.mxu0 0.0
        %1406 = vmatprep.subr.mxu0 0.0
        %1407 = vmatpush1.msra.mxu0 0.0
        %1408 = vmatprep.subr.mxu0 0.0
        %1409 = vmatpush1.msra.mxu0 0.0
        %1410 = vmatprep.subr.mxu0 0.0
        %1411 = vmatpush1.msra.mxu0 0.0
        %1412 = vmatprep.subr.mxu0 0.0
        %1413 = vmatpush1.msra.mxu0 0.0
        %1414 = vmatprep.subr.mxu0 0.0
        %1415 = vmatpush1.msra.mxu0 0.0
        %1416 = vmatprep.subr.mxu0 0.0
        %1417 = vmatpush1.msra.mxu0 0.0
        %1418 = vmatprep.subr.mxu0 0.0
        %1419 = vmatpush1.msra.mxu0 0.0
        %1420 = vmatprep.subr.mxu0 0.0
        %1421 = vmatpush1.msra.mxu0 %v1381
        %1422 = vmatprep.subr.mxu0 0.0
        %1423 = vmatpush2.msra.mxu0 0.0
        %1424 = vmatprep.subr.mxu0 0.0
        %1425 = vmatpush2.msra.mxu0 0.0
        %1426 = vmatprep.subr.mxu0 0.0
        %1427 = vmatpush2.msra.mxu0 0.0
        %1428 = vmatprep.subr.mxu0 0.0
        %1429 = vmatpush2.msra.mxu0 0.0
        %1430 = vmatprep.subr.mxu0 0.0
        %1431 = vmatpush2.msra.mxu0 0.0
        %1432 = vmatprep.subr.mxu0 0.0
        %1433 = vmatpush2.msra.mxu0 0.0
        %1434 = vmatprep.subr.mxu0 0.0
        %1435 = vmatpush2.msra.mxu0 0.0
        %1436 = vmatprep.subr.mxu0 0.0
        %1437 = vmatpush2.msra.mxu0 0.0
        %1438 = vmatprep.subr.mxu0 0.0
        %1439 = vmatpush2.msra.mxu0 0.0
        %1440 = vmatprep.subr.mxu0 0.0
        %1441 = vmatpush2.msra.mxu0 0.0
        %1442 = vmatprep.subr.mxu0 0.0
        %1443 = vmatpush2.msra.mxu0 0.0
        %1444 = vmatprep.subr.mxu0 0.0
        %1445 = vmatpush2.msra.mxu0 0.0
        %1446 = vmatprep.subr.mxu0 0.0
        %1447 = vmatpush2.msra.mxu0 0.0
        %1448 = vmatprep.subr.mxu0 0.0
        %1449 = vmatpush2.msra.mxu0 0.0
        %1450 = vmatprep.subr.mxu0 0.0
        %1451 = vmatpush2.msra.mxu0 0.0
        %1452 = vmatprep.subr.mxu0 0.0
        %1453 = vmatpush2.msra.mxu0 0.0
        %1454 = vmatprep.mubr.f32.mxu0 0.0
        %1455 = vmatmul.mubr.f32.gmra.mxu0 %v1388
        %v1456 = vpop.f32.mrf.mxu0
        %v1457 = vadd.f32 %v1385, %v1456
        %v1458 = vpop.f32.mrf.mxu0
        %1459 = vdwg.mxu0
        %v1460 = vadd.f32 %v1457, %v1302
        %v1461 = vrot.slane %v1460, 4
        %v1462 = vadd.f32 %v1460, %v1461
        %v1463 = vrot.slane %v1462, 2
        %v1464 = vadd.f32 %v1462, %v1463
        %v1465 = vrot.slane %v1464, 1
        %v1466 = vadd.f32 %v1464, %v1465
        %v1467 = vmul.f32 %v1466, %v1277
        %v1468 = vsub.f32 %v1460, %v1467
        %v1469 = vmul.f32 %v1468, %v1468
        %v1470 = vrot.slane %v1469, 4
        %v1471 = vadd.f32 %v1469, %v1470
        %v1472 = vrot.slane %v1471, 2
        %v1473 = vadd.f32 %v1471, %v1472
        %v1474 = vrot.slane %v1473, 1
        %v1475 = vadd.f32 %v1473, %v1474
        %v1476 = vmul.f32 %v1475, %v1277
        %v1477 = vadd.f32 %v1476, 1e-05
        %v1478 = vrsqrt.pop %v1477
        %v1479 = vmul.f32 %v1468, %v1478
        %1481 = vset.pattern.permute.xlu0 0
        %1482 = vperm.xlu0 %1481, %v283
        %v1483 = vpop.permute.xlu0 %1482
        %v1485 = vmul.f32 %v1479, %v1483
        %1487 = vset.pattern.permute.xlu0 0
        %1488 = vperm.xlu0 %1487, %v284
        %v1489 = vpop.permute.xlu0 %1488
        %v1491 = vadd.f32 %v1485, %v1489
        %v1492 = vpack.c.bf16 %v1491, %v1491
        %1493 = vst [vmem:[%s265] sm:$0xf] %v1492
      $region44: #{gcn_encoder_forward.4} parent=35 // pred_fallthru
        _
      %p1494 = scmp.lt.s32.totalorder %s20, 1
      %s1495 = scalar_select %p1494, %s20, 1
      %p1496 = scmp.lt.s32.totalorder %s21, 1
      %s1497 = scalar_select %p1496, %s21, 1
      %s1498 = smul.addr %s1495, 2
      %s1499 = sadd.s32 %s1497, %s1498
      %s1500 = smul.addr %s1499, 4
      %s1501 = scalar_lea.vmem %s4, %s1500
      // Predicated region
      $region45: #{gcn_encoder_forward.4} parent=35 // pred_check
        %p1502 = pneg %p152
      $region46: #{gcn_encoder_forward.4} parent=35 // pred_check_branch
        %1504 = sbr.rel (%p1502) target = $region48
      $region47: #{gcn_encoder_forward.4} parent=35 // pred_region
        _
      $region48: #{gcn_encoder_forward.4} parent=35 // pred_fallthru
        _
    $region36: #{gcn_encoder_forward.4} parent=5 // pred_fallthru
      _
    %p1505 = scmp.le.s32.totalorder 2, %s10
    // Predicated region
    $region49: #{gcn_encoder_forward.4} parent=5 // pred_check
      %p1506 = pneg %p1505
    $region50: #{gcn_encoder_forward.4} parent=5 // pred_check_branch
      %1508 = sbr.rel (%p1506) target = $region52
    $region51: #{gcn_encoder_forward.4} parent=5 // pred_region
      %s1509 = ssub.s32 %s10, 2
      // Predicated region
      $region53: #{gcn_encoder_forward.4} parent=51 // pred_check
        %p1510 = pneg %p158
      $region54: #{gcn_encoder_forward.4} parent=51 // pred_check_branch
        %1512 = sbr.rel (%p1510) target = $region56
      $region55: #{gcn_encoder_forward.4} parent=51 // pred_region
        %p1513 = scmp.lt.s32.totalorder %s23, 1
        %s1514 = scalar_select %p1513, %s23, 1
        %p1515 = scmp.lt.s32.totalorder %s24, 1
        %s1516 = scalar_select %p1515, %s24, 1
        %s1517 = smul.addr %s1514, 2
        %s1518 = sadd.s32 %s1516, %s1517
        %s1519 = smul.addr %s1518, 4
        %s1520 = scalar_lea.vmem %s4, %s1519
      $region56: #{gcn_encoder_forward.4} parent=51 // pred_fallthru
        _
    $region52: #{gcn_encoder_forward.4} parent=5 // pred_fallthru
      _
  $region6: #{gcn_encoder_forward.4} parent=0 // loop_footer
    %s14 = sadd.s32 1, %s10
  $region7: #{gcn_encoder_forward.4} parent=0 // loop_footer_branch
    %9 = sbr.rel target = $region3
  $region8: #{gcn_encoder_forward.4} parent=0 // loop_exit
    _

// kernel: gcn_encoder_forward.7
$region0: #{gcn_encoder_forward.7}
  #allocation0 [shape = 'u32[]', space=smem, size = 0x4, offset = 0x4, fixed_abs, tag = 'smem constant byte address 0x4 - core index']
  #allocation1 [shape = 'u32[144,128]{1,0:T(1,128)}', space=vmem, size = 0x12000, scoped, tag = 'internal scratch']
  %s0 = inlined_call_operand.vmem [shape: bf16[2,4096], index: 0, kind: input, shape index: {}]
  %s1 = inlined_call_operand.vmem [shape: bf16[4096,32], index: 1, kind: input, shape index: {}]
  %s2 = inlined_call_operand.vmem [shape: f32[1,32], index: 2, kind: input, shape index: {}]
  %s3 = inlined_call_operand.hbm [shape: f32[2,32], index: 3, kind: output, shape index: {}]
  %s4 = sld [smem:[#allocation0]]
  $region22: #{gcn_encoder_forward.7} parent=0
    _
  %s6 = ssub.s32 1, %s4
  %s7 = scalar_select 0, %s6, %s4
  $region1: #{gcn_encoder_forward.7} parent=0
    #allocation2 [shape = 'u8[1024]{0}', space=vmem, size = 0x400, scoped, tag = 'output window, operand 0, single buffered']
    #allocation3 [shape = 's32[1]{0}', space=sflag, size = 0x4, scoped, tag = 'scoped memory for gcn_encoder_forward.7']
    %8 = vsyncpa [#allocation3], 0
    // Predicated region
    $region2: #{gcn_encoder_forward.7} parent=1 // pred_check
      _
    $region3: #{gcn_encoder_forward.7} parent=1 // pred_check_branch
      %10 = sbr.rel (0) target = $region5
    $region4: #{gcn_encoder_forward.7} parent=1 // pred_region
      _
    $region5: #{gcn_encoder_forward.7} parent=1 // pred_fallthru
      _
    // Predicated region
    $region6: #{gcn_encoder_forward.7} parent=1 // pred_check
      _
    $region7: #{gcn_encoder_forward.7} parent=1 // pred_check_branch
      %12 = sbr.rel (0) target = $region9
    $region8: #{gcn_encoder_forward.7} parent=1 // pred_region
      _
    $region9: #{gcn_encoder_forward.7} parent=1 // pred_fallthru
      _
    // Predicated region
    $region10: #{gcn_encoder_forward.7} parent=1 // pred_check
      _
    $region11: #{gcn_encoder_forward.7} parent=1 // pred_check_branch
      %14 = sbr.rel (0) target = $region13
    $region12: #{gcn_encoder_forward.7} parent=1 // pred_region
      _
    $region13: #{gcn_encoder_forward.7} parent=1 // pred_fallthru
      _
    %v16 = vld [vmem:[%s0] sm:$0xff]
    %v17 = vld [vmem:[%s0 + $0x8] sm:$0xff]
    %v18 = vld [vmem:[%s0 + $0x10] sm:$0xff]
    %v19 = vld [vmem:[%s0 + $0x18] sm:$0xff]
    %v20 = vld [vmem:[%s1] sm:$0xf]
    %v21 = vld [vmem:[%s1 + $0x4] sm:$0xf]
    %v22 = vld [vmem:[%s1 + $0x8] sm:$0xf]
    %v23 = vld [vmem:[%s1 + $0xc] sm:$0xf]
    %v24 = vld [vmem:[%s1 + $0x10] sm:$0xf]
    %v25 = vld [vmem:[%s1 + $0x14] sm:$0xf]
    %v26 = vld [vmem:[%s1 + $0x18] sm:$0xf]
    %v27 = vld [vmem:[%s1 + $0x1c] sm:$0xf]
    %v28 = vld [vmem:[%s1 + $0x20] sm:$0xf]
    %v29 = vld [vmem:[%s1 + $0x24] sm:$0xf]
    %v30 = vld [vmem:[%s1 + $0x28] sm:$0xf]
    %v31 = vld [vmem:[%s1 + $0x2c] sm:$0xf]
    %v32 = vld [vmem:[%s1 + $0x30] sm:$0xf]
    %v33 = vld [vmem:[%s1 + $0x34] sm:$0xf]
    %v34 = vld [vmem:[%s1 + $0x38] sm:$0xf]
    %v35 = vld [vmem:[%s1 + $0x3c] sm:$0xf]
    %v36 = vld [vmem:[%s1 + $0x40] sm:$0xf]
    %v37 = vld [vmem:[%s1 + $0x44] sm:$0xf]
    %v38 = vld [vmem:[%s1 + $0x48] sm:$0xf]
    %v39 = vld [vmem:[%s1 + $0x4c] sm:$0xf]
    %v40 = vld [vmem:[%s1 + $0x50] sm:$0xf]
    %v41 = vld [vmem:[%s1 + $0x54] sm:$0xf]
    %v42 = vld [vmem:[%s1 + $0x58] sm:$0xf]
    %v43 = vld [vmem:[%s1 + $0x5c] sm:$0xf]
    %v44 = vld [vmem:[%s1 + $0x60] sm:$0xf]
    %v45 = vld [vmem:[%s1 + $0x64] sm:$0xf]
    %v46 = vld [vmem:[%s1 + $0x68] sm:$0xf]
    %v47 = vld [vmem:[%s1 + $0x6c] sm:$0xf]
    %v48 = vld [vmem:[%s1 + $0x70] sm:$0xf]
    %v49 = vld [vmem:[%s1 + $0x74] sm:$0xf]
    %v50 = vld [vmem:[%s1 + $0x78] sm:$0xf]
    %v51 = vld [vmem:[%s1 + $0x7c] sm:$0xf]
    %v52 = vld [vmem:[%s1 + $0x80] sm:$0xf]
    %v53 = vld [vmem:[%s1 + $0x84] sm:$0xf]
    %v54 = vld [vmem:[%s1 + $0x88] sm:$0xf]
    %v55 = vld [vmem:[%s1 + $0x8c] sm:$0xf]
    %v56 = vld [vmem:[%s1 + $0x90] sm:$0xf]
    %v57 = vld [vmem:[%s1 + $0x94] sm:$0xf]
    %v58 = vld [vmem:[%s1 + $0x98] sm:$0xf]
    %v59 = vld [vmem:[%s1 + $0x9c] sm:$0xf]
    %v60 = vld [vmem:[%s1 + $0xa0] sm:$0xf]
    %v61 = vld [vmem:[%s1 + $0xa4] sm:$0xf]
    %v62 = vld [vmem:[%s1 + $0xa8] sm:$0xf]
    %v63 = vld [vmem:[%s1 + $0xac] sm:$0xf]
    %v64 = vld [vmem:[%s1 + $0xb0] sm:$0xf]
    %v65 = vld [vmem:[%s1 + $0xb4] sm:$0xf]
    %v66 = vld [vmem:[%s1 + $0xb8] sm:$0xf]
    %v67 = vld [vmem:[%s1 + $0xbc] sm:$0xf]
    %v68 = vld [vmem:[%s1 + $0xc0] sm:$0xf]
    %v69 = vld [vmem:[%s1 + $0xc4] sm:$0xf]
    %v70 = vld [vmem:[%s1 + $0xc8] sm:$0xf]
    %v71 = vld [vmem:[%s1 + $0xcc] sm:$0xf]
    %v72 = vld [vmem:[%s1 + $0xd0] sm:$0xf]
    %v73 = vld [vmem:[%s1 + $0xd4] sm:$0xf]
    %v74 = vld [vmem:[%s1 + $0xd8] sm:$0xf]
    %v75 = vld [vmem:[%s1 + $0xdc] sm:$0xf]
    %v76 = vld [vmem:[%s1 + $0xe0] sm:$0xf]
    %v77 = vld [vmem:[%s1 + $0xe4] sm:$0xf]
    %v78 = vld [vmem:[%s1 + $0xe8] sm:$0xf]
    %v79 = vld [vmem:[%s1 + $0xec] sm:$0xf]
    %v80 = vld [vmem:[%s1 + $0xf0] sm:$0xf]
    %v81 = vld [vmem:[%s1 + $0xf4] sm:$0xf]
    %v82 = vld [vmem:[%s1 + $0xf8] sm:$0xf]
    %v83 = vld [vmem:[%s1 + $0xfc] sm:$0xf]
    %v84 = vld [vmem:[%s1 + $0x100] sm:$0xf]
    %v85 = vld [vmem:[%s1 + $0x104] sm:$0xf]
    %v86 = vld [vmem:[%s1 + $0x108] sm:$0xf]
    %v87 = vld [vmem:[%s1 + $0x10c] sm:$0xf]
    %v88 = vld [vmem:[%s1 + $0x110] sm:$0xf]
    %v89 = vld [vmem:[%s1 + $0x114] sm:$0xf]
    %v90 = vld [vmem:[%s1 + $0x118] sm:$0xf]
    %v91 = vld [vmem:[%s1 + $0x11c] sm:$0xf]
    %v92 = vld [vmem:[%s1 + $0x120] sm:$0xf]
    %v93 = vld [vmem:[%s1 + $0x124] sm:$0xf]
    %v94 = vld [vmem:[%s1 + $0x128] sm:$0xf]
    %v95 = vld [vmem:[%s1 + $0x12c] sm:$0xf]
    %v96 = vld [vmem:[%s1 + $0x130] sm:$0xf]
    %v97 = vld [vmem:[%s1 + $0x134] sm:$0xf]
    %v98 = vld [vmem:[%s1 + $0x138] sm:$0xf]
    %v99 = vld [vmem:[%s1 + $0x13c] sm:$0xf]
    %v100 = vld [vmem:[%s1 + $0x140] sm:$0xf]
    %v101 = vld [vmem:[%s1 + $0x144] sm:$0xf]
    %v102 = vld [vmem:[%s1 + $0x148] sm:$0xf]
    %v103 = vld [vmem:[%s1 + $0x14c] sm:$0xf]
    %v104 = vld [vmem:[%s1 + $0x150] sm:$0xf]
    %v105 = vld [vmem:[%s1 + $0x154] sm:$0xf]
    %v106 = vld [vmem:[%s1 + $0x158] sm:$0xf]
    %v107 = vld [vmem:[%s1 + $0x15c] sm:$0xf]
    %v108 = vld [vmem:[%s1 + $0x160] sm:$0xf]
    %v109 = vld [vmem:[%s1 + $0x164] sm:$0xf]
    %v110 = vld [vmem:[%s1 + $0x168] sm:$0xf]
    %v111 = vld [vmem:[%s1 + $0x16c] sm:$0xf]
    %v112 = vld [vmem:[%s1 + $0x170] sm:$0xf]
    %v113 = vld [vmem:[%s1 + $0x174] sm:$0xf]
    %v114 = vld [vmem:[%s1 + $0x178] sm:$0xf]
    %v115 = vld [vmem:[%s1 + $0x17c] sm:$0xf]
    %v116 = vld [vmem:[%s1 + $0x180] sm:$0xf]
    %v117 = vld [vmem:[%s1 + $0x184] sm:$0xf]
    %v118 = vld [vmem:[%s1 + $0x188] sm:$0xf]
    %v119 = vld [vmem:[%s1 + $0x18c] sm:$0xf]
    %v120 = vld [vmem:[%s1 + $0x190] sm:$0xf]
    %v121 = vld [vmem:[%s1 + $0x194] sm:$0xf]
    %v122 = vld [vmem:[%s1 + $0x198] sm:$0xf]
    %v123 = vld [vmem:[%s1 + $0x19c] sm:$0xf]
    %v124 = vld [vmem:[%s1 + $0x1a0] sm:$0xf]
    %v125 = vld [vmem:[%s1 + $0x1a4] sm:$0xf]
    %v126 = vld [vmem:[%s1 + $0x1a8] sm:$0xf]
    %v127 = vld [vmem:[%s1 + $0x1ac] sm:$0xf]
    %v128 = vld [vmem:[%s1 + $0x1b0] sm:$0xf]
    %v129 = vld [vmem:[%s1 + $0x1b4] sm:$0xf]
    %v130 = vld [vmem:[%s1 + $0x1b8] sm:$0xf]
    %v131 = vld [vmem:[%s1 + $0x1bc] sm:$0xf]
    %v132 = vld [vmem:[%s1 + $0x1c0] sm:$0xf]
    %v133 = vld [vmem:[%s1 + $0x1c4] sm:$0xf]
    %v134 = vld [vmem:[%s1 + $0x1c8] sm:$0xf]
    %v135 = vld [vmem:[%s1 + $0x1cc] sm:$0xf]
    %v136 = vld [vmem:[%s1 + $0x1d0] sm:$0xf]
    %v137 = vld [vmem:[%s1 + $0x1d4] sm:$0xf]
    %v138 = vld [vmem:[%s1 + $0x1d8] sm:$0xf]
    %v139 = vld [vmem:[%s1 + $0x1dc] sm:$0xf]
    %v140 = vld [vmem:[%s1 + $0x1e0] sm:$0xf]
    %v141 = vld [vmem:[%s1 + $0x1e4] sm:$0xf]
    %v142 = vld [vmem:[%s1 + $0x1e8] sm:$0xf]
    %v143 = vld [vmem:[%s1 + $0x1ec] sm:$0xf]
    %v144 = vld [vmem:[%s1 + $0x1f0] sm:$0xf]
    %v145 = vld [vmem:[%s1 + $0x1f4] sm:$0xf]
    %v146 = vld [vmem:[%s1 + $0x1f8] sm:$0xf]
    %v147 = vld [vmem:[%s1 + $0x1fc] sm:$0xf]
    %v148 = vld [vmem:[%s1 + $0x200] sm:$0xf]
    %v149 = vld [vmem:[%s1 + $0x204] sm:$0xf]
    %v150 = vld [vmem:[%s1 + $0x208] sm:$0xf]
    %v151 = vld [vmem:[%s1 + $0x20c] sm:$0xf]
    %v152 = vld [vmem:[%s1 + $0x210] sm:$0xf]
    %v153 = vld [vmem:[%s1 + $0x214] sm:$0xf]
    %v154 = vld [vmem:[%s1 + $0x218] sm:$0xf]
    %v155 = vld [vmem:[%s1 + $0x21c] sm:$0xf]
    %v156 = vld [vmem:[%s1 + $0x220] sm:$0xf]
    %v157 = vld [vmem:[%s1 + $0x224] sm:$0xf]
    %v158 = vld [vmem:[%s1 + $0x228] sm:$0xf]
    %v159 = vld [vmem:[%s1 + $0x22c] sm:$0xf]
    %v160 = vld [vmem:[%s1 + $0x230] sm:$0xf]
    %v161 = vld [vmem:[%s1 + $0x234] sm:$0xf]
    %v162 = vld [vmem:[%s1 + $0x238] sm:$0xf]
    %v163 = vld [vmem:[%s1 + $0x23c] sm:$0xf]
    %v164 = vld [vmem:[%s1 + $0x240] sm:$0xf]
    %v165 = vld [vmem:[%s1 + $0x244] sm:$0xf]
    %v166 = vld [vmem:[%s1 + $0x248] sm:$0xf]
    %v167 = vld [vmem:[%s1 + $0x24c] sm:$0xf]
    %v168 = vld [vmem:[%s1 + $0x250] sm:$0xf]
    %v169 = vld [vmem:[%s1 + $0x254] sm:$0xf]
    %v170 = vld [vmem:[%s1 + $0x258] sm:$0xf]
    %v171 = vld [vmem:[%s1 + $0x25c] sm:$0xf]
    %v172 = vld [vmem:[%s1 + $0x260] sm:$0xf]
    %v173 = vld [vmem:[%s1 + $0x264] sm:$0xf]
    %v174 = vld [vmem:[%s1 + $0x268] sm:$0xf]
    %v175 = vld [vmem:[%s1 + $0x26c] sm:$0xf]
    %v176 = vld [vmem:[%s1 + $0x270] sm:$0xf]
    %v177 = vld [vmem:[%s1 + $0x274] sm:$0xf]
    %v178 = vld [vmem:[%s1 + $0x278] sm:$0xf]
    %v179 = vld [vmem:[%s1 + $0x27c] sm:$0xf]
    %v180 = vld [vmem:[%s1 + $0x280] sm:$0xf]
    %v181 = vld [vmem:[%s1 + $0x284] sm:$0xf]
    %v182 = vld [vmem:[%s1 + $0x288] sm:$0xf]
    %v183 = vld [vmem:[%s1 + $0x28c] sm:$0xf]
    %v184 = vld [vmem:[%s1 + $0x290] sm:$0xf]
    %v185 = vld [vmem:[%s1 + $0x294] sm:$0xf]
    %v186 = vld [vmem:[%s1 + $0x298] sm:$0xf]
    %v187 = vld [vmem:[%s1 + $0x29c] sm:$0xf]
    %v188 = vld [vmem:[%s1 + $0x2a0] sm:$0xf]
    %v189 = vld [vmem:[%s1 + $0x2a4] sm:$0xf]
    %v190 = vld [vmem:[%s1 + $0x2a8] sm:$0xf]
    %v191 = vld [vmem:[%s1 + $0x2ac] sm:$0xf]
    %v192 = vld [vmem:[%s1 + $0x2b0] sm:$0xf]
    %v193 = vld [vmem:[%s1 + $0x2b4] sm:$0xf]
    %v194 = vld [vmem:[%s1 + $0x2b8] sm:$0xf]
    %v195 = vld [vmem:[%s1 + $0x2bc] sm:$0xf]
    %v196 = vld [vmem:[%s1 + $0x2c0] sm:$0xf]
    %v197 = vld [vmem:[%s1 + $0x2c4] sm:$0xf]
    %v198 = vld [vmem:[%s1 + $0x2c8] sm:$0xf]
    %v199 = vld [vmem:[%s1 + $0x2cc] sm:$0xf]
    %v200 = vld [vmem:[%s1 + $0x2d0] sm:$0xf]
    %v201 = vld [vmem:[%s1 + $0x2d4] sm:$0xf]
    %v202 = vld [vmem:[%s1 + $0x2d8] sm:$0xf]
    %v203 = vld [vmem:[%s1 + $0x2dc] sm:$0xf]
    %v204 = vld [vmem:[%s1 + $0x2e0] sm:$0xf]
    %v205 = vld [vmem:[%s1 + $0x2e4] sm:$0xf]
    %v206 = vld [vmem:[%s1 + $0x2e8] sm:$0xf]
    %v207 = vld [vmem:[%s1 + $0x2ec] sm:$0xf]
    %v208 = vld [vmem:[%s1 + $0x2f0] sm:$0xf]
    %v209 = vld [vmem:[%s1 + $0x2f4] sm:$0xf]
    %v210 = vld [vmem:[%s1 + $0x2f8] sm:$0xf]
    %v211 = vld [vmem:[%s1 + $0x2fc] sm:$0xf]
    %v212 = vld [vmem:[%s1 + $0x300] sm:$0xf]
    %v213 = vld [vmem:[%s1 + $0x304] sm:$0xf]
    %v214 = vld [vmem:[%s1 + $0x308] sm:$0xf]
    %v215 = vld [vmem:[%s1 + $0x30c] sm:$0xf]
    %v216 = vld [vmem:[%s1 + $0x310] sm:$0xf]
    %v217 = vld [vmem:[%s1 + $0x314] sm:$0xf]
    %v218 = vld [vmem:[%s1 + $0x318] sm:$0xf]
    %v219 = vld [vmem:[%s1 + $0x31c] sm:$0xf]
    %v220 = vld [vmem:[%s1 + $0x320] sm:$0xf]
    %v221 = vld [vmem:[%s1 + $0x324] sm:$0xf]
    %v222 = vld [vmem:[%s1 + $0x328] sm:$0xf]
    %v223 = vld [vmem:[%s1 + $0x32c] sm:$0xf]
    %v224 = vld [vmem:[%s1 + $0x330] sm:$0xf]
    %v225 = vld [vmem:[%s1 + $0x334] sm:$0xf]
    %v226 = vld [vmem:[%s1 + $0x338] sm:$0xf]
    %v227 = vld [vmem:[%s1 + $0x33c] sm:$0xf]
    %v228 = vld [vmem:[%s1 + $0x340] sm:$0xf]
    %v229 = vld [vmem:[%s1 + $0x344] sm:$0xf]
    %v230 = vld [vmem:[%s1 + $0x348] sm:$0xf]
    %v231 = vld [vmem:[%s1 + $0x34c] sm:$0xf]
    %v232 = vld [vmem:[%s1 + $0x350] sm:$0xf]
    %v233 = vld [vmem:[%s1 + $0x354] sm:$0xf]
    %v234 = vld [vmem:[%s1 + $0x358] sm:$0xf]
    %v235 = vld [vmem:[%s1 + $0x35c] sm:$0xf]
    %v236 = vld [vmem:[%s1 + $0x360] sm:$0xf]
    %v237 = vld [vmem:[%s1 + $0x364] sm:$0xf]
    %v238 = vld [vmem:[%s1 + $0x368] sm:$0xf]
    %v239 = vld [vmem:[%s1 + $0x36c] sm:$0xf]
    %v240 = vld [vmem:[%s1 + $0x370] sm:$0xf]
    %v241 = vld [vmem:[%s1 + $0x374] sm:$0xf]
    %v242 = vld [vmem:[%s1 + $0x378] sm:$0xf]
    %v243 = vld [vmem:[%s1 + $0x37c] sm:$0xf]
    %v244 = vld [vmem:[%s1 + $0x380] sm:$0xf]
    %v245 = vld [vmem:[%s1 + $0x384] sm:$0xf]
    %v246 = vld [vmem:[%s1 + $0x388] sm:$0xf]
    %v247 = vld [vmem:[%s1 + $0x38c] sm:$0xf]
    %v248 = vld [vmem:[%s1 + $0x390] sm:$0xf]
    %v249 = vld [vmem:[%s1 + $0x394] sm:$0xf]
    %v250 = vld [vmem:[%s1 + $0x398] sm:$0xf]
    %v251 = vld [vmem:[%s1 + $0x39c] sm:$0xf]
    %v252 = vld [vmem:[%s1 + $0x3a0] sm:$0xf]
    %v253 = vld [vmem:[%s1 + $0x3a4] sm:$0xf]
    %v254 = vld [vmem:[%s1 + $0x3a8] sm:$0xf]
    %v255 = vld [vmem:[%s1 + $0x3ac] sm:$0xf]
    %v256 = vld [vmem:[%s1 + $0x3b0] sm:$0xf]
    %v257 = vld [vmem:[%s1 + $0x3b4] sm:$0xf]
    %v258 = vld [vmem:[%s1 + $0x3b8] sm:$0xf]
    %v259 = vld [vmem:[%s1 + $0x3bc] sm:$0xf]
    %v260 = vld [vmem:[%s1 + $0x3c0] sm:$0xf]
    %v261 = vld [vmem:[%s1 + $0x3c4] sm:$0xf]
    %v262 = vld [vmem:[%s1 + $0x3c8] sm:$0xf]
    %v263 = vld [vmem:[%s1 + $0x3cc] sm:$0xf]
    %v264 = vld [vmem:[%s1 + $0x3d0] sm:$0xf]
    %v265 = vld [vmem:[%s1 + $0x3d4] sm:$0xf]
    %v266 = vld [vmem:[%s1 + $0x3d8] sm:$0xf]
    %v267 = vld [vmem:[%s1 + $0x3dc] sm:$0xf]
    %v268 = vld [vmem:[%s1 + $0x3e0] sm:$0xf]
    %v269 = vld [vmem:[%s1 + $0x3e4] sm:$0xf]
    %v270 = vld [vmem:[%s1 + $0x3e8] sm:$0xf]
    %v271 = vld [vmem:[%s1 + $0x3ec] sm:$0xf]
    %v272 = vld [vmem:[%s1 + $0x3f0] sm:$0xf]
    %v273 = vld [vmem:[%s1 + $0x3f4] sm:$0xf]
    %v274 = vld [vmem:[%s1 + $0x3f8] sm:$0xf]
    %v275 = vld [vmem:[%s1 + $0x3fc] sm:$0xf]
    %v276 = vld [vmem:[%s1 + $0x400] sm:$0xf]
    %v277 = vld [vmem:[%s1 + $0x404] sm:$0xf]
    %v278 = vld [vmem:[%s1 + $0x408] sm:$0xf]
    %v279 = vld [vmem:[%s1 + $0x40c] sm:$0xf]
    %v280 = vld [vmem:[%s1 + $0x410] sm:$0xf]
    %v281 = vld [vmem:[%s1 + $0x414] sm:$0xf]
    %v282 = vld [vmem:[%s1 + $0x418] sm:$0xf]
    %v283 = vld [vmem:[%s1 + $0x41c] sm:$0xf]
    %v284 = vld [vmem:[%s1 + $0x420] sm:$0xf]
    %v285 = vld [vmem:[%s1 + $0x424] sm:$0xf]
    %v286 = vld [vmem:[%s1 + $0x428] sm:$0xf]
    %v287 = vld [vmem:[%s1 + $0x42c] sm:$0xf]
    %v288 = vld [vmem:[%s1 + $0x430] sm:$0xf]
    %v289 = vld [vmem:[%s1 + $0x434] sm:$0xf]
    %v290 = vld [vmem:[%s1 + $0x438] sm:$0xf]
    %v291 = vld [vmem:[%s1 + $0x43c] sm:$0xf]
    %v292 = vld [vmem:[%s1 + $0x440] sm:$0xf]
    %v293 = vld [vmem:[%s1 + $0x444] sm:$0xf]
    %v294 = vld [vmem:[%s1 + $0x448] sm:$0xf]
    %v295 = vld [vmem:[%s1 + $0x44c] sm:$0xf]
    %v296 = vld [vmem:[%s1 + $0x450] sm:$0xf]
    %v297 = vld [vmem:[%s1 + $0x454] sm:$0xf]
    %v298 = vld [vmem:[%s1 + $0x458] sm:$0xf]
    %v299 = vld [vmem:[%s1 + $0x45c] sm:$0xf]
    %v300 = vld [vmem:[%s1 + $0x460] sm:$0xf]
    %v301 = vld [vmem:[%s1 + $0x464] sm:$0xf]
    %v302 = vld [vmem:[%s1 + $0x468] sm:$0xf]
    %v303 = vld [vmem:[%s1 + $0x46c] sm:$0xf]
    %v304 = vld [vmem:[%s1 + $0x470] sm:$0xf]
    %v305 = vld [vmem:[%s1 + $0x474] sm:$0xf]
    %v306 = vld [vmem:[%s1 + $0x478] sm:$0xf]
    %v307 = vld [vmem:[%s1 + $0x47c] sm:$0xf]
    %v308 = vld [vmem:[%s1 + $0x480] sm:$0xf]
    %v309 = vld [vmem:[%s1 + $0x484] sm:$0xf]
    %v310 = vld [vmem:[%s1 + $0x488] sm:$0xf]
    %v311 = vld [vmem:[%s1 + $0x48c] sm:$0xf]
    %v312 = vld [vmem:[%s1 + $0x490] sm:$0xf]
    %v313 = vld [vmem:[%s1 + $0x494] sm:$0xf]
    %v314 = vld [vmem:[%s1 + $0x498] sm:$0xf]
    %v315 = vld [vmem:[%s1 + $0x49c] sm:$0xf]
    %v316 = vld [vmem:[%s1 + $0x4a0] sm:$0xf]
    %v317 = vld [vmem:[%s1 + $0x4a4] sm:$0xf]
    %v318 = vld [vmem:[%s1 + $0x4a8] sm:$0xf]
    %v319 = vld [vmem:[%s1 + $0x4ac] sm:$0xf]
    %v320 = vld [vmem:[%s1 + $0x4b0] sm:$0xf]
    %v321 = vld [vmem:[%s1 + $0x4b4] sm:$0xf]
    %v322 = vld [vmem:[%s1 + $0x4b8] sm:$0xf]
    %v323 = vld [vmem:[%s1 + $0x4bc] sm:$0xf]
    %v324 = vld [vmem:[%s1 + $0x4c0] sm:$0xf]
    %v325 = vld [vmem:[%s1 + $0x4c4] sm:$0xf]
    %v326 = vld [vmem:[%s1 + $0x4c8] sm:$0xf]
    %v327 = vld [vmem:[%s1 + $0x4cc] sm:$0xf]
    %v328 = vld [vmem:[%s1 + $0x4d0] sm:$0xf]
    %v329 = vld [vmem:[%s1 + $0x4d4] sm:$0xf]
    %v330 = vld [vmem:[%s1 + $0x4d8] sm:$0xf]
    %v331 = vld [vmem:[%s1 + $0x4dc] sm:$0xf]
    %v332 = vld [vmem:[%s1 + $0x4e0] sm:$0xf]
    %v333 = vld [vmem:[%s1 + $0x4e4] sm:$0xf]
    %v334 = vld [vmem:[%s1 + $0x4e8] sm:$0xf]
    %v335 = vld [vmem:[%s1 + $0x4ec] sm:$0xf]
    %v336 = vld [vmem:[%s1 + $0x4f0] sm:$0xf]
    %v337 = vld [vmem:[%s1 + $0x4f4] sm:$0xf]
    %v338 = vld [vmem:[%s1 + $0x4f8] sm:$0xf]
    %v339 = vld [vmem:[%s1 + $0x4fc] sm:$0xf]
    %v340 = vld [vmem:[%s1 + $0x500] sm:$0xf]
    %v341 = vld [vmem:[%s1 + $0x504] sm:$0xf]
    %v342 = vld [vmem:[%s1 + $0x508] sm:$0xf]
    %v343 = vld [vmem:[%s1 + $0x50c] sm:$0xf]
    %v344 = vld [vmem:[%s1 + $0x510] sm:$0xf]
    %v345 = vld [vmem:[%s1 + $0x514] sm:$0xf]
    %v346 = vld [vmem:[%s1 + $0x518] sm:$0xf]
    %v347 = vld [vmem:[%s1 + $0x51c] sm:$0xf]
    %v348 = vld [vmem:[%s1 + $0x520] sm:$0xf]
    %v349 = vld [vmem:[%s1 + $0x524] sm:$0xf]
    %v350 = vld [vmem:[%s1 + $0x528] sm:$0xf]
    %v351 = vld [vmem:[%s1 + $0x52c] sm:$0xf]
    %v352 = vld [vmem:[%s1 + $0x530] sm:$0xf]
    %v353 = vld [vmem:[%s1 + $0x534] sm:$0xf]
    %v354 = vld [vmem:[%s1 + $0x538] sm:$0xf]
    %v355 = vld [vmem:[%s1 + $0x53c] sm:$0xf]
    %v356 = vld [vmem:[%s1 + $0x540] sm:$0xf]
    %v357 = vld [vmem:[%s1 + $0x544] sm:$0xf]
    %v358 = vld [vmem:[%s1 + $0x548] sm:$0xf]
    %v359 = vld [vmem:[%s1 + $0x54c] sm:$0xf]
    %v360 = vld [vmem:[%s1 + $0x550] sm:$0xf]
    %v361 = vld [vmem:[%s1 + $0x554] sm:$0xf]
    %v362 = vld [vmem:[%s1 + $0x558] sm:$0xf]
    %v363 = vld [vmem:[%s1 + $0x55c] sm:$0xf]
    %v364 = vld [vmem:[%s1 + $0x560] sm:$0xf]
    %v365 = vld [vmem:[%s1 + $0x564] sm:$0xf]
    %v366 = vld [vmem:[%s1 + $0x568] sm:$0xf]
    %v367 = vld [vmem:[%s1 + $0x56c] sm:$0xf]
    %v368 = vld [vmem:[%s1 + $0x570] sm:$0xf]
    %v369 = vld [vmem:[%s1 + $0x574] sm:$0xf]
    %v370 = vld [vmem:[%s1 + $0x578] sm:$0xf]
    %v371 = vld [vmem:[%s1 + $0x57c] sm:$0xf]
    %v372 = vld [vmem:[%s1 + $0x580] sm:$0xf]
    %v373 = vld [vmem:[%s1 + $0x584] sm:$0xf]
    %v374 = vld [vmem:[%s1 + $0x588] sm:$0xf]
    %v375 = vld [vmem:[%s1 + $0x58c] sm:$0xf]
    %v376 = vld [vmem:[%s1 + $0x590] sm:$0xf]
    %v377 = vld [vmem:[%s1 + $0x594] sm:$0xf]
    %v378 = vld [vmem:[%s1 + $0x598] sm:$0xf]
    %v379 = vld [vmem:[%s1 + $0x59c] sm:$0xf]
    %v380 = vld [vmem:[%s1 + $0x5a0] sm:$0xf]
    %v381 = vld [vmem:[%s1 + $0x5a4] sm:$0xf]
    %v382 = vld [vmem:[%s1 + $0x5a8] sm:$0xf]
    %v383 = vld [vmem:[%s1 + $0x5ac] sm:$0xf]
    %v384 = vld [vmem:[%s1 + $0x5b0] sm:$0xf]
    %v385 = vld [vmem:[%s1 + $0x5b4] sm:$0xf]
    %v386 = vld [vmem:[%s1 + $0x5b8] sm:$0xf]
    %v387 = vld [vmem:[%s1 + $0x5bc] sm:$0xf]
    %v388 = vld [vmem:[%s1 + $0x5c0] sm:$0xf]
    %v389 = vld [vmem:[%s1 + $0x5c4] sm:$0xf]
    %v390 = vld [vmem:[%s1 + $0x5c8] sm:$0xf]
    %v391 = vld [vmem:[%s1 + $0x5cc] sm:$0xf]
    %v392 = vld [vmem:[%s1 + $0x5d0] sm:$0xf]
    %v393 = vld [vmem:[%s1 + $0x5d4] sm:$0xf]
    %v394 = vld [vmem:[%s1 + $0x5d8] sm:$0xf]
    %v395 = vld [vmem:[%s1 + $0x5dc] sm:$0xf]
    %v396 = vld [vmem:[%s1 + $0x5e0] sm:$0xf]
    %v397 = vld [vmem:[%s1 + $0x5e4] sm:$0xf]
    %v398 = vld [vmem:[%s1 + $0x5e8] sm:$0xf]
    %v399 = vld [vmem:[%s1 + $0x5ec] sm:$0xf]
    %v400 = vld [vmem:[%s1 + $0x5f0] sm:$0xf]
    %v401 = vld [vmem:[%s1 + $0x5f4] sm:$0xf]
    %v402 = vld [vmem:[%s1 + $0x5f8] sm:$0xf]
    %v403 = vld [vmem:[%s1 + $0x5fc] sm:$0xf]
    %v404 = vld [vmem:[%s1 + $0x600] sm:$0xf]
    %v405 = vld [vmem:[%s1 + $0x604] sm:$0xf]
    %v406 = vld [vmem:[%s1 + $0x608] sm:$0xf]
    %v407 = vld [vmem:[%s1 + $0x60c] sm:$0xf]
    %v408 = vld [vmem:[%s1 + $0x610] sm:$0xf]
    %v409 = vld [vmem:[%s1 + $0x614] sm:$0xf]
    %v410 = vld [vmem:[%s1 + $0x618] sm:$0xf]
    %v411 = vld [vmem:[%s1 + $0x61c] sm:$0xf]
    %v412 = vld [vmem:[%s1 + $0x620] sm:$0xf]
    %v413 = vld [vmem:[%s1 + $0x624] sm:$0xf]
    %v414 = vld [vmem:[%s1 + $0x628] sm:$0xf]
    %v415 = vld [vmem:[%s1 + $0x62c] sm:$0xf]
    %v416 = vld [vmem:[%s1 + $0x630] sm:$0xf]
    %v417 = vld [vmem:[%s1 + $0x634] sm:$0xf]
    %v418 = vld [vmem:[%s1 + $0x638] sm:$0xf]
    %v419 = vld [vmem:[%s1 + $0x63c] sm:$0xf]
    %v420 = vld [vmem:[%s1 + $0x640] sm:$0xf]
    %v421 = vld [vmem:[%s1 + $0x644] sm:$0xf]
    %v422 = vld [vmem:[%s1 + $0x648] sm:$0xf]
    %v423 = vld [vmem:[%s1 + $0x64c] sm:$0xf]
    %v424 = vld [vmem:[%s1 + $0x650] sm:$0xf]
    %v425 = vld [vmem:[%s1 + $0x654] sm:$0xf]
    %v426 = vld [vmem:[%s1 + $0x658] sm:$0xf]
    %v427 = vld [vmem:[%s1 + $0x65c] sm:$0xf]
    %v428 = vld [vmem:[%s1 + $0x660] sm:$0xf]
    %v429 = vld [vmem:[%s1 + $0x664] sm:$0xf]
    %v430 = vld [vmem:[%s1 + $0x668] sm:$0xf]
    %v431 = vld [vmem:[%s1 + $0x66c] sm:$0xf]
    %v432 = vld [vmem:[%s1 + $0x670] sm:$0xf]
    %v433 = vld [vmem:[%s1 + $0x674] sm:$0xf]
    %v434 = vld [vmem:[%s1 + $0x678] sm:$0xf]
    %v435 = vld [vmem:[%s1 + $0x67c] sm:$0xf]
    %v436 = vld [vmem:[%s1 + $0x680] sm:$0xf]
    %v437 = vld [vmem:[%s1 + $0x684] sm:$0xf]
    %v438 = vld [vmem:[%s1 + $0x688] sm:$0xf]
    %v439 = vld [vmem:[%s1 + $0x68c] sm:$0xf]
    %v440 = vld [vmem:[%s1 + $0x690] sm:$0xf]
    %v441 = vld [vmem:[%s1 + $0x694] sm:$0xf]
    %v442 = vld [vmem:[%s1 + $0x698] sm:$0xf]
    %v443 = vld [vmem:[%s1 + $0x69c] sm:$0xf]
    %v444 = vld [vmem:[%s1 + $0x6a0] sm:$0xf]
    %v445 = vld [vmem:[%s1 + $0x6a4] sm:$0xf]
    %v446 = vld [vmem:[%s1 + $0x6a8] sm:$0xf]
    %v447 = vld [vmem:[%s1 + $0x6ac] sm:$0xf]
    %v448 = vld [vmem:[%s1 + $0x6b0] sm:$0xf]
    %v449 = vld [vmem:[%s1 + $0x6b4] sm:$0xf]
    %v450 = vld [vmem:[%s1 + $0x6b8] sm:$0xf]
    %v451 = vld [vmem:[%s1 + $0x6bc] sm:$0xf]
    %v452 = vld [vmem:[%s1 + $0x6c0] sm:$0xf]
    %v453 = vld [vmem:[%s1 + $0x6c4] sm:$0xf]
    %v454 = vld [vmem:[%s1 + $0x6c8] sm:$0xf]
    %v455 = vld [vmem:[%s1 + $0x6cc] sm:$0xf]
    %v456 = vld [vmem:[%s1 + $0x6d0] sm:$0xf]
    %v457 = vld [vmem:[%s1 + $0x6d4] sm:$0xf]
    %v458 = vld [vmem:[%s1 + $0x6d8] sm:$0xf]
    %v459 = vld [vmem:[%s1 + $0x6dc] sm:$0xf]
    %v460 = vld [vmem:[%s1 + $0x6e0] sm:$0xf]
    %v461 = vld [vmem:[%s1 + $0x6e4] sm:$0xf]
    %v462 = vld [vmem:[%s1 + $0x6e8] sm:$0xf]
    %v463 = vld [vmem:[%s1 + $0x6ec] sm:$0xf]
    %v464 = vld [vmem:[%s1 + $0x6f0] sm:$0xf]
    %v465 = vld [vmem:[%s1 + $0x6f4] sm:$0xf]
    %v466 = vld [vmem:[%s1 + $0x6f8] sm:$0xf]
    %v467 = vld [vmem:[%s1 + $0x6fc] sm:$0xf]
    %v468 = vld [vmem:[%s1 + $0x700] sm:$0xf]
    %v469 = vld [vmem:[%s1 + $0x704] sm:$0xf]
    %v470 = vld [vmem:[%s1 + $0x708] sm:$0xf]
    %v471 = vld [vmem:[%s1 + $0x70c] sm:$0xf]
    %v472 = vld [vmem:[%s1 + $0x710] sm:$0xf]
    %v473 = vld [vmem:[%s1 + $0x714] sm:$0xf]
    %v474 = vld [vmem:[%s1 + $0x718] sm:$0xf]
    %v475 = vld [vmem:[%s1 + $0x71c] sm:$0xf]
    %v476 = vld [vmem:[%s1 + $0x720] sm:$0xf]
    %v477 = vld [vmem:[%s1 + $0x724] sm:$0xf]
    %v478 = vld [vmem:[%s1 + $0x728] sm:$0xf]
    %v479 = vld [vmem:[%s1 + $0x72c] sm:$0xf]
    %v480 = vld [vmem:[%s1 + $0x730] sm:$0xf]
    %v481 = vld [vmem:[%s1 + $0x734] sm:$0xf]
    %v482 = vld [vmem:[%s1 + $0x738] sm:$0xf]
    %v483 = vld [vmem:[%s1 + $0x73c] sm:$0xf]
    %v484 = vld [vmem:[%s1 + $0x740] sm:$0xf]
    %v485 = vld [vmem:[%s1 + $0x744] sm:$0xf]
    %v486 = vld [vmem:[%s1 + $0x748] sm:$0xf]
    %v487 = vld [vmem:[%s1 + $0x74c] sm:$0xf]
    %v488 = vld [vmem:[%s1 + $0x750] sm:$0xf]
    %v489 = vld [vmem:[%s1 + $0x754] sm:$0xf]
    %v490 = vld [vmem:[%s1 + $0x758] sm:$0xf]
    %v491 = vld [vmem:[%s1 + $0x75c] sm:$0xf]
    %v492 = vld [vmem:[%s1 + $0x760] sm:$0xf]
    %v493 = vld [vmem:[%s1 + $0x764] sm:$0xf]
    %v494 = vld [vmem:[%s1 + $0x768] sm:$0xf]
    %v495 = vld [vmem:[%s1 + $0x76c] sm:$0xf]
    %v496 = vld [vmem:[%s1 + $0x770] sm:$0xf]
    %v497 = vld [vmem:[%s1 + $0x774] sm:$0xf]
    %v498 = vld [vmem:[%s1 + $0x778] sm:$0xf]
    %v499 = vld [vmem:[%s1 + $0x77c] sm:$0xf]
    %v500 = vld [vmem:[%s1 + $0x780] sm:$0xf]
    %v501 = vld [vmem:[%s1 + $0x784] sm:$0xf]
    %v502 = vld [vmem:[%s1 + $0x788] sm:$0xf]
    %v503 = vld [vmem:[%s1 + $0x78c] sm:$0xf]
    %v504 = vld [vmem:[%s1 + $0x790] sm:$0xf]
    %v505 = vld [vmem:[%s1 + $0x794] sm:$0xf]
    %v506 = vld [vmem:[%s1 + $0x798] sm:$0xf]
    %v507 = vld [vmem:[%s1 + $0x79c] sm:$0xf]
    %v508 = vld [vmem:[%s1 + $0x7a0] sm:$0xf]
    %v509 = vld [vmem:[%s1 + $0x7a4] sm:$0xf]
    %v510 = vld [vmem:[%s1 + $0x7a8] sm:$0xf]
    %v511 = vld [vmem:[%s1 + $0x7ac] sm:$0xf]
    %v512 = vld [vmem:[%s1 + $0x7b0] sm:$0xf]
    %v513 = vld [vmem:[%s1 + $0x7b4] sm:$0xf]
    %v514 = vld [vmem:[%s1 + $0x7b8] sm:$0xf]
    %v515 = vld [vmem:[%s1 + $0x7bc] sm:$0xf]
    %v516 = vld [vmem:[%s1 + $0x7c0] sm:$0xf]
    %v517 = vld [vmem:[%s1 + $0x7c4] sm:$0xf]
    %v518 = vld [vmem:[%s1 + $0x7c8] sm:$0xf]
    %v519 = vld [vmem:[%s1 + $0x7cc] sm:$0xf]
    %v520 = vld [vmem:[%s1 + $0x7d0] sm:$0xf]
    %v521 = vld [vmem:[%s1 + $0x7d4] sm:$0xf]
    %v522 = vld [vmem:[%s1 + $0x7d8] sm:$0xf]
    %v523 = vld [vmem:[%s1 + $0x7dc] sm:$0xf]
    %v524 = vld [vmem:[%s1 + $0x7e0] sm:$0xf]
    %v525 = vld [vmem:[%s1 + $0x7e4] sm:$0xf]
    %v526 = vld [vmem:[%s1 + $0x7e8] sm:$0xf]
    %v527 = vld [vmem:[%s1 + $0x7ec] sm:$0xf]
    %v528 = vld [vmem:[%s1 + $0x7f0] sm:$0xf]
    %v529 = vld [vmem:[%s1 + $0x7f4] sm:$0xf]
    %v530 = vld [vmem:[%s1 + $0x7f8] sm:$0xf]
    %v531 = vld [vmem:[%s1 + $0x7fc] sm:$0xf]
    %v532 = vld [vmem:[%s2] sm:$0x1]
    %v534 = vlaneseq
    %v535 = vshrl.u32 %v534, 7
    %v536 = vsub.s32 0, %v535
    %v537 = vrot.slane %v532, %v536
    %v543 = vcombine.high %v16, %v16
    %v545 = vunpack.c.l.s4 1966171168
    %v546 = vunpack.c.0.s8 %v545
    %v547 = vlaneseq
    %v548 = vshrl.u32 %v547, 7
    %v549 = vsub.s32 %v546, %v548
    %v550 = vrot.slane %v16, %v549
    %v552 = vunpack.c.l.s4 1966171168
    %v553 = vunpack.c.0.s8 %v552
    %v554 = vlaneseq
    %v555 = vshrl.u32 %v554, 7
    %v556 = vsub.s32 %v553, %v555
    %v557 = vrot.slane %v543, %v556
    %v558 = vcombine.high %v550, %v550
    %v559 = vcombine.high %v557, %v557
    %v561 = vunpack.c.l.s4 1966171168
    %v562 = vunpack.c.0.s8 %v561
    %v563 = vlaneseq
    %v564 = vshrl.u32 %v563, 7
    %v565 = vsub.s32 %v562, %v564
    %v566 = vrot.slane %v550, %v565
    %v568 = vunpack.c.l.s4 1966171168
    %v569 = vunpack.c.0.s8 %v568
    %v570 = vlaneseq
    %v571 = vshrl.u32 %v570, 7
    %v572 = vsub.s32 %v569, %v571
    %v573 = vrot.slane %v557, %v572
    %v575 = vunpack.c.l.s4 1966171168
    %v576 = vunpack.c.0.s8 %v575
    %v577 = vlaneseq
    %v578 = vshrl.u32 %v577, 7
    %v579 = vsub.s32 %v576, %v578
    %v580 = vrot.slane %v558, %v579
    %v582 = vunpack.c.l.s4 1966171168
    %v583 = vunpack.c.0.s8 %v582
    %v584 = vlaneseq
    %v585 = vshrl.u32 %v584, 7
    %v586 = vsub.s32 %v583, %v585
    %v587 = vrot.slane %v559, %v586
    %v588 = vcombine.high %v566, %v566
    %v589 = vcombine.high %v573, %v573
    %v590 = vcombine.high %v580, %v580
    %v591 = vcombine.high %v587, %v587
    %v592 = vcombine.high %v17, %v17
    %v594 = vunpack.c.l.s4 1966171168
    %v595 = vunpack.c.0.s8 %v594
    %v596 = vlaneseq
    %v597 = vshrl.u32 %v596, 7
    %v598 = vsub.s32 %v595, %v597
    %v599 = vrot.slane %v17, %v598
    %v601 = vunpack.c.l.s4 1966171168
    %v602 = vunpack.c.0.s8 %v601
    %v603 = vlaneseq
    %v604 = vshrl.u32 %v603, 7
    %v605 = vsub.s32 %v602, %v604
    %v606 = vrot.slane %v592, %v605
    %v607 = vcombine.high %v599, %v599
    %v608 = vcombine.high %v606, %v606
    %v610 = vunpack.c.l.s4 1966171168
    %v611 = vunpack.c.0.s8 %v610
    %v612 = vlaneseq
    %v613 = vshrl.u32 %v612, 7
    %v614 = vsub.s32 %v611, %v613
    %v615 = vrot.slane %v599, %v614
    %v617 = vunpack.c.l.s4 1966171168
    %v618 = vunpack.c.0.s8 %v617
    %v619 = vlaneseq
    %v620 = vshrl.u32 %v619, 7
    %v621 = vsub.s32 %v618, %v620
    %v622 = vrot.slane %v606, %v621
    %v624 = vunpack.c.l.s4 1966171168
    %v625 = vunpack.c.0.s8 %v624
    %v626 = vlaneseq
    %v627 = vshrl.u32 %v626, 7
    %v628 = vsub.s32 %v625, %v627
    %v629 = vrot.slane %v607, %v628
    %v631 = vunpack.c.l.s4 1966171168
    %v632 = vunpack.c.0.s8 %v631
    %v633 = vlaneseq
    %v634 = vshrl.u32 %v633, 7
    %v635 = vsub.s32 %v632, %v634
    %v636 = vrot.slane %v608, %v635
    %v637 = vcombine.high %v615, %v615
    %v638 = vcombine.high %v622, %v622
    %v639 = vcombine.high %v629, %v629
    %v640 = vcombine.high %v636, %v636
    %v641 = vcombine.high %v18, %v18
    %v643 = vunpack.c.l.s4 1966171168
    %v644 = vunpack.c.0.s8 %v643
    %v645 = vlaneseq
    %v646 = vshrl.u32 %v645, 7
    %v647 = vsub.s32 %v644, %v646
    %v648 = vrot.slane %v18, %v647
    %v650 = vunpack.c.l.s4 1966171168
    %v651 = vunpack.c.0.s8 %v650
    %v652 = vlaneseq
    %v653 = vshrl.u32 %v652, 7
    %v654 = vsub.s32 %v651, %v653
    %v655 = vrot.slane %v641, %v654
    %v656 = vcombine.high %v648, %v648
    %v657 = vcombine.high %v655, %v655
    %v659 = vunpack.c.l.s4 1966171168
    %v660 = vunpack.c.0.s8 %v659
    %v661 = vlaneseq
    %v662 = vshrl.u32 %v661, 7
    %v663 = vsub.s32 %v660, %v662
    %v664 = vrot.slane %v648, %v663
    %v666 = vunpack.c.l.s4 1966171168
    %v667 = vunpack.c.0.s8 %v666
    %v668 = vlaneseq
    %v669 = vshrl.u32 %v668, 7
    %v670 = vsub.s32 %v667, %v669
    %v671 = vrot.slane %v655, %v670
    %v673 = vunpack.c.l.s4 1966171168
    %v674 = vunpack.c.0.s8 %v673
    %v675 = vlaneseq
    %v676 = vshrl.u32 %v675, 7
    %v677 = vsub.s32 %v674, %v676
    %v678 = vrot.slane %v656, %v677
    %v680 = vunpack.c.l.s4 1966171168
    %v681 = vunpack.c.0.s8 %v680
    %v682 = vlaneseq
    %v683 = vshrl.u32 %v682, 7
    %v684 = vsub.s32 %v681, %v683
    %v685 = vrot.slane %v657, %v684
    %v686 = vcombine.high %v664, %v664
    %v687 = vcombine.high %v671, %v671
    %v688 = vcombine.high %v678, %v678
    %v689 = vcombine.high %v685, %v685
    %v690 = vcombine.high %v19, %v19
    %v692 = vunpack.c.l.s4 1966171168
    %v693 = vunpack.c.0.s8 %v692
    %v694 = vlaneseq
    %v695 = vshrl.u32 %v694, 7
    %v696 = vsub.s32 %v693, %v695
    %v697 = vrot.slane %v19, %v696
    %v699 = vunpack.c.l.s4 1966171168
    %v700 = vunpack.c.0.s8 %v699
    %v701 = vlaneseq
    %v702 = vshrl.u32 %v701, 7
    %v703 = vsub.s32 %v700, %v702
    %v704 = vrot.slane %v690, %v703
    %v705 = vcombine.high %v697, %v697
    %v706 = vcombine.high %v704, %v704
    %v708 = vunpack.c.l.s4 1966171168
    %v709 = vunpack.c.0.s8 %v708
    %v710 = vlaneseq
    %v711 = vshrl.u32 %v710, 7
    %v712 = vsub.s32 %v709, %v711
    %v713 = vrot.slane %v697, %v712
    %v715 = vunpack.c.l.s4 1966171168
    %v716 = vunpack.c.0.s8 %v715
    %v717 = vlaneseq
    %v718 = vshrl.u32 %v717, 7
    %v719 = vsub.s32 %v716, %v718
    %v720 = vrot.slane %v704, %v719
    %v722 = vunpack.c.l.s4 1966171168
    %v723 = vunpack.c.0.s8 %v722
    %v724 = vlaneseq
    %v725 = vshrl.u32 %v724, 7
    %v726 = vsub.s32 %v723, %v725
    %v727 = vrot.slane %v705, %v726
    %v729 = vunpack.c.l.s4 1966171168
    %v730 = vunpack.c.0.s8 %v729
    %v731 = vlaneseq
    %v732 = vshrl.u32 %v731, 7
    %v733 = vsub.s32 %v730, %v732
    %v734 = vrot.slane %v706, %v733
    %v735 = vcombine.high %v713, %v713
    %v736 = vcombine.high %v720, %v720
    %v737 = vcombine.high %v727, %v727
    %v738 = vcombine.high %v734, %v734
    %v1283 = vunpack.c.l.b16 %v20
    %v1284 = vunpack.c.l.b16 %v21
    %v1285 = vunpack.c.l.b16 %v22
    %v1286 = vunpack.c.l.b16 %v23
    %v1287 = vunpack.c.l.b16 %v24
    %v1288 = vunpack.c.l.b16 %v25
    %v1289 = vunpack.c.l.b16 %v26
    %v1290 = vunpack.c.l.b16 %v27
    %v1291 = vunpack.c.l.b16 %v28
    %v1292 = vunpack.c.l.b16 %v29
    %v1293 = vunpack.c.l.b16 %v30
    %v1294 = vunpack.c.l.b16 %v31
    %v1295 = vunpack.c.l.b16 %v32
    %v1296 = vunpack.c.l.b16 %v33
    %v1297 = vunpack.c.l.b16 %v34
    %v1298 = vunpack.c.l.b16 %v35
    %v1299 = vunpack.c.l.b16 %v36
    %v1300 = vunpack.c.l.b16 %v37
    %v1301 = vunpack.c.l.b16 %v38
    %v1302 = vunpack.c.l.b16 %v39
    %v1303 = vunpack.c.l.b16 %v40
    %v1304 = vunpack.c.l.b16 %v41
    %v1305 = vunpack.c.l.b16 %v42
    %v1306 = vunpack.c.l.b16 %v43
    %v1307 = vunpack.c.l.b16 %v44
    %v1308 = vunpack.c.l.b16 %v45
    %v1309 = vunpack.c.l.b16 %v46
    %v1310 = vunpack.c.l.b16 %v47
    %v1311 = vunpack.c.l.b16 %v48
    %v1312 = vunpack.c.l.b16 %v49
    %v1313 = vunpack.c.l.b16 %v50
    %v1314 = vunpack.c.l.b16 %v51
    %v1315 = vunpack.c.l.b16 %v52
    %v1316 = vunpack.c.l.b16 %v53
    %v1317 = vunpack.c.l.b16 %v54
    %v1318 = vunpack.c.l.b16 %v55
    %v1319 = vunpack.c.l.b16 %v56
    %v1320 = vunpack.c.l.b16 %v57
    %v1321 = vunpack.c.l.b16 %v58
    %v1322 = vunpack.c.l.b16 %v59
    %v1323 = vunpack.c.l.b16 %v60
    %v1324 = vunpack.c.l.b16 %v61
    %v1325 = vunpack.c.l.b16 %v62
    %v1326 = vunpack.c.l.b16 %v63
    %v1327 = vunpack.c.l.b16 %v64
    %v1328 = vunpack.c.l.b16 %v65
    %v1329 = vunpack.c.l.b16 %v66
    %v1330 = vunpack.c.l.b16 %v67
    %v1331 = vunpack.c.l.b16 %v68
    %v1332 = vunpack.c.l.b16 %v69
    %v1333 = vunpack.c.l.b16 %v70
    %v1334 = vunpack.c.l.b16 %v71
    %v1335 = vunpack.c.l.b16 %v72
    %v1336 = vunpack.c.l.b16 %v73
    %v1337 = vunpack.c.l.b16 %v74
    %v1338 = vunpack.c.l.b16 %v75
    %v1339 = vunpack.c.l.b16 %v76
    %v1340 = vunpack.c.l.b16 %v77
    %v1341 = vunpack.c.l.b16 %v78
    %v1342 = vunpack.c.l.b16 %v79
    %v1343 = vunpack.c.l.b16 %v80
    %v1344 = vunpack.c.l.b16 %v81
    %v1345 = vunpack.c.l.b16 %v82
    %v1346 = vunpack.c.l.b16 %v83
    %v1347 = vunpack.c.l.b16 %v84
    %v1348 = vunpack.c.l.b16 %v85
    %v1349 = vunpack.c.l.b16 %v86
    %v1350 = vunpack.c.l.b16 %v87
    %v1351 = vunpack.c.l.b16 %v88
    %v1352 = vunpack.c.l.b16 %v89
    %v1353 = vunpack.c.l.b16 %v90
    %v1354 = vunpack.c.l.b16 %v91
    %v1355 = vunpack.c.l.b16 %v92
    %v1356 = vunpack.c.l.b16 %v93
    %v1357 = vunpack.c.l.b16 %v94
    %v1358 = vunpack.c.l.b16 %v95
    %v1359 = vunpack.c.l.b16 %v96
    %v1360 = vunpack.c.l.b16 %v97
    %v1361 = vunpack.c.l.b16 %v98
    %v1362 = vunpack.c.l.b16 %v99
    %v1363 = vunpack.c.l.b16 %v100
    %v1364 = vunpack.c.l.b16 %v101
    %v1365 = vunpack.c.l.b16 %v102
    %v1366 = vunpack.c.l.b16 %v103
    %v1367 = vunpack.c.l.b16 %v104
    %v1368 = vunpack.c.l.b16 %v105
    %v1369 = vunpack.c.l.b16 %v106
    %v1370 = vunpack.c.l.b16 %v107
    %v1371 = vunpack.c.l.b16 %v108
    %v1372 = vunpack.c.l.b16 %v109
    %v1373 = vunpack.c.l.b16 %v110
    %v1374 = vunpack.c.l.b16 %v111
    %v1375 = vunpack.c.l.b16 %v112
    %v1376 = vunpack.c.l.b16 %v113
    %v1377 = vunpack.c.l.b16 %v114
    %v1378 = vunpack.c.l.b16 %v115
    %v1379 = vunpack.c.l.b16 %v116
    %v1380 = vunpack.c.l.b16 %v117
    %v1381 = vunpack.c.l.b16 %v118
    %v1382 = vunpack.c.l.b16 %v119
    %v1383 = vunpack.c.l.b16 %v120
    %v1384 = vunpack.c.l.b16 %v121
    %v1385 = vunpack.c.l.b16 %v122
    %v1386 = vunpack.c.l.b16 %v123
    %v1387 = vunpack.c.l.b16 %v124
    %v1388 = vunpack.c.l.b16 %v125
    %v1389 = vunpack.c.l.b16 %v126
    %v1390 = vunpack.c.l.b16 %v127
    %v1391 = vunpack.c.l.b16 %v128
    %v1392 = vunpack.c.l.b16 %v129
    %v1393 = vunpack.c.l.b16 %v130
    %v1394 = vunpack.c.l.b16 %v131
    %v1395 = vunpack.c.l.b16 %v132
    %v1396 = vunpack.c.l.b16 %v133
    %v1397 = vunpack.c.l.b16 %v134
    %v1398 = vunpack.c.l.b16 %v135
    %v1399 = vunpack.c.l.b16 %v136
    %v1400 = vunpack.c.l.b16 %v137
    %v1401 = vunpack.c.l.b16 %v138
    %v1402 = vunpack.c.l.b16 %v139
    %v1403 = vunpack.c.l.b16 %v140
    %v1404 = vunpack.c.l.b16 %v141
    %v1405 = vunpack.c.l.b16 %v142
    %v1406 = vunpack.c.l.b16 %v143
    %v1407 = vunpack.c.l.b16 %v144
    %v1408 = vunpack.c.l.b16 %v145
    %v1409 = vunpack.c.l.b16 %v146
    %v1410 = vunpack.c.l.b16 %v147
    %v1411 = vunpack.c.l.b16 %v148
    %v1412 = vunpack.c.l.b16 %v149
    %v1413 = vunpack.c.l.b16 %v150
    %v1414 = vunpack.c.l.b16 %v151
    %v1415 = vunpack.c.l.b16 %v152
    %v1416 = vunpack.c.l.b16 %v153
    %v1417 = vunpack.c.l.b16 %v154
    %v1418 = vunpack.c.l.b16 %v155
    %v1419 = vunpack.c.l.b16 %v156
    %v1420 = vunpack.c.l.b16 %v157
    %v1421 = vunpack.c.l.b16 %v158
    %v1422 = vunpack.c.l.b16 %v159
    %v1423 = vunpack.c.l.b16 %v160
    %v1424 = vunpack.c.l.b16 %v161
    %v1425 = vunpack.c.l.b16 %v162
    %v1426 = vunpack.c.l.b16 %v163
    %v1427 = vunpack.c.l.b16 %v164
    %v1428 = vunpack.c.l.b16 %v165
    %v1429 = vunpack.c.l.b16 %v166
    %v1430 = vunpack.c.l.b16 %v167
    %v1431 = vunpack.c.l.b16 %v168
    %v1432 = vunpack.c.l.b16 %v169
    %v1433 = vunpack.c.l.b16 %v170
    %v1434 = vunpack.c.l.b16 %v171
    %v1435 = vunpack.c.l.b16 %v172
    %v1436 = vunpack.c.l.b16 %v173
    %v1437 = vunpack.c.l.b16 %v174
    %v1438 = vunpack.c.l.b16 %v175
    %v1439 = vunpack.c.l.b16 %v176
    %v1440 = vunpack.c.l.b16 %v177
    %v1441 = vunpack.c.l.b16 %v178
    %v1442 = vunpack.c.l.b16 %v179
    %v1443 = vunpack.c.l.b16 %v180
    %v1444 = vunpack.c.l.b16 %v181
    %v1445 = vunpack.c.l.b16 %v182
    %v1446 = vunpack.c.l.b16 %v183
    %v1447 = vunpack.c.l.b16 %v184
    %v1448 = vunpack.c.l.b16 %v185
    %v1449 = vunpack.c.l.b16 %v186
    %v1450 = vunpack.c.l.b16 %v187
    %v1451 = vunpack.c.l.b16 %v188
    %v1452 = vunpack.c.l.b16 %v189
    %v1453 = vunpack.c.l.b16 %v190
    %v1454 = vunpack.c.l.b16 %v191
    %v1455 = vunpack.c.l.b16 %v192
    %v1456 = vunpack.c.l.b16 %v193
    %v1457 = vunpack.c.l.b16 %v194
    %v1458 = vunpack.c.l.b16 %v195
    %v1459 = vunpack.c.l.b16 %v196
    %v1460 = vunpack.c.l.b16 %v197
    %v1461 = vunpack.c.l.b16 %v198
    %v1462 = vunpack.c.l.b16 %v199
    %v1463 = vunpack.c.l.b16 %v200
    %v1464 = vunpack.c.l.b16 %v201
    %v1465 = vunpack.c.l.b16 %v202
    %v1466 = vunpack.c.l.b16 %v203
    %v1467 = vunpack.c.l.b16 %v204
    %v1468 = vunpack.c.l.b16 %v205
    %v1469 = vunpack.c.l.b16 %v206
    %v1470 = vunpack.c.l.b16 %v207
    %v1471 = vunpack.c.l.b16 %v208
    %v1472 = vunpack.c.l.b16 %v209
    %v1473 = vunpack.c.l.b16 %v210
    %v1474 = vunpack.c.l.b16 %v211
    %v1475 = vunpack.c.l.b16 %v212
    %v1476 = vunpack.c.l.b16 %v213
    %v1477 = vunpack.c.l.b16 %v214
    %v1478 = vunpack.c.l.b16 %v215
    %v1479 = vunpack.c.l.b16 %v216
    %v1480 = vunpack.c.l.b16 %v217
    %v1481 = vunpack.c.l.b16 %v218
    %v1482 = vunpack.c.l.b16 %v219
    %v1483 = vunpack.c.l.b16 %v220
    %v1484 = vunpack.c.l.b16 %v221
    %v1485 = vunpack.c.l.b16 %v222
    %v1486 = vunpack.c.l.b16 %v223
    %v1487 = vunpack.c.l.b16 %v224
    %v1488 = vunpack.c.l.b16 %v225
    %v1489 = vunpack.c.l.b16 %v226
    %v1490 = vunpack.c.l.b16 %v227
    %v1491 = vunpack.c.l.b16 %v228
    %v1492 = vunpack.c.l.b16 %v229
    %v1493 = vunpack.c.l.b16 %v230
    %v1494 = vunpack.c.l.b16 %v231
    %v1495 = vunpack.c.l.b16 %v232
    %v1496 = vunpack.c.l.b16 %v233
    %v1497 = vunpack.c.l.b16 %v234
    %v1498 = vunpack.c.l.b16 %v235
    %v1499 = vunpack.c.l.b16 %v236
    %v1500 = vunpack.c.l.b16 %v237
    %v1501 = vunpack.c.l.b16 %v238
    %v1502 = vunpack.c.l.b16 %v239
    %v1503 = vunpack.c.l.b16 %v240
    %v1504 = vunpack.c.l.b16 %v241
    %v1505 = vunpack.c.l.b16 %v242
    %v1506 = vunpack.c.l.b16 %v243
    %v1507 = vunpack.c.l.b16 %v244
    %v1508 = vunpack.c.l.b16 %v245
    %v1509 = vunpack.c.l.b16 %v246
    %v1510 = vunpack.c.l.b16 %v247
    %v1511 = vunpack.c.l.b16 %v248
    %v1512 = vunpack.c.l.b16 %v249
    %v1513 = vunpack.c.l.b16 %v250
    %v1514 = vunpack.c.l.b16 %v251
    %v1515 = vunpack.c.l.b16 %v252
    %v1516 = vunpack.c.l.b16 %v253
    %v1517 = vunpack.c.l.b16 %v254
    %v1518 = vunpack.c.l.b16 %v255
    %v1519 = vunpack.c.l.b16 %v256
    %v1520 = vunpack.c.l.b16 %v257
    %v1521 = vunpack.c.l.b16 %v258
    %v1522 = vunpack.c.l.b16 %v259
    %v1523 = vunpack.c.l.b16 %v260
    %v1524 = vunpack.c.l.b16 %v261
    %v1525 = vunpack.c.l.b16 %v262
    %v1526 = vunpack.c.l.b16 %v263
    %v1527 = vunpack.c.l.b16 %v264
    %v1528 = vunpack.c.l.b16 %v265
    %v1529 = vunpack.c.l.b16 %v266
    %v1530 = vunpack.c.l.b16 %v267
    %v1531 = vunpack.c.l.b16 %v268
    %v1532 = vunpack.c.l.b16 %v269
    %v1533 = vunpack.c.l.b16 %v270
    %v1534 = vunpack.c.l.b16 %v271
    %v1535 = vunpack.c.l.b16 %v272
    %v1536 = vunpack.c.l.b16 %v273
    %v1537 = vunpack.c.l.b16 %v274
    %v1538 = vunpack.c.l.b16 %v275
    %v1539 = vunpack.c.l.b16 %v276
    %v1540 = vunpack.c.l.b16 %v277
    %v1541 = vunpack.c.l.b16 %v278
    %v1542 = vunpack.c.l.b16 %v279
    %v1543 = vunpack.c.l.b16 %v280
    %v1544 = vunpack.c.l.b16 %v281
    %v1545 = vunpack.c.l.b16 %v282
    %v1546 = vunpack.c.l.b16 %v283
    %v1547 = vunpack.c.l.b16 %v284
    %v1548 = vunpack.c.l.b16 %v285
    %v1549 = vunpack.c.l.b16 %v286
    %v1550 = vunpack.c.l.b16 %v287
    %v1551 = vunpack.c.l.b16 %v288
    %v1552 = vunpack.c.l.b16 %v289
    %v1553 = vunpack.c.l.b16 %v290
    %v1554 = vunpack.c.l.b16 %v291
    %v1555 = vunpack.c.l.b16 %v292
    %v1556 = vunpack.c.l.b16 %v293
    %v1557 = vunpack.c.l.b16 %v294
    %v1558 = vunpack.c.l.b16 %v295
    %v1559 = vunpack.c.l.b16 %v296
    %v1560 = vunpack.c.l.b16 %v297
    %v1561 = vunpack.c.l.b16 %v298
    %v1562 = vunpack.c.l.b16 %v299
    %v1563 = vunpack.c.l.b16 %v300
    %v1564 = vunpack.c.l.b16 %v301
    %v1565 = vunpack.c.l.b16 %v302
    %v1566 = vunpack.c.l.b16 %v303
    %v1567 = vunpack.c.l.b16 %v304
    %v1568 = vunpack.c.l.b16 %v305
    %v1569 = vunpack.c.l.b16 %v306
    %v1570 = vunpack.c.l.b16 %v307
    %v1571 = vunpack.c.l.b16 %v308
    %v1572 = vunpack.c.l.b16 %v309
    %v1573 = vunpack.c.l.b16 %v310
    %v1574 = vunpack.c.l.b16 %v311
    %v1575 = vunpack.c.l.b16 %v312
    %v1576 = vunpack.c.l.b16 %v313
    %v1577 = vunpack.c.l.b16 %v314
    %v1578 = vunpack.c.l.b16 %v315
    %v1579 = vunpack.c.l.b16 %v316
    %v1580 = vunpack.c.l.b16 %v317
    %v1581 = vunpack.c.l.b16 %v318
    %v1582 = vunpack.c.l.b16 %v319
    %v1583 = vunpack.c.l.b16 %v320
    %v1584 = vunpack.c.l.b16 %v321
    %v1585 = vunpack.c.l.b16 %v322
    %v1586 = vunpack.c.l.b16 %v323
    %v1587 = vunpack.c.l.b16 %v324
    %v1588 = vunpack.c.l.b16 %v325
    %v1589 = vunpack.c.l.b16 %v326
    %v1590 = vunpack.c.l.b16 %v327
    %v1591 = vunpack.c.l.b16 %v328
    %v1592 = vunpack.c.l.b16 %v329
    %v1593 = vunpack.c.l.b16 %v330
    %v1594 = vunpack.c.l.b16 %v331
    %v1595 = vunpack.c.l.b16 %v332
    %v1596 = vunpack.c.l.b16 %v333
    %v1597 = vunpack.c.l.b16 %v334
    %v1598 = vunpack.c.l.b16 %v335
    %v1599 = vunpack.c.l.b16 %v336
    %v1600 = vunpack.c.l.b16 %v337
    %v1601 = vunpack.c.l.b16 %v338
    %v1602 = vunpack.c.l.b16 %v339
    %v1603 = vunpack.c.l.b16 %v340
    %v1604 = vunpack.c.l.b16 %v341
    %v1605 = vunpack.c.l.b16 %v342
    %v1606 = vunpack.c.l.b16 %v343
    %v1607 = vunpack.c.l.b16 %v344
    %v1608 = vunpack.c.l.b16 %v345
    %v1609 = vunpack.c.l.b16 %v346
    %v1610 = vunpack.c.l.b16 %v347
    %v1611 = vunpack.c.l.b16 %v348
    %v1612 = vunpack.c.l.b16 %v349
    %v1613 = vunpack.c.l.b16 %v350
    %v1614 = vunpack.c.l.b16 %v351
    %v1615 = vunpack.c.l.b16 %v352
    %v1616 = vunpack.c.l.b16 %v353
    %v1617 = vunpack.c.l.b16 %v354
    %v1618 = vunpack.c.l.b16 %v355
    %v1619 = vunpack.c.l.b16 %v356
    %v1620 = vunpack.c.l.b16 %v357
    %v1621 = vunpack.c.l.b16 %v358
    %v1622 = vunpack.c.l.b16 %v359
    %v1623 = vunpack.c.l.b16 %v360
    %v1624 = vunpack.c.l.b16 %v361
    %v1625 = vunpack.c.l.b16 %v362
    %v1626 = vunpack.c.l.b16 %v363
    %v1627 = vunpack.c.l.b16 %v364
    %v1628 = vunpack.c.l.b16 %v365
    %v1629 = vunpack.c.l.b16 %v366
    %v1630 = vunpack.c.l.b16 %v367
    %v1631 = vunpack.c.l.b16 %v368
    %v1632 = vunpack.c.l.b16 %v369
    %v1633 = vunpack.c.l.b16 %v370
    %v1634 = vunpack.c.l.b16 %v371
    %v1635 = vunpack.c.l.b16 %v372
    %v1636 = vunpack.c.l.b16 %v373
    %v1637 = vunpack.c.l.b16 %v374
    %v1638 = vunpack.c.l.b16 %v375
    %v1639 = vunpack.c.l.b16 %v376
    %v1640 = vunpack.c.l.b16 %v377
    %v1641 = vunpack.c.l.b16 %v378
    %v1642 = vunpack.c.l.b16 %v379
    %v1643 = vunpack.c.l.b16 %v380
    %v1644 = vunpack.c.l.b16 %v381
    %v1645 = vunpack.c.l.b16 %v382
    %v1646 = vunpack.c.l.b16 %v383
    %v1647 = vunpack.c.l.b16 %v384
    %v1648 = vunpack.c.l.b16 %v385
    %v1649 = vunpack.c.l.b16 %v386
    %v1650 = vunpack.c.l.b16 %v387
    %v1651 = vunpack.c.l.b16 %v388
    %v1652 = vunpack.c.l.b16 %v389
    %v1653 = vunpack.c.l.b16 %v390
    %v1654 = vunpack.c.l.b16 %v391
    %v1655 = vunpack.c.l.b16 %v392
    %v1656 = vunpack.c.l.b16 %v393
    %v1657 = vunpack.c.l.b16 %v394
    %v1658 = vunpack.c.l.b16 %v395
    %v1659 = vunpack.c.l.b16 %v396
    %v1660 = vunpack.c.l.b16 %v397
    %v1661 = vunpack.c.l.b16 %v398
    %v1662 = vunpack.c.l.b16 %v399
    %v1663 = vunpack.c.l.b16 %v400
    %v1664 = vunpack.c.l.b16 %v401
    %v1665 = vunpack.c.l.b16 %v402
    %v1666 = vunpack.c.l.b16 %v403
    %v1667 = vunpack.c.l.b16 %v404
    %v1668 = vunpack.c.l.b16 %v405
    %v1669 = vunpack.c.l.b16 %v406
    %v1670 = vunpack.c.l.b16 %v407
    %v1671 = vunpack.c.l.b16 %v408
    %v1672 = vunpack.c.l.b16 %v409
    %v1673 = vunpack.c.l.b16 %v410
    %v1674 = vunpack.c.l.b16 %v411
    %v1675 = vunpack.c.l.b16 %v412
    %v1676 = vunpack.c.l.b16 %v413
    %v1677 = vunpack.c.l.b16 %v414
    %v1678 = vunpack.c.l.b16 %v415
    %v1679 = vunpack.c.l.b16 %v416
    %v1680 = vunpack.c.l.b16 %v417
    %v1681 = vunpack.c.l.b16 %v418
    %v1682 = vunpack.c.l.b16 %v419
    %v1683 = vunpack.c.l.b16 %v420
    %v1684 = vunpack.c.l.b16 %v421
    %v1685 = vunpack.c.l.b16 %v422
    %v1686 = vunpack.c.l.b16 %v423
    %v1687 = vunpack.c.l.b16 %v424
    %v1688 = vunpack.c.l.b16 %v425
    %v1689 = vunpack.c.l.b16 %v426
    %v1690 = vunpack.c.l.b16 %v427
    %v1691 = vunpack.c.l.b16 %v428
    %v1692 = vunpack.c.l.b16 %v429
    %v1693 = vunpack.c.l.b16 %v430
    %v1694 = vunpack.c.l.b16 %v431
    %v1695 = vunpack.c.l.b16 %v432
    %v1696 = vunpack.c.l.b16 %v433
    %v1697 = vunpack.c.l.b16 %v434
    %v1698 = vunpack.c.l.b16 %v435
    %v1699 = vunpack.c.l.b16 %v436
    %v1700 = vunpack.c.l.b16 %v437
    %v1701 = vunpack.c.l.b16 %v438
    %v1702 = vunpack.c.l.b16 %v439
    %v1703 = vunpack.c.l.b16 %v440
    %v1704 = vunpack.c.l.b16 %v441
    %v1705 = vunpack.c.l.b16 %v442
    %v1706 = vunpack.c.l.b16 %v443
    %v1707 = vunpack.c.l.b16 %v444
    %v1708 = vunpack.c.l.b16 %v445
    %v1709 = vunpack.c.l.b16 %v446
    %v1710 = vunpack.c.l.b16 %v447
    %v1711 = vunpack.c.l.b16 %v448
    %v1712 = vunpack.c.l.b16 %v449
    %v1713 = vunpack.c.l.b16 %v450
    %v1714 = vunpack.c.l.b16 %v451
    %v1715 = vunpack.c.l.b16 %v452
    %v1716 = vunpack.c.l.b16 %v453
    %v1717 = vunpack.c.l.b16 %v454
    %v1718 = vunpack.c.l.b16 %v455
    %v1719 = vunpack.c.l.b16 %v456
    %v1720 = vunpack.c.l.b16 %v457
    %v1721 = vunpack.c.l.b16 %v458
    %v1722 = vunpack.c.l.b16 %v459
    %v1723 = vunpack.c.l.b16 %v460
    %v1724 = vunpack.c.l.b16 %v461
    %v1725 = vunpack.c.l.b16 %v462
    %v1726 = vunpack.c.l.b16 %v463
    %v1727 = vunpack.c.l.b16 %v464
    %v1728 = vunpack.c.l.b16 %v465
    %v1729 = vunpack.c.l.b16 %v466
    %v1730 = vunpack.c.l.b16 %v467
    %v1731 = vunpack.c.l.b16 %v468
    %v1732 = vunpack.c.l.b16 %v469
    %v1733 = vunpack.c.l.b16 %v470
    %v1734 = vunpack.c.l.b16 %v471
    %v1735 = vunpack.c.l.b16 %v472
    %v1736 = vunpack.c.l.b16 %v473
    %v1737 = vunpack.c.l.b16 %v474
    %v1738 = vunpack.c.l.b16 %v475
    %v1739 = vunpack.c.l.b16 %v476
    %v1740 = vunpack.c.l.b16 %v477
    %v1741 = vunpack.c.l.b16 %v478
    %v1742 = vunpack.c.l.b16 %v479
    %v1743 = vunpack.c.l.b16 %v480
    %v1744 = vunpack.c.l.b16 %v481
    %v1745 = vunpack.c.l.b16 %v482
    %v1746 = vunpack.c.l.b16 %v483
    %v1747 = vunpack.c.l.b16 %v484
    %v1748 = vunpack.c.l.b16 %v485
    %v1749 = vunpack.c.l.b16 %v486
    %v1750 = vunpack.c.l.b16 %v487
    %v1751 = vunpack.c.l.b16 %v488
    %v1752 = vunpack.c.l.b16 %v489
    %v1753 = vunpack.c.l.b16 %v490
    %v1754 = vunpack.c.l.b16 %v491
    %v1755 = vunpack.c.l.b16 %v492
    %v1756 = vunpack.c.l.b16 %v493
    %v1757 = vunpack.c.l.b16 %v494
    %v1758 = vunpack.c.l.b16 %v495
    %v1759 = vunpack.c.l.b16 %v496
    %v1760 = vunpack.c.l.b16 %v497
    %v1761 = vunpack.c.l.b16 %v498
    %v1762 = vunpack.c.l.b16 %v499
    %v1763 = vunpack.c.l.b16 %v500
    %v1764 = vunpack.c.l.b16 %v501
    %v1765 = vunpack.c.l.b16 %v502
    %v1766 = vunpack.c.l.b16 %v503
    %v1767 = vunpack.c.l.b16 %v504
    %v1768 = vunpack.c.l.b16 %v505
    %v1769 = vunpack.c.l.b16 %v506
    %v1770 = vunpack.c.l.b16 %v507
    %v1771 = vunpack.c.l.b16 %v508
    %v1772 = vunpack.c.l.b16 %v509
    %v1773 = vunpack.c.l.b16 %v510
    %v1774 = vunpack.c.l.b16 %v511
    %v1775 = vunpack.c.l.b16 %v512
    %v1776 = vunpack.c.l.b16 %v513
    %v1777 = vunpack.c.l.b16 %v514
    %v1778 = vunpack.c.l.b16 %v515
    %v1779 = vunpack.c.l.b16 %v516
    %v1780 = vunpack.c.l.b16 %v517
    %v1781 = vunpack.c.l.b16 %v518
    %v1782 = vunpack.c.l.b16 %v519
    %v1783 = vunpack.c.l.b16 %v520
    %v1784 = vunpack.c.l.b16 %v521
    %v1785 = vunpack.c.l.b16 %v522
    %v1786 = vunpack.c.l.b16 %v523
    %v1787 = vunpack.c.l.b16 %v524
    %v1788 = vunpack.c.l.b16 %v525
    %v1789 = vunpack.c.l.b16 %v526
    %v1790 = vunpack.c.l.b16 %v527
    %v1791 = vunpack.c.l.b16 %v528
    %v1792 = vunpack.c.l.b16 %v529
    %v1793 = vunpack.c.l.b16 %v530
    %v1794 = vunpack.c.l.b16 %v531
    %v1795 = vpack.c.b16 %v1284, %v1283
    %v1796 = vpack.c.b16 %v1286, %v1285
    %v1797 = vpack.c.b16 %v1288, %v1287
    %v1798 = vpack.c.b16 %v1290, %v1289
    %v1799 = vpack.c.b16 %v1292, %v1291
    %v1800 = vpack.c.b16 %v1294, %v1293
    %v1801 = vpack.c.b16 %v1296, %v1295
    %v1802 = vpack.c.b16 %v1298, %v1297
    %v1803 = vpack.c.b16 %v1300, %v1299
    %v1804 = vpack.c.b16 %v1302, %v1301
    %v1805 = vpack.c.b16 %v1304, %v1303
    %v1806 = vpack.c.b16 %v1306, %v1305
    %v1807 = vpack.c.b16 %v1308, %v1307
    %v1808 = vpack.c.b16 %v1310, %v1309
    %v1809 = vpack.c.b16 %v1312, %v1311
    %v1810 = vpack.c.b16 %v1314, %v1313
    %v1811 = vpack.c.b16 %v1316, %v1315
    %v1812 = vpack.c.b16 %v1318, %v1317
    %v1813 = vpack.c.b16 %v1320, %v1319
    %v1814 = vpack.c.b16 %v1322, %v1321
    %v1815 = vpack.c.b16 %v1324, %v1323
    %v1816 = vpack.c.b16 %v1326, %v1325
    %v1817 = vpack.c.b16 %v1328, %v1327
    %v1818 = vpack.c.b16 %v1330, %v1329
    %v1819 = vpack.c.b16 %v1332, %v1331
    %v1820 = vpack.c.b16 %v1334, %v1333
    %v1821 = vpack.c.b16 %v1336, %v1335
    %v1822 = vpack.c.b16 %v1338, %v1337
    %v1823 = vpack.c.b16 %v1340, %v1339
    %v1824 = vpack.c.b16 %v1342, %v1341
    %v1825 = vpack.c.b16 %v1344, %v1343
    %v1826 = vpack.c.b16 %v1346, %v1345
    %v1827 = vpack.c.b16 %v1348, %v1347
    %v1828 = vpack.c.b16 %v1350, %v1349
    %v1829 = vpack.c.b16 %v1352, %v1351
    %v1830 = vpack.c.b16 %v1354, %v1353
    %v1831 = vpack.c.b16 %v1356, %v1355
    %v1832 = vpack.c.b16 %v1358, %v1357
    %v1833 = vpack.c.b16 %v1360, %v1359
    %v1834 = vpack.c.b16 %v1362, %v1361
    %v1835 = vpack.c.b16 %v1364, %v1363
    %v1836 = vpack.c.b16 %v1366, %v1365
    %v1837 = vpack.c.b16 %v1368, %v1367
    %v1838 = vpack.c.b16 %v1370, %v1369
    %v1839 = vpack.c.b16 %v1372, %v1371
    %v1840 = vpack.c.b16 %v1374, %v1373
    %v1841 = vpack.c.b16 %v1376, %v1375
    %v1842 = vpack.c.b16 %v1378, %v1377
    %v1843 = vpack.c.b16 %v1380, %v1379
    %v1844 = vpack.c.b16 %v1382, %v1381
    %v1845 = vpack.c.b16 %v1384, %v1383
    %v1846 = vpack.c.b16 %v1386, %v1385
    %v1847 = vpack.c.b16 %v1388, %v1387
    %v1848 = vpack.c.b16 %v1390, %v1389
    %v1849 = vpack.c.b16 %v1392, %v1391
    %v1850 = vpack.c.b16 %v1394, %v1393
    %v1851 = vpack.c.b16 %v1396, %v1395
    %v1852 = vpack.c.b16 %v1398, %v1397
    %v1853 = vpack.c.b16 %v1400, %v1399
    %v1854 = vpack.c.b16 %v1402, %v1401
    %v1855 = vpack.c.b16 %v1404, %v1403
    %v1856 = vpack.c.b16 %v1406, %v1405
    %v1857 = vpack.c.b16 %v1408, %v1407
    %v1858 = vpack.c.b16 %v1410, %v1409
    %v1859 = vpack.c.b16 %v1412, %v1411
    %v1860 = vpack.c.b16 %v1414, %v1413
    %v1861 = vpack.c.b16 %v1416, %v1415
    %v1862 = vpack.c.b16 %v1418, %v1417
    %v1863 = vpack.c.b16 %v1420, %v1419
    %v1864 = vpack.c.b16 %v1422, %v1421
    %v1865 = vpack.c.b16 %v1424, %v1423
    %v1866 = vpack.c.b16 %v1426, %v1425
    %v1867 = vpack.c.b16 %v1428, %v1427
    %v1868 = vpack.c.b16 %v1430, %v1429
    %v1869 = vpack.c.b16 %v1432, %v1431
    %v1870 = vpack.c.b16 %v1434, %v1433
    %v1871 = vpack.c.b16 %v1436, %v1435
    %v1872 = vpack.c.b16 %v1438, %v1437
    %v1873 = vpack.c.b16 %v1440, %v1439
    %v1874 = vpack.c.b16 %v1442, %v1441
    %v1875 = vpack.c.b16 %v1444, %v1443
    %v1876 = vpack.c.b16 %v1446, %v1445
    %v1877 = vpack.c.b16 %v1448, %v1447
    %v1878 = vpack.c.b16 %v1450, %v1449
    %v1879 = vpack.c.b16 %v1452, %v1451
    %v1880 = vpack.c.b16 %v1454, %v1453
    %v1881 = vpack.c.b16 %v1456, %v1455
    %v1882 = vpack.c.b16 %v1458, %v1457
    %v1883 = vpack.c.b16 %v1460, %v1459
    %v1884 = vpack.c.b16 %v1462, %v1461
    %v1885 = vpack.c.b16 %v1464, %v1463
    %v1886 = vpack.c.b16 %v1466, %v1465
    %v1887 = vpack.c.b16 %v1468, %v1467
    %v1888 = vpack.c.b16 %v1470, %v1469
    %v1889 = vpack.c.b16 %v1472, %v1471
    %v1890 = vpack.c.b16 %v1474, %v1473
    %v1891 = vpack.c.b16 %v1476, %v1475
    %v1892 = vpack.c.b16 %v1478, %v1477
    %v1893 = vpack.c.b16 %v1480, %v1479
    %v1894 = vpack.c.b16 %v1482, %v1481
    %v1895 = vpack.c.b16 %v1484, %v1483
    %v1896 = vpack.c.b16 %v1486, %v1485
    %v1897 = vpack.c.b16 %v1488, %v1487
    %v1898 = vpack.c.b16 %v1490, %v1489
    %v1899 = vpack.c.b16 %v1492, %v1491
    %v1900 = vpack.c.b16 %v1494, %v1493
    %v1901 = vpack.c.b16 %v1496, %v1495
    %v1902 = vpack.c.b16 %v1498, %v1497
    %v1903 = vpack.c.b16 %v1500, %v1499
    %v1904 = vpack.c.b16 %v1502, %v1501
    %v1905 = vpack.c.b16 %v1504, %v1503
    %v1906 = vpack.c.b16 %v1506, %v1505
    %v1907 = vpack.c.b16 %v1508, %v1507
    %v1908 = vpack.c.b16 %v1510, %v1509
    %v1909 = vpack.c.b16 %v1512, %v1511
    %v1910 = vpack.c.b16 %v1514, %v1513
    %v1911 = vpack.c.b16 %v1516, %v1515
    %v1912 = vpack.c.b16 %v1518, %v1517
    %v1913 = vpack.c.b16 %v1520, %v1519
    %v1914 = vpack.c.b16 %v1522, %v1521
    %v1915 = vpack.c.b16 %v1524, %v1523
    %v1916 = vpack.c.b16 %v1526, %v1525
    %v1917 = vpack.c.b16 %v1528, %v1527
    %v1918 = vpack.c.b16 %v1530, %v1529
    %v1919 = vpack.c.b16 %v1532, %v1531
    %v1920 = vpack.c.b16 %v1534, %v1533
    %v1921 = vpack.c.b16 %v1536, %v1535
    %v1922 = vpack.c.b16 %v1538, %v1537
    %v1923 = vpack.c.b16 %v1540, %v1539
    %v1924 = vpack.c.b16 %v1542, %v1541
    %v1925 = vpack.c.b16 %v1544, %v1543
    %v1926 = vpack.c.b16 %v1546, %v1545
    %v1927 = vpack.c.b16 %v1548, %v1547
    %v1928 = vpack.c.b16 %v1550, %v1549
    %v1929 = vpack.c.b16 %v1552, %v1551
    %v1930 = vpack.c.b16 %v1554, %v1553
    %v1931 = vpack.c.b16 %v1556, %v1555
    %v1932 = vpack.c.b16 %v1558, %v1557
    %v1933 = vpack.c.b16 %v1560, %v1559
    %v1934 = vpack.c.b16 %v1562, %v1561
    %v1935 = vpack.c.b16 %v1564, %v1563
    %v1936 = vpack.c.b16 %v1566, %v1565
    %v1937 = vpack.c.b16 %v1568, %v1567
    %v1938 = vpack.c.b16 %v1570, %v1569
    %v1939 = vpack.c.b16 %v1572, %v1571
    %v1940 = vpack.c.b16 %v1574, %v1573
    %v1941 = vpack.c.b16 %v1576, %v1575
    %v1942 = vpack.c.b16 %v1578, %v1577
    %v1943 = vpack.c.b16 %v1580, %v1579
    %v1944 = vpack.c.b16 %v1582, %v1581
    %v1945 = vpack.c.b16 %v1584, %v1583
    %v1946 = vpack.c.b16 %v1586, %v1585
    %v1947 = vpack.c.b16 %v1588, %v1587
    %v1948 = vpack.c.b16 %v1590, %v1589
    %v1949 = vpack.c.b16 %v1592, %v1591
    %v1950 = vpack.c.b16 %v1594, %v1593
    %v1951 = vpack.c.b16 %v1596, %v1595
    %v1952 = vpack.c.b16 %v1598, %v1597
    %v1953 = vpack.c.b16 %v1600, %v1599
    %v1954 = vpack.c.b16 %v1602, %v1601
    %v1955 = vpack.c.b16 %v1604, %v1603
    %v1956 = vpack.c.b16 %v1606, %v1605
    %v1957 = vpack.c.b16 %v1608, %v1607
    %v1958 = vpack.c.b16 %v1610, %v1609
    %v1959 = vpack.c.b16 %v1612, %v1611
    %v1960 = vpack.c.b16 %v1614, %v1613
    %v1961 = vpack.c.b16 %v1616, %v1615
    %v1962 = vpack.c.b16 %v1618, %v1617
    %v1963 = vpack.c.b16 %v1620, %v1619
    %v1964 = vpack.c.b16 %v1622, %v1621
    %v1965 = vpack.c.b16 %v1624, %v1623
    %v1966 = vpack.c.b16 %v1626, %v1625
    %v1967 = vpack.c.b16 %v1628, %v1627
    %v1968 = vpack.c.b16 %v1630, %v1629
    %v1969 = vpack.c.b16 %v1632, %v1631
    %v1970 = vpack.c.b16 %v1634, %v1633
    %v1971 = vpack.c.b16 %v1636, %v1635
    %v1972 = vpack.c.b16 %v1638, %v1637
    %v1973 = vpack.c.b16 %v1640, %v1639
    %v1974 = vpack.c.b16 %v1642, %v1641
    %v1975 = vpack.c.b16 %v1644, %v1643
    %v1976 = vpack.c.b16 %v1646, %v1645
    %v1977 = vpack.c.b16 %v1648, %v1647
    %v1978 = vpack.c.b16 %v1650, %v1649
    %v1979 = vpack.c.b16 %v1652, %v1651
    %v1980 = vpack.c.b16 %v1654, %v1653
    %v1981 = vpack.c.b16 %v1656, %v1655
    %v1982 = vpack.c.b16 %v1658, %v1657
    %v1983 = vpack.c.b16 %v1660, %v1659
    %v1984 = vpack.c.b16 %v1662, %v1661
    %v1985 = vpack.c.b16 %v1664, %v1663
    %v1986 = vpack.c.b16 %v1666, %v1665
    %v1987 = vpack.c.b16 %v1668, %v1667
    %v1988 = vpack.c.b16 %v1670, %v1669
    %v1989 = vpack.c.b16 %v1672, %v1671
    %v1990 = vpack.c.b16 %v1674, %v1673
    %v1991 = vpack.c.b16 %v1676, %v1675
    %v1992 = vpack.c.b16 %v1678, %v1677
    %v1993 = vpack.c.b16 %v1680, %v1679
    %v1994 = vpack.c.b16 %v1682, %v1681
    %v1995 = vpack.c.b16 %v1684, %v1683
    %v1996 = vpack.c.b16 %v1686, %v1685
    %v1997 = vpack.c.b16 %v1688, %v1687
    %v1998 = vpack.c.b16 %v1690, %v1689
    %v1999 = vpack.c.b16 %v1692, %v1691
    %v2000 = vpack.c.b16 %v1694, %v1693
    %v2001 = vpack.c.b16 %v1696, %v1695
    %v2002 = vpack.c.b16 %v1698, %v1697
    %v2003 = vpack.c.b16 %v1700, %v1699
    %v2004 = vpack.c.b16 %v1702, %v1701
    %v2005 = vpack.c.b16 %v1704, %v1703
    %v2006 = vpack.c.b16 %v1706, %v1705
    %v2007 = vpack.c.b16 %v1708, %v1707
    %v2008 = vpack.c.b16 %v1710, %v1709
    %v2009 = vpack.c.b16 %v1712, %v1711
    %v2010 = vpack.c.b16 %v1714, %v1713
    %v2011 = vpack.c.b16 %v1716, %v1715
    %v2012 = vpack.c.b16 %v1718, %v1717
    %v2013 = vpack.c.b16 %v1720, %v1719
    %v2014 = vpack.c.b16 %v1722, %v1721
    %v2015 = vpack.c.b16 %v1724, %v1723
    %v2016 = vpack.c.b16 %v1726, %v1725
    %v2017 = vpack.c.b16 %v1728, %v1727
    %v2018 = vpack.c.b16 %v1730, %v1729
    %v2019 = vpack.c.b16 %v1732, %v1731
    %v2020 = vpack.c.b16 %v1734, %v1733
    %v2021 = vpack.c.b16 %v1736, %v1735
    %v2022 = vpack.c.b16 %v1738, %v1737
    %v2023 = vpack.c.b16 %v1740, %v1739
    %v2024 = vpack.c.b16 %v1742, %v1741
    %v2025 = vpack.c.b16 %v1744, %v1743
    %v2026 = vpack.c.b16 %v1746, %v1745
    %v2027 = vpack.c.b16 %v1748, %v1747
    %v2028 = vpack.c.b16 %v1750, %v1749
    %v2029 = vpack.c.b16 %v1752, %v1751
    %v2030 = vpack.c.b16 %v1754, %v1753
    %v2031 = vpack.c.b16 %v1756, %v1755
    %v2032 = vpack.c.b16 %v1758, %v1757
    %v2033 = vpack.c.b16 %v1760, %v1759
    %v2034 = vpack.c.b16 %v1762, %v1761
    %v2035 = vpack.c.b16 %v1764, %v1763
    %v2036 = vpack.c.b16 %v1766, %v1765
    %v2037 = vpack.c.b16 %v1768, %v1767
    %v2038 = vpack.c.b16 %v1770, %v1769
    %v2039 = vpack.c.b16 %v1772, %v1771
    %v2040 = vpack.c.b16 %v1774, %v1773
    %v2041 = vpack.c.b16 %v1776, %v1775
    %v2042 = vpack.c.b16 %v1778, %v1777
    %v2043 = vpack.c.b16 %v1780, %v1779
    %v2044 = vpack.c.b16 %v1782, %v1781
    %v2045 = vpack.c.b16 %v1784, %v1783
    %v2046 = vpack.c.b16 %v1786, %v1785
    %v2047 = vpack.c.b16 %v1788, %v1787
    %v2048 = vpack.c.b16 %v1790, %v1789
    %v2049 = vpack.c.b16 %v1792, %v1791
    %v2050 = vpack.c.b16 %v1794, %v1793
    %2307 = vmatprep.subr.bf16.mxu0 0
    %2308 = vmatpush1.bf16.msra.mxu0 %v1802
    %2309 = vmatprep.subr.bf16.mxu0 0
    %2310 = vmatpush1.bf16.msra.mxu0 %v1801
    %2311 = vmatprep.subr.bf16.mxu0 0
    %2312 = vmatpush1.bf16.msra.mxu0 %v1800
    %2313 = vmatprep.subr.bf16.mxu0 0
    %2314 = vmatpush1.bf16.msra.mxu0 %v1799
    %2315 = vmatprep.subr.bf16.mxu0 0
    %2316 = vmatpush1.bf16.msra.mxu0 %v1798
    %2317 = vmatprep.subr.bf16.mxu0 0
    %2318 = vmatpush1.bf16.msra.mxu0 %v1797
    %2319 = vmatprep.subr.bf16.mxu0 0
    %2320 = vmatpush1.bf16.msra.mxu0 %v1796
    %2321 = vmatprep.subr.bf16.mxu0 0
    %2322 = vmatpush1.bf16.msra.mxu0 %v1795
    %2323 = vmatprep.subr.bf16.mxu0 0
    %2324 = vmatpush2.bf16.msra.mxu0 %v1810
    %2325 = vmatprep.subr.bf16.mxu0 0
    %2326 = vmatpush2.bf16.msra.mxu0 %v1809
    %2327 = vmatprep.subr.bf16.mxu0 0
    %2328 = vmatpush2.bf16.msra.mxu0 %v1808
    %2329 = vmatprep.subr.bf16.mxu0 0
    %2330 = vmatpush2.bf16.msra.mxu0 %v1807
    %2331 = vmatprep.subr.bf16.mxu0 0
    %2332 = vmatpush2.bf16.msra.mxu0 %v1806
    %2333 = vmatprep.subr.bf16.mxu0 0
    %2334 = vmatpush2.bf16.msra.mxu0 %v1805
    %2335 = vmatprep.subr.bf16.mxu0 0
    %2336 = vmatpush2.bf16.msra.mxu0 %v1804
    %2337 = vmatprep.subr.bf16.mxu0 0
    %2338 = vmatpush2.bf16.msra.mxu0 %v1803
    %2339 = vmatprep.mubr.bf16.mxu0 %v580
    %2340 = vmatmul.mubr.bf16.gmra.mxu0 %v566
    %v2341 = vpop.f32.mrf.mxu0
    %v2342 = vadd.f32 %v537, %v2341
    %v2343 = vpop.f32.mrf.mxu0
    %v2344 = vpop.f32.mrf.mxu0
    %v2345 = vpop.f32.mrf.mxu0
    %2346 = vdwg.mxu0
    %2347 = vmatprep.subr.bf16.mxu0 0
    %2348 = vmatpush1.bf16.msra.mxu0 %v1818
    %2349 = vmatprep.subr.bf16.mxu0 0
    %2350 = vmatpush1.bf16.msra.mxu0 %v1817
    %2351 = vmatprep.subr.bf16.mxu0 0
    %2352 = vmatpush1.bf16.msra.mxu0 %v1816
    %2353 = vmatprep.subr.bf16.mxu0 0
    %2354 = vmatpush1.bf16.msra.mxu0 %v1815
    %2355 = vmatprep.subr.bf16.mxu0 0
    %2356 = vmatpush1.bf16.msra.mxu0 %v1814
    %2357 = vmatprep.subr.bf16.mxu0 0
    %2358 = vmatpush1.bf16.msra.mxu0 %v1813
    %2359 = vmatprep.subr.bf16.mxu0 0
    %2360 = vmatpush1.bf16.msra.mxu0 %v1812
    %2361 = vmatprep.subr.bf16.mxu0 0
    %2362 = vmatpush1.bf16.msra.mxu0 %v1811
    %2363 = vmatprep.subr.bf16.mxu0 0
    %2364 = vmatpush2.bf16.msra.mxu0 %v1826
    %2365 = vmatprep.subr.bf16.mxu0 0
    %2366 = vmatpush2.bf16.msra.mxu0 %v1825
    %2367 = vmatprep.subr.bf16.mxu0 0
    %2368 = vmatpush2.bf16.msra.mxu0 %v1824
    %2369 = vmatprep.subr.bf16.mxu0 0
    %2370 = vmatpush2.bf16.msra.mxu0 %v1823
    %2371 = vmatprep.subr.bf16.mxu0 0
    %2372 = vmatpush2.bf16.msra.mxu0 %v1822
    %2373 = vmatprep.subr.bf16.mxu0 0
    %2374 = vmatpush2.bf16.msra.mxu0 %v1821
    %2375 = vmatprep.subr.bf16.mxu0 0
    %2376 = vmatpush2.bf16.msra.mxu0 %v1820
    %2377 = vmatprep.subr.bf16.mxu0 0
    %2378 = vmatpush2.bf16.msra.mxu0 %v1819
    %2379 = vmatprep.mubr.bf16.mxu0 %v590
    %2380 = vmatmul.mubr.bf16.gmra.mxu0 %v588
    %v2381 = vpop.f32.mrf.mxu0
    %v2382 = vadd.f32 %v2342, %v2381
    %v2383 = vpop.f32.mrf.mxu0
    %v2384 = vpop.f32.mrf.mxu0
    %v2385 = vpop.f32.mrf.mxu0
    %2386 = vdwg.mxu0
    %2387 = vmatprep.subr.bf16.mxu0 0
    %2388 = vmatpush1.bf16.msra.mxu0 %v1834
    %2389 = vmatprep.subr.bf16.mxu0 0
    %2390 = vmatpush1.bf16.msra.mxu0 %v1833
    %2391 = vmatprep.subr.bf16.mxu0 0
    %2392 = vmatpush1.bf16.msra.mxu0 %v1832
    %2393 = vmatprep.subr.bf16.mxu0 0
    %2394 = vmatpush1.bf16.msra.mxu0 %v1831
    %2395 = vmatprep.subr.bf16.mxu0 0
    %2396 = vmatpush1.bf16.msra.mxu0 %v1830
    %2397 = vmatprep.subr.bf16.mxu0 0
    %2398 = vmatpush1.bf16.msra.mxu0 %v1829
    %2399 = vmatprep.subr.bf16.mxu0 0
    %2400 = vmatpush1.bf16.msra.mxu0 %v1828
    %2401 = vmatprep.subr.bf16.mxu0 0
    %2402 = vmatpush1.bf16.msra.mxu0 %v1827
    %2403 = vmatprep.subr.bf16.mxu0 0
    %2404 = vmatpush2.bf16.msra.mxu0 %v1842
    %2405 = vmatprep.subr.bf16.mxu0 0
    %2406 = vmatpush2.bf16.msra.mxu0 %v1841
    %2407 = vmatprep.subr.bf16.mxu0 0
    %2408 = vmatpush2.bf16.msra.mxu0 %v1840
    %2409 = vmatprep.subr.bf16.mxu0 0
    %2410 = vmatpush2.bf16.msra.mxu0 %v1839
    %2411 = vmatprep.subr.bf16.mxu0 0
    %2412 = vmatpush2.bf16.msra.mxu0 %v1838
    %2413 = vmatprep.subr.bf16.mxu0 0
    %2414 = vmatpush2.bf16.msra.mxu0 %v1837
    %2415 = vmatprep.subr.bf16.mxu0 0
    %2416 = vmatpush2.bf16.msra.mxu0 %v1836
    %2417 = vmatprep.subr.bf16.mxu0 0
    %2418 = vmatpush2.bf16.msra.mxu0 %v1835
    %2419 = vmatprep.mubr.bf16.mxu0 %v587
    %2420 = vmatmul.mubr.bf16.gmra.mxu0 %v573
    %v2421 = vpop.f32.mrf.mxu0
    %v2422 = vadd.f32 %v2382, %v2421
    %v2423 = vpop.f32.mrf.mxu0
    %v2424 = vpop.f32.mrf.mxu0
    %v2425 = vpop.f32.mrf.mxu0
    %2426 = vdwg.mxu0
    %2427 = vmatprep.subr.bf16.mxu0 0
    %2428 = vmatpush1.bf16.msra.mxu0 %v1850
    %2429 = vmatprep.subr.bf16.mxu0 0
    %2430 = vmatpush1.bf16.msra.mxu0 %v1849
    %2431 = vmatprep.subr.bf16.mxu0 0
    %2432 = vmatpush1.bf16.msra.mxu0 %v1848
    %2433 = vmatprep.subr.bf16.mxu0 0
    %2434 = vmatpush1.bf16.msra.mxu0 %v1847
    %2435 = vmatprep.subr.bf16.mxu0 0
    %2436 = vmatpush1.bf16.msra.mxu0 %v1846
    %2437 = vmatprep.subr.bf16.mxu0 0
    %2438 = vmatpush1.bf16.msra.mxu0 %v1845
    %2439 = vmatprep.subr.bf16.mxu0 0
    %2440 = vmatpush1.bf16.msra.mxu0 %v1844
    %2441 = vmatprep.subr.bf16.mxu0 0
    %2442 = vmatpush1.bf16.msra.mxu0 %v1843
    %2443 = vmatprep.subr.bf16.mxu0 0
    %2444 = vmatpush2.bf16.msra.mxu0 %v1858
    %2445 = vmatprep.subr.bf16.mxu0 0
    %2446 = vmatpush2.bf16.msra.mxu0 %v1857
    %2447 = vmatprep.subr.bf16.mxu0 0
    %2448 = vmatpush2.bf16.msra.mxu0 %v1856
    %2449 = vmatprep.subr.bf16.mxu0 0
    %2450 = vmatpush2.bf16.msra.mxu0 %v1855
    %2451 = vmatprep.subr.bf16.mxu0 0
    %2452 = vmatpush2.bf16.msra.mxu0 %v1854
    %2453 = vmatprep.subr.bf16.mxu0 0
    %2454 = vmatpush2.bf16.msra.mxu0 %v1853
    %2455 = vmatprep.subr.bf16.mxu0 0
    %2456 = vmatpush2.bf16.msra.mxu0 %v1852
    %2457 = vmatprep.subr.bf16.mxu0 0
    %2458 = vmatpush2.bf16.msra.mxu0 %v1851
    %2459 = vmatprep.mubr.bf16.mxu0 %v591
    %2460 = vmatmul.mubr.bf16.gmra.mxu0 %v589
    %v2461 = vpop.f32.mrf.mxu0
    %v2462 = vadd.f32 %v2422, %v2461
    %v2463 = vpop.f32.mrf.mxu0
    %v2464 = vpop.f32.mrf.mxu0
    %v2465 = vpop.f32.mrf.mxu0
    %2466 = vdwg.mxu0
    %2467 = vmatprep.subr.bf16.mxu0 0
    %2468 = vmatpush1.bf16.msra.mxu0 %v1866
    %2469 = vmatprep.subr.bf16.mxu0 0
    %2470 = vmatpush1.bf16.msra.mxu0 %v1865
    %2471 = vmatprep.subr.bf16.mxu0 0
    %2472 = vmatpush1.bf16.msra.mxu0 %v1864
    %2473 = vmatprep.subr.bf16.mxu0 0
    %2474 = vmatpush1.bf16.msra.mxu0 %v1863
    %2475 = vmatprep.subr.bf16.mxu0 0
    %2476 = vmatpush1.bf16.msra.mxu0 %v1862
    %2477 = vmatprep.subr.bf16.mxu0 0
    %2478 = vmatpush1.bf16.msra.mxu0 %v1861
    %2479 = vmatprep.subr.bf16.mxu0 0
    %2480 = vmatpush1.bf16.msra.mxu0 %v1860
    %2481 = vmatprep.subr.bf16.mxu0 0
    %2482 = vmatpush1.bf16.msra.mxu0 %v1859
    %2483 = vmatprep.subr.bf16.mxu0 0
    %2484 = vmatpush2.bf16.msra.mxu0 %v1874
    %2485 = vmatprep.subr.bf16.mxu0 0
    %2486 = vmatpush2.bf16.msra.mxu0 %v1873
    %2487 = vmatprep.subr.bf16.mxu0 0
    %2488 = vmatpush2.bf16.msra.mxu0 %v1872
    %2489 = vmatprep.subr.bf16.mxu0 0
    %2490 = vmatpush2.bf16.msra.mxu0 %v1871
    %2491 = vmatprep.subr.bf16.mxu0 0
    %2492 = vmatpush2.bf16.msra.mxu0 %v1870
    %2493 = vmatprep.subr.bf16.mxu0 0
    %2494 = vmatpush2.bf16.msra.mxu0 %v1869
    %2495 = vmatprep.subr.bf16.mxu0 0
    %2496 = vmatpush2.bf16.msra.mxu0 %v1868
    %2497 = vmatprep.subr.bf16.mxu0 0
    %2498 = vmatpush2.bf16.msra.mxu0 %v1867
    %2499 = vmatprep.mubr.bf16.mxu0 %v629
    %2500 = vmatmul.mubr.bf16.gmra.mxu0 %v615
    %v2501 = vpop.f32.mrf.mxu0
    %v2502 = vadd.f32 %v2462, %v2501
    %v2503 = vpop.f32.mrf.mxu0
    %v2504 = vpop.f32.mrf.mxu0
    %v2505 = vpop.f32.mrf.mxu0
    %2506 = vdwg.mxu0
    %2507 = vmatprep.subr.bf16.mxu0 0
    %2508 = vmatpush1.bf16.msra.mxu0 %v1882
    %2509 = vmatprep.subr.bf16.mxu0 0
    %2510 = vmatpush1.bf16.msra.mxu0 %v1881
    %2511 = vmatprep.subr.bf16.mxu0 0
    %2512 = vmatpush1.bf16.msra.mxu0 %v1880
    %2513 = vmatprep.subr.bf16.mxu0 0
    %2514 = vmatpush1.bf16.msra.mxu0 %v1879
    %2515 = vmatprep.subr.bf16.mxu0 0
    %2516 = vmatpush1.bf16.msra.mxu0 %v1878
    %2517 = vmatprep.subr.bf16.mxu0 0
    %2518 = vmatpush1.bf16.msra.mxu0 %v1877
    %2519 = vmatprep.subr.bf16.mxu0 0
    %2520 = vmatpush1.bf16.msra.mxu0 %v1876
    %2521 = vmatprep.subr.bf16.mxu0 0
    %2522 = vmatpush1.bf16.msra.mxu0 %v1875
    %2523 = vmatprep.subr.bf16.mxu0 0
    %2524 = vmatpush2.bf16.msra.mxu0 %v1890
    %2525 = vmatprep.subr.bf16.mxu0 0
    %2526 = vmatpush2.bf16.msra.mxu0 %v1889
    %2527 = vmatprep.subr.bf16.mxu0 0
    %2528 = vmatpush2.bf16.msra.mxu0 %v1888
    %2529 = vmatprep.subr.bf16.mxu0 0
    %2530 = vmatpush2.bf16.msra.mxu0 %v1887
    %2531 = vmatprep.subr.bf16.mxu0 0
    %2532 = vmatpush2.bf16.msra.mxu0 %v1886
    %2533 = vmatprep.subr.bf16.mxu0 0
    %2534 = vmatpush2.bf16.msra.mxu0 %v1885
    %2535 = vmatprep.subr.bf16.mxu0 0
    %2536 = vmatpush2.bf16.msra.mxu0 %v1884
    %2537 = vmatprep.subr.bf16.mxu0 0
    %2538 = vmatpush2.bf16.msra.mxu0 %v1883
    %2539 = vmatprep.mubr.bf16.mxu0 %v639
    %2540 = vmatmul.mubr.bf16.gmra.mxu0 %v637
    %v2541 = vpop.f32.mrf.mxu0
    %v2542 = vadd.f32 %v2502, %v2541
    %v2543 = vpop.f32.mrf.mxu0
    %v2544 = vpop.f32.mrf.mxu0
    %v2545 = vpop.f32.mrf.mxu0
    %2546 = vdwg.mxu0
    %2547 = vmatprep.subr.bf16.mxu0 0
    %2548 = vmatpush1.bf16.msra.mxu0 %v1898
    %2549 = vmatprep.subr.bf16.mxu0 0
    %2550 = vmatpush1.bf16.msra.mxu0 %v1897
    %2551 = vmatprep.subr.bf16.mxu0 0
    %2552 = vmatpush1.bf16.msra.mxu0 %v1896
    %2553 = vmatprep.subr.bf16.mxu0 0
    %2554 = vmatpush1.bf16.msra.mxu0 %v1895
    %2555 = vmatprep.subr.bf16.mxu0 0
    %2556 = vmatpush1.bf16.msra.mxu0 %v1894
    %2557 = vmatprep.subr.bf16.mxu0 0
    %2558 = vmatpush1.bf16.msra.mxu0 %v1893
    %2559 = vmatprep.subr.bf16.mxu0 0
    %2560 = vmatpush1.bf16.msra.mxu0 %v1892
    %2561 = vmatprep.subr.bf16.mxu0 0
    %2562 = vmatpush1.bf16.msra.mxu0 %v1891
    %2563 = vmatprep.subr.bf16.mxu0 0
    %2564 = vmatpush2.bf16.msra.mxu0 %v1906
    %2565 = vmatprep.subr.bf16.mxu0 0
    %2566 = vmatpush2.bf16.msra.mxu0 %v1905
    %2567 = vmatprep.subr.bf16.mxu0 0
    %2568 = vmatpush2.bf16.msra.mxu0 %v1904
    %2569 = vmatprep.subr.bf16.mxu0 0
    %2570 = vmatpush2.bf16.msra.mxu0 %v1903
    %2571 = vmatprep.subr.bf16.mxu0 0
    %2572 = vmatpush2.bf16.msra.mxu0 %v1902
    %2573 = vmatprep.subr.bf16.mxu0 0
    %2574 = vmatpush2.bf16.msra.mxu0 %v1901
    %2575 = vmatprep.subr.bf16.mxu0 0
    %2576 = vmatpush2.bf16.msra.mxu0 %v1900
    %2577 = vmatprep.subr.bf16.mxu0 0
    %2578 = vmatpush2.bf16.msra.mxu0 %v1899
    %2579 = vmatprep.mubr.bf16.mxu0 %v636
    %2580 = vmatmul.mubr.bf16.gmra.mxu0 %v622
    %v2581 = vpop.f32.mrf.mxu0
    %v2582 = vadd.f32 %v2542, %v2581
    %v2583 = vpop.f32.mrf.mxu0
    %v2584 = vpop.f32.mrf.mxu0
    %v2585 = vpop.f32.mrf.mxu0
    %2586 = vdwg.mxu0
    %2587 = vmatprep.subr.bf16.mxu0 0
    %2588 = vmatpush1.bf16.msra.mxu0 %v1914
    %2589 = vmatprep.subr.bf16.mxu0 0
    %2590 = vmatpush1.bf16.msra.mxu0 %v1913
    %2591 = vmatprep.subr.bf16.mxu0 0
    %2592 = vmatpush1.bf16.msra.mxu0 %v1912
    %2593 = vmatprep.subr.bf16.mxu0 0
    %2594 = vmatpush1.bf16.msra.mxu0 %v1911
    %2595 = vmatprep.subr.bf16.mxu0 0
    %2596 = vmatpush1.bf16.msra.mxu0 %v1910
    %2597 = vmatprep.subr.bf16.mxu0 0
    %2598 = vmatpush1.bf16.msra.mxu0 %v1909
    %2599 = vmatprep.subr.bf16.mxu0 0
    %2600 = vmatpush1.bf16.msra.mxu0 %v1908
    %2601 = vmatprep.subr.bf16.mxu0 0
    %2602 = vmatpush1.bf16.msra.mxu0 %v1907
    %2603 = vmatprep.subr.bf16.mxu0 0
    %2604 = vmatpush2.bf16.msra.mxu0 %v1922
    %2605 = vmatprep.subr.bf16.mxu0 0
    %2606 = vmatpush2.bf16.msra.mxu0 %v1921
    %2607 = vmatprep.subr.bf16.mxu0 0
    %2608 = vmatpush2.bf16.msra.mxu0 %v1920
    %2609 = vmatprep.subr.bf16.mxu0 0
    %2610 = vmatpush2.bf16.msra.mxu0 %v1919
    %2611 = vmatprep.subr.bf16.mxu0 0
    %2612 = vmatpush2.bf16.msra.mxu0 %v1918
    %2613 = vmatprep.subr.bf16.mxu0 0
    %2614 = vmatpush2.bf16.msra.mxu0 %v1917
    %2615 = vmatprep.subr.bf16.mxu0 0
    %2616 = vmatpush2.bf16.msra.mxu0 %v1916
    %2617 = vmatprep.subr.bf16.mxu0 0
    %2618 = vmatpush2.bf16.msra.mxu0 %v1915
    %2619 = vmatprep.mubr.bf16.mxu0 %v640
    %2620 = vmatmul.mubr.bf16.gmra.mxu0 %v638
    %v2621 = vpop.f32.mrf.mxu0
    %v2622 = vadd.f32 %v2582, %v2621
    %v2623 = vpop.f32.mrf.mxu0
    %v2624 = vpop.f32.mrf.mxu0
    %v2625 = vpop.f32.mrf.mxu0
    %2626 = vdwg.mxu0
    %2627 = vmatprep.subr.bf16.mxu0 0
    %2628 = vmatpush1.bf16.msra.mxu0 %v1930
    %2629 = vmatprep.subr.bf16.mxu0 0
    %2630 = vmatpush1.bf16.msra.mxu0 %v1929
    %2631 = vmatprep.subr.bf16.mxu0 0
    %2632 = vmatpush1.bf16.msra.mxu0 %v1928
    %2633 = vmatprep.subr.bf16.mxu0 0
    %2634 = vmatpush1.bf16.msra.mxu0 %v1927
    %2635 = vmatprep.subr.bf16.mxu0 0
    %2636 = vmatpush1.bf16.msra.mxu0 %v1926
    %2637 = vmatprep.subr.bf16.mxu0 0
    %2638 = vmatpush1.bf16.msra.mxu0 %v1925
    %2639 = vmatprep.subr.bf16.mxu0 0
    %2640 = vmatpush1.bf16.msra.mxu0 %v1924
    %2641 = vmatprep.subr.bf16.mxu0 0
    %2642 = vmatpush1.bf16.msra.mxu0 %v1923
    %2643 = vmatprep.subr.bf16.mxu0 0
    %2644 = vmatpush2.bf16.msra.mxu0 %v1938
    %2645 = vmatprep.subr.bf16.mxu0 0
    %2646 = vmatpush2.bf16.msra.mxu0 %v1937
    %2647 = vmatprep.subr.bf16.mxu0 0
    %2648 = vmatpush2.bf16.msra.mxu0 %v1936
    %2649 = vmatprep.subr.bf16.mxu0 0
    %2650 = vmatpush2.bf16.msra.mxu0 %v1935
    %2651 = vmatprep.subr.bf16.mxu0 0
    %2652 = vmatpush2.bf16.msra.mxu0 %v1934
    %2653 = vmatprep.subr.bf16.mxu0 0
    %2654 = vmatpush2.bf16.msra.mxu0 %v1933
    %2655 = vmatprep.subr.bf16.mxu0 0
    %2656 = vmatpush2.bf16.msra.mxu0 %v1932
    %2657 = vmatprep.subr.bf16.mxu0 0
    %2658 = vmatpush2.bf16.msra.mxu0 %v1931
    %2659 = vmatprep.mubr.bf16.mxu0 %v678
    %2660 = vmatmul.mubr.bf16.gmra.mxu0 %v664
    %v2661 = vpop.f32.mrf.mxu0
    %v2662 = vadd.f32 %v2622, %v2661
    %v2663 = vpop.f32.mrf.mxu0
    %v2664 = vpop.f32.mrf.mxu0
    %v2665 = vpop.f32.mrf.mxu0
    %2666 = vdwg.mxu0
    %2667 = vmatprep.subr.bf16.mxu0 0
    %2668 = vmatpush1.bf16.msra.mxu0 %v1946
    %2669 = vmatprep.subr.bf16.mxu0 0
    %2670 = vmatpush1.bf16.msra.mxu0 %v1945
    %2671 = vmatprep.subr.bf16.mxu0 0
    %2672 = vmatpush1.bf16.msra.mxu0 %v1944
    %2673 = vmatprep.subr.bf16.mxu0 0
    %2674 = vmatpush1.bf16.msra.mxu0 %v1943
    %2675 = vmatprep.subr.bf16.mxu0 0
    %2676 = vmatpush1.bf16.msra.mxu0 %v1942
    %2677 = vmatprep.subr.bf16.mxu0 0
    %2678 = vmatpush1.bf16.msra.mxu0 %v1941
    %2679 = vmatprep.subr.bf16.mxu0 0
    %2680 = vmatpush1.bf16.msra.mxu0 %v1940
    %2681 = vmatprep.subr.bf16.mxu0 0
    %2682 = vmatpush1.bf16.msra.mxu0 %v1939
    %2683 = vmatprep.subr.bf16.mxu0 0
    %2684 = vmatpush2.bf16.msra.mxu0 %v1954
    %2685 = vmatprep.subr.bf16.mxu0 0
    %2686 = vmatpush2.bf16.msra.mxu0 %v1953
    %2687 = vmatprep.subr.bf16.mxu0 0
    %2688 = vmatpush2.bf16.msra.mxu0 %v1952
    %2689 = vmatprep.subr.bf16.mxu0 0
    %2690 = vmatpush2.bf16.msra.mxu0 %v1951
    %2691 = vmatprep.subr.bf16.mxu0 0
    %2692 = vmatpush2.bf16.msra.mxu0 %v1950
    %2693 = vmatprep.subr.bf16.mxu0 0
    %2694 = vmatpush2.bf16.msra.mxu0 %v1949
    %2695 = vmatprep.subr.bf16.mxu0 0
    %2696 = vmatpush2.bf16.msra.mxu0 %v1948
    %2697 = vmatprep.subr.bf16.mxu0 0
    %2698 = vmatpush2.bf16.msra.mxu0 %v1947
    %2699 = vmatprep.mubr.bf16.mxu0 %v688
    %2700 = vmatmul.mubr.bf16.gmra.mxu0 %v686
    %v2701 = vpop.f32.mrf.mxu0
    %v2702 = vadd.f32 %v2662, %v2701
    %v2703 = vpop.f32.mrf.mxu0
    %v2704 = vpop.f32.mrf.mxu0
    %v2705 = vpop.f32.mrf.mxu0
    %2706 = vdwg.mxu0
    %2707 = vmatprep.subr.bf16.mxu0 0
    %2708 = vmatpush1.bf16.msra.mxu0 %v1962
    %2709 = vmatprep.subr.bf16.mxu0 0
    %2710 = vmatpush1.bf16.msra.mxu0 %v1961
    %2711 = vmatprep.subr.bf16.mxu0 0
    %2712 = vmatpush1.bf16.msra.mxu0 %v1960
    %2713 = vmatprep.subr.bf16.mxu0 0
    %2714 = vmatpush1.bf16.msra.mxu0 %v1959
    %2715 = vmatprep.subr.bf16.mxu0 0
    %2716 = vmatpush1.bf16.msra.mxu0 %v1958
    %2717 = vmatprep.subr.bf16.mxu0 0
    %2718 = vmatpush1.bf16.msra.mxu0 %v1957
    %2719 = vmatprep.subr.bf16.mxu0 0
    %2720 = vmatpush1.bf16.msra.mxu0 %v1956
    %2721 = vmatprep.subr.bf16.mxu0 0
    %2722 = vmatpush1.bf16.msra.mxu0 %v1955
    %2723 = vmatprep.subr.bf16.mxu0 0
    %2724 = vmatpush2.bf16.msra.mxu0 %v1970
    %2725 = vmatprep.subr.bf16.mxu0 0
    %2726 = vmatpush2.bf16.msra.mxu0 %v1969
    %2727 = vmatprep.subr.bf16.mxu0 0
    %2728 = vmatpush2.bf16.msra.mxu0 %v1968
    %2729 = vmatprep.subr.bf16.mxu0 0
    %2730 = vmatpush2.bf16.msra.mxu0 %v1967
    %2731 = vmatprep.subr.bf16.mxu0 0
    %2732 = vmatpush2.bf16.msra.mxu0 %v1966
    %2733 = vmatprep.subr.bf16.mxu0 0
    %2734 = vmatpush2.bf16.msra.mxu0 %v1965
    %2735 = vmatprep.subr.bf16.mxu0 0
    %2736 = vmatpush2.bf16.msra.mxu0 %v1964
    %2737 = vmatprep.subr.bf16.mxu0 0
    %2738 = vmatpush2.bf16.msra.mxu0 %v1963
    %2739 = vmatprep.mubr.bf16.mxu0 %v685
    %2740 = vmatmul.mubr.bf16.gmra.mxu0 %v671
    %v2741 = vpop.f32.mrf.mxu0
    %v2742 = vadd.f32 %v2702, %v2741
    %v2743 = vpop.f32.mrf.mxu0
    %v2744 = vpop.f32.mrf.mxu0
    %v2745 = vpop.f32.mrf.mxu0
    %2746 = vdwg.mxu0
    %2747 = vmatprep.subr.bf16.mxu0 0
    %2748 = vmatpush1.bf16.msra.mxu0 %v1978
    %2749 = vmatprep.subr.bf16.mxu0 0
    %2750 = vmatpush1.bf16.msra.mxu0 %v1977
    %2751 = vmatprep.subr.bf16.mxu0 0
    %2752 = vmatpush1.bf16.msra.mxu0 %v1976
    %2753 = vmatprep.subr.bf16.mxu0 0
    %2754 = vmatpush1.bf16.msra.mxu0 %v1975
    %2755 = vmatprep.subr.bf16.mxu0 0
    %2756 = vmatpush1.bf16.msra.mxu0 %v1974
    %2757 = vmatprep.subr.bf16.mxu0 0
    %2758 = vmatpush1.bf16.msra.mxu0 %v1973
    %2759 = vmatprep.subr.bf16.mxu0 0
    %2760 = vmatpush1.bf16.msra.mxu0 %v1972
    %2761 = vmatprep.subr.bf16.mxu0 0
    %2762 = vmatpush1.bf16.msra.mxu0 %v1971
    %2763 = vmatprep.subr.bf16.mxu0 0
    %2764 = vmatpush2.bf16.msra.mxu0 %v1986
    %2765 = vmatprep.subr.bf16.mxu0 0
    %2766 = vmatpush2.bf16.msra.mxu0 %v1985
    %2767 = vmatprep.subr.bf16.mxu0 0
    %2768 = vmatpush2.bf16.msra.mxu0 %v1984
    %2769 = vmatprep.subr.bf16.mxu0 0
    %2770 = vmatpush2.bf16.msra.mxu0 %v1983
    %2771 = vmatprep.subr.bf16.mxu0 0
    %2772 = vmatpush2.bf16.msra.mxu0 %v1982
    %2773 = vmatprep.subr.bf16.mxu0 0
    %2774 = vmatpush2.bf16.msra.mxu0 %v1981
    %2775 = vmatprep.subr.bf16.mxu0 0
    %2776 = vmatpush2.bf16.msra.mxu0 %v1980
    %2777 = vmatprep.subr.bf16.mxu0 0
    %2778 = vmatpush2.bf16.msra.mxu0 %v1979
    %2779 = vmatprep.mubr.bf16.mxu0 %v689
    %2780 = vmatmul.mubr.bf16.gmra.mxu0 %v687
    %v2781 = vpop.f32.mrf.mxu0
    %v2782 = vadd.f32 %v2742, %v2781
    %v2783 = vpop.f32.mrf.mxu0
    %v2784 = vpop.f32.mrf.mxu0
    %v2785 = vpop.f32.mrf.mxu0
    %2786 = vdwg.mxu0
    %2787 = vmatprep.subr.bf16.mxu0 0
    %2788 = vmatpush1.bf16.msra.mxu0 %v1994
    %2789 = vmatprep.subr.bf16.mxu0 0
    %2790 = vmatpush1.bf16.msra.mxu0 %v1993
    %2791 = vmatprep.subr.bf16.mxu0 0
    %2792 = vmatpush1.bf16.msra.mxu0 %v1992
    %2793 = vmatprep.subr.bf16.mxu0 0
    %2794 = vmatpush1.bf16.msra.mxu0 %v1991
    %2795 = vmatprep.subr.bf16.mxu0 0
    %2796 = vmatpush1.bf16.msra.mxu0 %v1990
    %2797 = vmatprep.subr.bf16.mxu0 0
    %2798 = vmatpush1.bf16.msra.mxu0 %v1989
    %2799 = vmatprep.subr.bf16.mxu0 0
    %2800 = vmatpush1.bf16.msra.mxu0 %v1988
    %2801 = vmatprep.subr.bf16.mxu0 0
    %2802 = vmatpush1.bf16.msra.mxu0 %v1987
    %2803 = vmatprep.subr.bf16.mxu0 0
    %2804 = vmatpush2.bf16.msra.mxu0 %v2002
    %2805 = vmatprep.subr.bf16.mxu0 0
    %2806 = vmatpush2.bf16.msra.mxu0 %v2001
    %2807 = vmatprep.subr.bf16.mxu0 0
    %2808 = vmatpush2.bf16.msra.mxu0 %v2000
    %2809 = vmatprep.subr.bf16.mxu0 0
    %2810 = vmatpush2.bf16.msra.mxu0 %v1999
    %2811 = vmatprep.subr.bf16.mxu0 0
    %2812 = vmatpush2.bf16.msra.mxu0 %v1998
    %2813 = vmatprep.subr.bf16.mxu0 0
    %2814 = vmatpush2.bf16.msra.mxu0 %v1997
    %2815 = vmatprep.subr.bf16.mxu0 0
    %2816 = vmatpush2.bf16.msra.mxu0 %v1996
    %2817 = vmatprep.subr.bf16.mxu0 0
    %2818 = vmatpush2.bf16.msra.mxu0 %v1995
    %2819 = vmatprep.mubr.bf16.mxu0 %v727
    %2820 = vmatmul.mubr.bf16.gmra.mxu0 %v713
    %v2821 = vpop.f32.mrf.mxu0
    %v2822 = vadd.f32 %v2782, %v2821
    %v2823 = vpop.f32.mrf.mxu0
    %v2824 = vpop.f32.mrf.mxu0
    %v2825 = vpop.f32.mrf.mxu0
    %2826 = vdwg.mxu0
    %2827 = vmatprep.subr.bf16.mxu0 0
    %2828 = vmatpush1.bf16.msra.mxu0 %v2010
    %2829 = vmatprep.subr.bf16.mxu0 0
    %2830 = vmatpush1.bf16.msra.mxu0 %v2009
    %2831 = vmatprep.subr.bf16.mxu0 0
    %2832 = vmatpush1.bf16.msra.mxu0 %v2008
    %2833 = vmatprep.subr.bf16.mxu0 0
    %2834 = vmatpush1.bf16.msra.mxu0 %v2007
    %2835 = vmatprep.subr.bf16.mxu0 0
    %2836 = vmatpush1.bf16.msra.mxu0 %v2006
    %2837 = vmatprep.subr.bf16.mxu0 0
    %2838 = vmatpush1.bf16.msra.mxu0 %v2005
    %2839 = vmatprep.subr.bf16.mxu0 0
    %2840 = vmatpush1.bf16.msra.mxu0 %v2004
    %2841 = vmatprep.subr.bf16.mxu0 0
    %2842 = vmatpush1.bf16.msra.mxu0 %v2003
    %2843 = vmatprep.subr.bf16.mxu0 0
    %2844 = vmatpush2.bf16.msra.mxu0 %v2018
    %2845 = vmatprep.subr.bf16.mxu0 0
    %2846 = vmatpush2.bf16.msra.mxu0 %v2017
    %2847 = vmatprep.subr.bf16.mxu0 0
    %2848 = vmatpush2.bf16.msra.mxu0 %v2016
    %2849 = vmatprep.subr.bf16.mxu0 0
    %2850 = vmatpush2.bf16.msra.mxu0 %v2015
    %2851 = vmatprep.subr.bf16.mxu0 0
    %2852 = vmatpush2.bf16.msra.mxu0 %v2014
    %2853 = vmatprep.subr.bf16.mxu0 0
    %2854 = vmatpush2.bf16.msra.mxu0 %v2013
    %2855 = vmatprep.subr.bf16.mxu0 0
    %2856 = vmatpush2.bf16.msra.mxu0 %v2012
    %2857 = vmatprep.subr.bf16.mxu0 0
    %2858 = vmatpush2.bf16.msra.mxu0 %v2011
    %2859 = vmatprep.mubr.bf16.mxu0 %v737
    %2860 = vmatmul.mubr.bf16.gmra.mxu0 %v735
    %v2861 = vpop.f32.mrf.mxu0
    %v2862 = vadd.f32 %v2822, %v2861
    %v2863 = vpop.f32.mrf.mxu0
    %v2864 = vpop.f32.mrf.mxu0
    %v2865 = vpop.f32.mrf.mxu0
    %2866 = vdwg.mxu0
    %2867 = vmatprep.subr.bf16.mxu0 0
    %2868 = vmatpush1.bf16.msra.mxu0 %v2026
    %2869 = vmatprep.subr.bf16.mxu0 0
    %2870 = vmatpush1.bf16.msra.mxu0 %v2025
    %2871 = vmatprep.subr.bf16.mxu0 0
    %2872 = vmatpush1.bf16.msra.mxu0 %v2024
    %2873 = vmatprep.subr.bf16.mxu0 0
    %2874 = vmatpush1.bf16.msra.mxu0 %v2023
    %2875 = vmatprep.subr.bf16.mxu0 0
    %2876 = vmatpush1.bf16.msra.mxu0 %v2022
    %2877 = vmatprep.subr.bf16.mxu0 0
    %2878 = vmatpush1.bf16.msra.mxu0 %v2021
    %2879 = vmatprep.subr.bf16.mxu0 0
    %2880 = vmatpush1.bf16.msra.mxu0 %v2020
    %2881 = vmatprep.subr.bf16.mxu0 0
    %2882 = vmatpush1.bf16.msra.mxu0 %v2019
    %2883 = vmatprep.subr.bf16.mxu0 0
    %2884 = vmatpush2.bf16.msra.mxu0 %v2034
    %2885 = vmatprep.subr.bf16.mxu0 0
    %2886 = vmatpush2.bf16.msra.mxu0 %v2033
    %2887 = vmatprep.subr.bf16.mxu0 0
    %2888 = vmatpush2.bf16.msra.mxu0 %v2032
    %2889 = vmatprep.subr.bf16.mxu0 0
    %2890 = vmatpush2.bf16.msra.mxu0 %v2031
    %2891 = vmatprep.subr.bf16.mxu0 0
    %2892 = vmatpush2.bf16.msra.mxu0 %v2030
    %2893 = vmatprep.subr.bf16.mxu0 0
    %2894 = vmatpush2.bf16.msra.mxu0 %v2029
    %2895 = vmatprep.subr.bf16.mxu0 0
    %2896 = vmatpush2.bf16.msra.mxu0 %v2028
    %2897 = vmatprep.subr.bf16.mxu0 0
    %2898 = vmatpush2.bf16.msra.mxu0 %v2027
    %2899 = vmatprep.mubr.bf16.mxu0 %v734
    %2900 = vmatmul.mubr.bf16.gmra.mxu0 %v720
    %v2901 = vpop.f32.mrf.mxu0
    %v2902 = vadd.f32 %v2862, %v2901
    %v2903 = vpop.f32.mrf.mxu0
    %v2904 = vpop.f32.mrf.mxu0
    %v2905 = vpop.f32.mrf.mxu0
    %2906 = vdwg.mxu0
    %2907 = vmatprep.subr.bf16.mxu0 0
    %2908 = vmatpush1.bf16.msra.mxu0 %v2042
    %2909 = vmatprep.subr.bf16.mxu0 0
    %2910 = vmatpush1.bf16.msra.mxu0 %v2041
    %2911 = vmatprep.subr.bf16.mxu0 0
    %2912 = vmatpush1.bf16.msra.mxu0 %v2040
    %2913 = vmatprep.subr.bf16.mxu0 0
    %2914 = vmatpush1.bf16.msra.mxu0 %v2039
    %2915 = vmatprep.subr.bf16.mxu0 0
    %2916 = vmatpush1.bf16.msra.mxu0 %v2038
    %2917 = vmatprep.subr.bf16.mxu0 0
    %2918 = vmatpush1.bf16.msra.mxu0 %v2037
    %2919 = vmatprep.subr.bf16.mxu0 0
    %2920 = vmatpush1.bf16.msra.mxu0 %v2036
    %2921 = vmatprep.subr.bf16.mxu0 0
    %2922 = vmatpush1.bf16.msra.mxu0 %v2035
    %2923 = vmatprep.subr.bf16.mxu0 0
    %2924 = vmatpush2.bf16.msra.mxu0 %v2050
    %2925 = vmatprep.subr.bf16.mxu0 0
    %2926 = vmatpush2.bf16.msra.mxu0 %v2049
    %2927 = vmatprep.subr.bf16.mxu0 0
    %2928 = vmatpush2.bf16.msra.mxu0 %v2048
    %2929 = vmatprep.subr.bf16.mxu0 0
    %2930 = vmatpush2.bf16.msra.mxu0 %v2047
    %2931 = vmatprep.subr.bf16.mxu0 0
    %2932 = vmatpush2.bf16.msra.mxu0 %v2046
    %2933 = vmatprep.subr.bf16.mxu0 0
    %2934 = vmatpush2.bf16.msra.mxu0 %v2045
    %2935 = vmatprep.subr.bf16.mxu0 0
    %2936 = vmatpush2.bf16.msra.mxu0 %v2044
    %2937 = vmatprep.subr.bf16.mxu0 0
    %2938 = vmatpush2.bf16.msra.mxu0 %v2043
    %2939 = vmatprep.mubr.bf16.mxu0 %v738
    %2940 = vmatmul.mubr.bf16.gmra.mxu0 %v736
    %v2941 = vpop.f32.mrf.mxu0
    %v2942 = vadd.f32 %v2902, %v2941
    %v2943 = vpop.f32.mrf.mxu0
    %v2944 = vpop.f32.mrf.mxu0
    %v2945 = vpop.f32.mrf.mxu0
    %2946 = vdwg.mxu0
    %vm2947 = vcmask 254976
    %2948 = vst.msk [vmem:[#allocation2] sm:$0x3] %vm2947, %v2942
    // Predicated region
    $region14: #{gcn_encoder_forward.7} parent=1 // pred_check
      _
    $region15: #{gcn_encoder_forward.7} parent=1 // pred_check_branch
      %2950 = sbr.rel (0) target = $region17
    $region16: #{gcn_encoder_forward.7} parent=1 // pred_region
      %s2952 = ssub.s32 32, 32
      %2953 = vsyncadd [#allocation3], %s2952
      %s2955 = sshll.u32 [#allocation2], 4
      %s2956 = int_to_ptr.vmem [resolvable:$true] %s2955
      %2958 = dma.vmem_to_hbm [thread:$0]  %s2956, 32, %s3, [#allocation3]
    $region17: #{gcn_encoder_forward.7} parent=1 // pred_fallthru
      _
    // Predicated region
    $region18: #{gcn_encoder_forward.7} parent=1 // pred_check
      _
    $region19: #{gcn_encoder_forward.7} parent=1 // pred_check_branch
      %2960 = sbr.rel (0) target = $region21
    $region20: #{gcn_encoder_forward.7} parent=1 // pred_region
      %2961 = dma.done [#allocation3], 32
    $region21: #{gcn_encoder_forward.7} parent=1 // pred_fallthru
      _
    %2962 = vsyncpa [#allocation3], 1

</llo_original>
